<compile_context>
chip_gen: v7x
topology: tpu7x:2x2x1
jax: 0.10.0
libtpu: 0.0.40
codegen_flags: <defaults>
</compile_context>

<pallas_src>
import jax
import jax.numpy as jnp
from jax.experimental import pallas as pl
from jax.experimental.pallas import tpu as pltpu


# ----------------------------------------------------------------------------
# Interpolation matrix for 1-D bilinear x2 upsampling, align_corners=True.
# Returns M of shape (n_in, n_out) such that (signal @ M) upsamples the last
# axis: out[q] = sum_w signal[w] * M[w, q].
# ----------------------------------------------------------------------------
def _make_interp_matrix(n_in, n_out):
    if n_in == 1:
        return jnp.ones((1, n_out), dtype=jnp.float32)
    src = jnp.arange(n_out, dtype=jnp.float32) * ((n_in - 1) / (n_out - 1))
    i0 = jnp.floor(src).astype(jnp.int32)
    i1 = jnp.minimum(i0 + 1, n_in - 1)
    frac = src - i0.astype(jnp.float32)
    rows = jnp.arange(n_in, dtype=jnp.int32)[:, None]                 # (n_in, 1)
    m = ((rows == i0[None, :]).astype(jnp.float32) * (1.0 - frac)[None, :]
         + (rows == i1[None, :]).astype(jnp.float32) * frac[None, :])
    return m                                                          # (n_in, n_out)


# ----------------------------------------------------------------------------
# Fused kernel: bilinear x2 upsample + Conv2d(k=2, stride=1, valid) + bias.
# One grid step == one batch image.  Output is written directly in NCHW.
# ----------------------------------------------------------------------------
def _upsample_conv_kernel(x_ref, b_up_ref, a_up_ref, w_ref, bias_ref, o_ref):
    # x_ref:    (1, Cin, H, W)          one input image
    # b_up_ref: (Ho, H)                 H-direction interpolation matrix
    # a_up_ref: (W, Wo)                 W-direction interpolation matrix
    # w_ref:    (4*Cin, Cout, 1, 1)     conv weights, row k = (dh*2+dw)*Cin + ci
    # bias_ref: (Cout, 1, 1)
    # o_ref:    (1, Cout, Hc, Wc)       conv output (already NCHW)
    _, cin, h, w = x_ref.shape
    _, cout, hc, wc = o_ref.shape

    a_up = a_up_ref[...]                                   # (W, Wo)
    b_up = b_up_ref[...]                                   # (Ho, H)

    # ---- W-direction interp for ALL channels in one MXU matmul ----
    # (Cin*H, W) @ (W, Wo) -> (Cin*H, Wo)
    t = jnp.dot(x_ref[0].reshape(cin * h, w), a_up,
                preferred_element_type=jnp.float32)

    # ---- per-channel H-interp (MXU) + fused 2x2 valid conv (VPU FMAs) ----
    acc = jnp.zeros((cout, hc, wc), jnp.float32)
    for ci in range(cin):                                  # static unroll, Cin small
        # H-direction interp for this channel: (Ho, H) @ (H, Wo) -> (Ho, Wo)
        u_c = jnp.dot(b_up, t[ci * h:(ci + 1) * h, :],
                      preferred_element_type=jnp.float32)
        for dh in range(2):
            for dw in range(2):
                k = (dh * 2 + dw) * cin + ci
                # (Cout,1,1) * (1,Hc,Wc) -> (Cout,Hc,Wc) broadcasted FMA (VPU)
                acc = acc + w_ref[k] * u_c[dh:dh + hc, dw:dw + wc][None, :, :]

    o_ref[0] = (acc + bias_ref[...]).astype(o_ref.dtype)   # (Cout, Hc, Wc)


# ----------------------------------------------------------------------------
# Module wrapper
# ----------------------------------------------------------------------------
def upsample_conv_forward(x, weight, bias):
    """x: (N, Cin, H, W); weight: (Cout, Cin, 2, 2); bias: (Cout,).
    Returns (N, Cout, 2H-1, 2W-1) -- matches
    nn.Upsample(2, 'bilinear', align_corners=True) -> nn.Conv2d(k=2, pad=0)."""
    n, cin, h, w = x.shape
    cout = weight.shape[0]
    ho, wo = 2 * h, 2 * w
    hc, wc = ho - 1, wo - 1

    b_up = _make_interp_matrix(h, ho).T                    # (Ho, H)
    a_up = _make_interp_matrix(w, wo)                      # (W, Wo)
    # Conv taps flattened: row k = (dh*2 + dw)*Cin + ci holds the Cout-vector,
    # pre-shaped (Cout, 1, 1) so the kernel needs no lane<->sublane relayout.
    w_flat = jnp.transpose(weight.astype(jnp.float32),
                           (2, 3, 1, 0)).reshape(4 * cin, cout, 1, 1)
    b_col = bias.astype(jnp.float32).reshape(cout, 1, 1)

    return pl.pallas_call(
        _upsample_conv_kernel,
        out_shape=jax.ShapeDtypeStruct((n, cout, hc, wc), jnp.float32),
        grid=(n,),
        in_specs=[
            pl.BlockSpec((1, cin, h, w), lambda i: (i, 0, 0, 0)),       # x (one image)
            pl.BlockSpec((ho, h), lambda i: (0, 0)),                    # B (resident)
            pl.BlockSpec((w, wo), lambda i: (0, 0)),                    # A (resident)
            pl.BlockSpec((4 * cin, cout, 1, 1), lambda i: (0, 0, 0, 0)),# conv weights
            pl.BlockSpec((cout, 1, 1), lambda i: (0, 0, 0)),            # bias
        ],
        out_specs=pl.BlockSpec((1, cout, hc, wc), lambda i: (i, 0, 0, 0)),
        compiler_params=pltpu.CompilerParams(
            dimension_semantics=("parallel",)),
    )(x.astype(jnp.float32), b_up, a_up, w_flat, b_col)


# Pure-JAX reference for verification (PyTorch semantics).
def _reference(x, weight, bias):
    N, C, H, W = x.shape
    Ho, Wo = 2 * H, 2 * W
    ys = jnp.arange(Ho, dtype=jnp.float32) * (H - 1) / (Ho - 1)
    xs = jnp.arange(Wo, dtype=jnp.float32) * (W - 1) / (Wo - 1)
    y0 = jnp.floor(ys).astype(jnp.int32); y1 = jnp.minimum(y0 + 1, H - 1)
    x0 = jnp.floor(xs).astype(jnp.int32); x1 = jnp.minimum(x0 + 1, W - 1)
    fy = (ys - y0)[None, None, :, None]; fx = (xs - x0)[None, None, None, :]
    r0 = jnp.take(x, y0, axis=2); r1 = jnp.take(x, y1, axis=2)
    up = ((1 - fy) * (1 - fx) * jnp.take(r0, x0, axis=3)
          + (1 - fy) * fx * jnp.take(r0, x1, axis=3)
          + fy * (1 - fx) * jnp.take(r1, x0, axis=3)
          + fy * fx * jnp.take(r1, x1, axis=3))
    out = jax.lax.conv_general_dilated(
        up, weight, window_strides=(1, 1), padding="VALID",
        dimension_numbers=("NCHW", "OIHW", "NCHW"))
    return out + bias[None, :, None, None]


if __name__ == "__main__":
    key = jax.random.PRNGKey(0)
    k_x, k_w, k_b = jax.random.split(key, 3)

    batch, in_channels, out_channels, H, W = 2, 4, 8, 16, 16
    x = jax.random.normal(k_x, (batch, in_channels, H, W), dtype=jnp.float32)
    # Deterministic synthetic parameters (shapes from nn.Conv2d(in, out, 2)).
    weight = 0.1 * jax.random.normal(k_w, (out_channels, in_channels, 2, 2),
                                     dtype=jnp.float32)
    bias = 0.1 * jax.random.normal(k_b, (out_channels,), dtype=jnp.float32)

    fwd = jax.jit(upsample_conv_forward)
    out = jax.block_until_ready(fwd(x, weight, bias))
    ref = jax.block_until_ready(_reference(x, weight, bias))

    assert out.shape == (batch, out_channels, 2 * H - 1, 2 * W - 1), out.shape
    assert jnp.allclose(out, ref, atol=1e-4, rtol=1e-4), "mismatch vs reference"
    print("KERNEL_OK")
</pallas_src>

<mosaic_0001>
module attributes {stable_mosaic.version = 11 : i64} {
  func.func @_upsample_conv_kernel(%arg0: i32, %arg1: memref<1x4x16x16xf32, #tpu.memory_space<vmem>>, %arg2: memref<32x16xf32, #tpu.memory_space<vmem>>, %arg3: memref<16x32xf32, #tpu.memory_space<vmem>>, %arg4: memref<16x8x1x1xf32, #tpu.memory_space<vmem>>, %arg5: memref<8x1x1xf32, #tpu.memory_space<vmem>>, %arg6: memref<1x8x31x31xf32, #tpu.memory_space<vmem>>) attributes {dimension_semantics = [#tpu.dimension_semantics<parallel>], iteration_bounds = array<i64: 2>, scalar_prefetch = 0 : i64, scratch_operands = 0 : i64, tpu.core_type = #tpu.core_type<tc>, window_params = [{transform_indices = @transform_0, window_bounds = array<i64: 1, 4, 16, 16>}, {pipeline_mode = #tpu.pipeline_mode<synchronous>, transform_indices = @transform_1, window_bounds = array<i64: 32, 16>}, {pipeline_mode = #tpu.pipeline_mode<synchronous>, transform_indices = @transform_2, window_bounds = array<i64: 16, 32>}, {pipeline_mode = #tpu.pipeline_mode<synchronous>, transform_indices = @transform_3, window_bounds = array<i64: 16, 8, 1, 1>}, {pipeline_mode = #tpu.pipeline_mode<synchronous>, transform_indices = @transform_4, window_bounds = array<i64: 8, 1, 1>}, {transform_indices = @transform_5, window_bounds = array<i64: 1, 8, 31, 31>}]} {
    %c0 = arith.constant 0 : index
    %c0_0 = arith.constant 0 : index
    %0 = vector.load %arg3[%c0, %c0_0] : memref<16x32xf32, #tpu.memory_space<vmem>>, vector<16x32xf32>
    %c0_1 = arith.constant 0 : index
    %c0_2 = arith.constant 0 : index
    %1 = vector.load %arg2[%c0_1, %c0_2] : memref<32x16xf32, #tpu.memory_space<vmem>>, vector<32x16xf32>
    %c0_3 = arith.constant 0 : index
    %c0_4 = arith.constant 0 : index
    %c0_5 = arith.constant 0 : index
    %c0_6 = arith.constant 0 : index
    %2 = vector.load %arg1[%c0_3, %c0_4, %c0_5, %c0_6] : memref<1x4x16x16xf32, #tpu.memory_space<vmem>>, vector<1x4x16x16xf32>
    %3 = vector.shape_cast %2 : vector<1x4x16x16xf32> to vector<4x16x16xf32>
    %4 = vector.shape_cast %3 : vector<4x16x16xf32> to vector<64x16xf32>
    %cst = arith.constant dense<0.000000e+00> : vector<64x32xf32>
    %5 = tpu.matmul %4, %0, %cst {dimension_numbers = #tpu.dot_dimension_numbers<[1], [0], [0], [1], [0, 0, 1, 1], [], []>} : vector<64x16xf32>, vector<16x32xf32>, vector<64x32xf32> -> vector<64x32xf32>
    %cst_7 = arith.constant 0.000000e+00 : f32
    %6 = vector.broadcast %cst_7 : f32 to vector<8x31x31xf32>
    %7 = vector.extract_strided_slice %5 {offsets = [0, 0], sizes = [16, 32], strides = [1, 1]} : vector<64x32xf32> to vector<16x32xf32>
    %cst_8 = arith.constant dense<0.000000e+00> : vector<32x32xf32>
    %8 = tpu.matmul %1, %7, %cst_8 {dimension_numbers = #tpu.dot_dimension_numbers<[1], [0], [0], [1], [0, 0, 1, 1], [], []>} : vector<32x16xf32>, vector<16x32xf32>, vector<32x32xf32> -> vector<32x32xf32>
    %c0_9 = arith.constant 0 : index
    %c0_10 = arith.constant 0 : index
    %c0_11 = arith.constant 0 : index
    %c0_12 = arith.constant 0 : index
    %9 = vector.load %arg4[%c0_9, %c0_10, %c0_11, %c0_12] : memref<16x8x1x1xf32, #tpu.memory_space<vmem>>, vector<1x8x1x1xf32>
    %10 = vector.shape_cast %9 : vector<1x8x1x1xf32> to vector<8x1x1xf32>
    %11 = vector.extract_strided_slice %8 {offsets = [0, 0], sizes = [31, 31], strides = [1, 1]} : vector<32x32xf32> to vector<31x31xf32>
    %12 = vector.shape_cast %11 : vector<31x31xf32> to vector<1x31x31xf32>
    %13 = vector.broadcast %10 : vector<8x1x1xf32> to vector<8x31x31xf32>
    %14 = vector.broadcast %12 : vector<1x31x31xf32> to vector<8x31x31xf32>
    %15 = arith.mulf %13, %14 : vector<8x31x31xf32>
    %16 = arith.addf %6, %15 : vector<8x31x31xf32>
    %c4 = arith.constant 4 : index
    %c0_13 = arith.constant 0 : index
    %c0_14 = arith.constant 0 : index
    %c0_15 = arith.constant 0 : index
    %17 = vector.load %arg4[%c4, %c0_13, %c0_14, %c0_15] : memref<16x8x1x1xf32, #tpu.memory_space<vmem>>, vector<1x8x1x1xf32>
    %18 = vector.shape_cast %17 : vector<1x8x1x1xf32> to vector<8x1x1xf32>
    %19 = vector.extract_strided_slice %8 {offsets = [0, 1], sizes = [31, 31], strides = [1, 1]} : vector<32x32xf32> to vector<31x31xf32>
    %20 = vector.shape_cast %19 : vector<31x31xf32> to vector<1x31x31xf32>
    %21 = vector.broadcast %18 : vector<8x1x1xf32> to vector<8x31x31xf32>
    %22 = vector.broadcast %20 : vector<1x31x31xf32> to vector<8x31x31xf32>
    %23 = arith.mulf %21, %22 : vector<8x31x31xf32>
    %24 = arith.addf %16, %23 : vector<8x31x31xf32>
    %c8 = arith.constant 8 : index
    %c0_16 = arith.constant 0 : index
    %c0_17 = arith.constant 0 : index
    %c0_18 = arith.constant 0 : index
    %25 = vector.load %arg4[%c8, %c0_16, %c0_17, %c0_18] : memref<16x8x1x1xf32, #tpu.memory_space<vmem>>, vector<1x8x1x1xf32>
    %26 = vector.shape_cast %25 : vector<1x8x1x1xf32> to vector<8x1x1xf32>
    %27 = vector.extract_strided_slice %8 {offsets = [1, 0], sizes = [31, 31], strides = [1, 1]} : vector<32x32xf32> to vector<31x31xf32>
    %28 = vector.shape_cast %27 : vector<31x31xf32> to vector<1x31x31xf32>
    %29 = vector.broadcast %26 : vector<8x1x1xf32> to vector<8x31x31xf32>
    %30 = vector.broadcast %28 : vector<1x31x31xf32> to vector<8x31x31xf32>
    %31 = arith.mulf %29, %30 : vector<8x31x31xf32>
    %32 = arith.addf %24, %31 : vector<8x31x31xf32>
    %c12 = arith.constant 12 : index
    %c0_19 = arith.constant 0 : index
    %c0_20 = arith.constant 0 : index
    %c0_21 = arith.constant 0 : index
    %33 = vector.load %arg4[%c12, %c0_19, %c0_20, %c0_21] : memref<16x8x1x1xf32, #tpu.memory_space<vmem>>, vector<1x8x1x1xf32>
    %34 = vector.shape_cast %33 : vector<1x8x1x1xf32> to vector<8x1x1xf32>
    %35 = vector.extract_strided_slice %8 {offsets = [1, 1], sizes = [31, 31], strides = [1, 1]} : vector<32x32xf32> to vector<31x31xf32>
    %36 = vector.shape_cast %35 : vector<31x31xf32> to vector<1x31x31xf32>
    %37 = vector.broadcast %34 : vector<8x1x1xf32> to vector<8x31x31xf32>
    %38 = vector.broadcast %36 : vector<1x31x31xf32> to vector<8x31x31xf32>
    %39 = arith.mulf %37, %38 : vector<8x31x31xf32>
    %40 = arith.addf %32, %39 : vector<8x31x31xf32>
    %41 = vector.extract_strided_slice %5 {offsets = [16, 0], sizes = [16, 32], strides = [1, 1]} : vector<64x32xf32> to vector<16x32xf32>
    %cst_22 = arith.constant dense<0.000000e+00> : vector<32x32xf32>
    %42 = tpu.matmul %1, %41, %cst_22 {dimension_numbers = #tpu.dot_dimension_numbers<[1], [0], [0], [1], [0, 0, 1, 1], [], []>} : vector<32x16xf32>, vector<16x32xf32>, vector<32x32xf32> -> vector<32x32xf32>
    %c1 = arith.constant 1 : index
    %c0_23 = arith.constant 0 : index
    %c0_24 = arith.constant 0 : index
    %c0_25 = arith.constant 0 : index
    %43 = vector.load %arg4[%c1, %c0_23, %c0_24, %c0_25] : memref<16x8x1x1xf32, #tpu.memory_space<vmem>>, vector<1x8x1x1xf32>
    %44 = vector.shape_cast %43 : vector<1x8x1x1xf32> to vector<8x1x1xf32>
    %45 = vector.extract_strided_slice %42 {offsets = [0, 0], sizes = [31, 31], strides = [1, 1]} : vector<32x32xf32> to vector<31x31xf32>
    %46 = vector.shape_cast %45 : vector<31x31xf32> to vector<1x31x31xf32>
    %47 = vector.broadcast %44 : vector<8x1x1xf32> to vector<8x31x31xf32>
    %48 = vector.broadcast %46 : vector<1x31x31xf32> to vector<8x31x31xf32>
    %49 = arith.mulf %47, %48 : vector<8x31x31xf32>
    %50 = arith.addf %40, %49 : vector<8x31x31xf32>
    %c5 = arith.constant 5 : index
    %c0_26 = arith.constant 0 : index
    %c0_27 = arith.constant 0 : index
    %c0_28 = arith.constant 0 : index
    %51 = vector.load %arg4[%c5, %c0_26, %c0_27, %c0_28] : memref<16x8x1x1xf32, #tpu.memory_space<vmem>>, vector<1x8x1x1xf32>
    %52 = vector.shape_cast %51 : vector<1x8x1x1xf32> to vector<8x1x1xf32>
    %53 = vector.extract_strided_slice %42 {offsets = [0, 1], sizes = [31, 31], strides = [1, 1]} : vector<32x32xf32> to vector<31x31xf32>
    %54 = vector.shape_cast %53 : vector<31x31xf32> to vector<1x31x31xf32>
    %55 = vector.broadcast %52 : vector<8x1x1xf32> to vector<8x31x31xf32>
    %56 = vector.broadcast %54 : vector<1x31x31xf32> to vector<8x31x31xf32>
    %57 = arith.mulf %55, %56 : vector<8x31x31xf32>
    %58 = arith.addf %50, %57 : vector<8x31x31xf32>
    %c9 = arith.constant 9 : index
    %c0_29 = arith.constant 0 : index
    %c0_30 = arith.constant 0 : index
    %c0_31 = arith.constant 0 : index
    %59 = vector.load %arg4[%c9, %c0_29, %c0_30, %c0_31] : memref<16x8x1x1xf32, #tpu.memory_space<vmem>>, vector<1x8x1x1xf32>
    %60 = vector.shape_cast %59 : vector<1x8x1x1xf32> to vector<8x1x1xf32>
    %61 = vector.extract_strided_slice %42 {offsets = [1, 0], sizes = [31, 31], strides = [1, 1]} : vector<32x32xf32> to vector<31x31xf32>
    %62 = vector.shape_cast %61 : vector<31x31xf32> to vector<1x31x31xf32>
    %63 = vector.broadcast %60 : vector<8x1x1xf32> to vector<8x31x31xf32>
    %64 = vector.broadcast %62 : vector<1x31x31xf32> to vector<8x31x31xf32>
    %65 = arith.mulf %63, %64 : vector<8x31x31xf32>
    %66 = arith.addf %58, %65 : vector<8x31x31xf32>
    %c13 = arith.constant 13 : index
    %c0_32 = arith.constant 0 : index
    %c0_33 = arith.constant 0 : index
    %c0_34 = arith.constant 0 : index
    %67 = vector.load %arg4[%c13, %c0_32, %c0_33, %c0_34] : memref<16x8x1x1xf32, #tpu.memory_space<vmem>>, vector<1x8x1x1xf32>
    %68 = vector.shape_cast %67 : vector<1x8x1x1xf32> to vector<8x1x1xf32>
    %69 = vector.extract_strided_slice %42 {offsets = [1, 1], sizes = [31, 31], strides = [1, 1]} : vector<32x32xf32> to vector<31x31xf32>
    %70 = vector.shape_cast %69 : vector<31x31xf32> to vector<1x31x31xf32>
    %71 = vector.broadcast %68 : vector<8x1x1xf32> to vector<8x31x31xf32>
    %72 = vector.broadcast %70 : vector<1x31x31xf32> to vector<8x31x31xf32>
    %73 = arith.mulf %71, %72 : vector<8x31x31xf32>
    %74 = arith.addf %66, %73 : vector<8x31x31xf32>
    %75 = vector.extract_strided_slice %5 {offsets = [32, 0], sizes = [16, 32], strides = [1, 1]} : vector<64x32xf32> to vector<16x32xf32>
    %cst_35 = arith.constant dense<0.000000e+00> : vector<32x32xf32>
    %76 = tpu.matmul %1, %75, %cst_35 {dimension_numbers = #tpu.dot_dimension_numbers<[1], [0], [0], [1], [0, 0, 1, 1], [], []>} : vector<32x16xf32>, vector<16x32xf32>, vector<32x32xf32> -> vector<32x32xf32>
    %c2 = arith.constant 2 : index
    %c0_36 = arith.constant 0 : index
    %c0_37 = arith.constant 0 : index
    %c0_38 = arith.constant 0 : index
    %77 = vector.load %arg4[%c2, %c0_36, %c0_37, %c0_38] : memref<16x8x1x1xf32, #tpu.memory_space<vmem>>, vector<1x8x1x1xf32>
    %78 = vector.shape_cast %77 : vector<1x8x1x1xf32> to vector<8x1x1xf32>
    %79 = vector.extract_strided_slice %76 {offsets = [0, 0], sizes = [31, 31], strides = [1, 1]} : vector<32x32xf32> to vector<31x31xf32>
    %80 = vector.shape_cast %79 : vector<31x31xf32> to vector<1x31x31xf32>
    %81 = vector.broadcast %78 : vector<8x1x1xf32> to vector<8x31x31xf32>
    %82 = vector.broadcast %80 : vector<1x31x31xf32> to vector<8x31x31xf32>
    %83 = arith.mulf %81, %82 : vector<8x31x31xf32>
    %84 = arith.addf %74, %83 : vector<8x31x31xf32>
    %c6 = arith.constant 6 : index
    %c0_39 = arith.constant 0 : index
    %c0_40 = arith.constant 0 : index
    %c0_41 = arith.constant 0 : index
    %85 = vector.load %arg4[%c6, %c0_39, %c0_40, %c0_41] : memref<16x8x1x1xf32, #tpu.memory_space<vmem>>, vector<1x8x1x1xf32>
    %86 = vector.shape_cast %85 : vector<1x8x1x1xf32> to vector<8x1x1xf32>
    %87 = vector.extract_strided_slice %76 {offsets = [0, 1], sizes = [31, 31], strides = [1, 1]} : vector<32x32xf32> to vector<31x31xf32>
    %88 = vector.shape_cast %87 : vector<31x31xf32> to vector<1x31x31xf32>
    %89 = vector.broadcast %86 : vector<8x1x1xf32> to vector<8x31x31xf32>
    %90 = vector.broadcast %88 : vector<1x31x31xf32> to vector<8x31x31xf32>
    %91 = arith.mulf %89, %90 : vector<8x31x31xf32>
    %92 = arith.addf %84, %91 : vector<8x31x31xf32>
    %c10 = arith.constant 10 : index
    %c0_42 = arith.constant 0 : index
    %c0_43 = arith.constant 0 : index
    %c0_44 = arith.constant 0 : index
    %93 = vector.load %arg4[%c10, %c0_42, %c0_43, %c0_44] : memref<16x8x1x1xf32, #tpu.memory_space<vmem>>, vector<1x8x1x1xf32>
    %94 = vector.shape_cast %93 : vector<1x8x1x1xf32> to vector<8x1x1xf32>
    %95 = vector.extract_strided_slice %76 {offsets = [1, 0], sizes = [31, 31], strides = [1, 1]} : vector<32x32xf32> to vector<31x31xf32>
    %96 = vector.shape_cast %95 : vector<31x31xf32> to vector<1x31x31xf32>
    %97 = vector.broadcast %94 : vector<8x1x1xf32> to vector<8x31x31xf32>
    %98 = vector.broadcast %96 : vector<1x31x31xf32> to vector<8x31x31xf32>
    %99 = arith.mulf %97, %98 : vector<8x31x31xf32>
    %100 = arith.addf %92, %99 : vector<8x31x31xf32>
    %c14 = arith.constant 14 : index
    %c0_45 = arith.constant 0 : index
    %c0_46 = arith.constant 0 : index
    %c0_47 = arith.constant 0 : index
    %101 = vector.load %arg4[%c14, %c0_45, %c0_46, %c0_47] : memref<16x8x1x1xf32, #tpu.memory_space<vmem>>, vector<1x8x1x1xf32>
    %102 = vector.shape_cast %101 : vector<1x8x1x1xf32> to vector<8x1x1xf32>
    %103 = vector.extract_strided_slice %76 {offsets = [1, 1], sizes = [31, 31], strides = [1, 1]} : vector<32x32xf32> to vector<31x31xf32>
    %104 = vector.shape_cast %103 : vector<31x31xf32> to vector<1x31x31xf32>
    %105 = vector.broadcast %102 : vector<8x1x1xf32> to vector<8x31x31xf32>
    %106 = vector.broadcast %104 : vector<1x31x31xf32> to vector<8x31x31xf32>
    %107 = arith.mulf %105, %106 : vector<8x31x31xf32>
    %108 = arith.addf %100, %107 : vector<8x31x31xf32>
    %109 = vector.extract_strided_slice %5 {offsets = [48, 0], sizes = [16, 32], strides = [1, 1]} : vector<64x32xf32> to vector<16x32xf32>
    %cst_48 = arith.constant dense<0.000000e+00> : vector<32x32xf32>
    %110 = tpu.matmul %1, %109, %cst_48 {dimension_numbers = #tpu.dot_dimension_numbers<[1], [0], [0], [1], [0, 0, 1, 1], [], []>} : vector<32x16xf32>, vector<16x32xf32>, vector<32x32xf32> -> vector<32x32xf32>
    %c3 = arith.constant 3 : index
    %c0_49 = arith.constant 0 : index
    %c0_50 = arith.constant 0 : index
    %c0_51 = arith.constant 0 : index
    %111 = vector.load %arg4[%c3, %c0_49, %c0_50, %c0_51] : memref<16x8x1x1xf32, #tpu.memory_space<vmem>>, vector<1x8x1x1xf32>
    %112 = vector.shape_cast %111 : vector<1x8x1x1xf32> to vector<8x1x1xf32>
    %113 = vector.extract_strided_slice %110 {offsets = [0, 0], sizes = [31, 31], strides = [1, 1]} : vector<32x32xf32> to vector<31x31xf32>
    %114 = vector.shape_cast %113 : vector<31x31xf32> to vector<1x31x31xf32>
    %115 = vector.broadcast %112 : vector<8x1x1xf32> to vector<8x31x31xf32>
    %116 = vector.broadcast %114 : vector<1x31x31xf32> to vector<8x31x31xf32>
    %117 = arith.mulf %115, %116 : vector<8x31x31xf32>
    %118 = arith.addf %108, %117 : vector<8x31x31xf32>
    %c7 = arith.constant 7 : index
    %c0_52 = arith.constant 0 : index
    %c0_53 = arith.constant 0 : index
    %c0_54 = arith.constant 0 : index
    %119 = vector.load %arg4[%c7, %c0_52, %c0_53, %c0_54] : memref<16x8x1x1xf32, #tpu.memory_space<vmem>>, vector<1x8x1x1xf32>
    %120 = vector.shape_cast %119 : vector<1x8x1x1xf32> to vector<8x1x1xf32>
    %121 = vector.extract_strided_slice %110 {offsets = [0, 1], sizes = [31, 31], strides = [1, 1]} : vector<32x32xf32> to vector<31x31xf32>
    %122 = vector.shape_cast %121 : vector<31x31xf32> to vector<1x31x31xf32>
    %123 = vector.broadcast %120 : vector<8x1x1xf32> to vector<8x31x31xf32>
    %124 = vector.broadcast %122 : vector<1x31x31xf32> to vector<8x31x31xf32>
    %125 = arith.mulf %123, %124 : vector<8x31x31xf32>
    %126 = arith.addf %118, %125 : vector<8x31x31xf32>
    %c11 = arith.constant 11 : index
    %c0_55 = arith.constant 0 : index
    %c0_56 = arith.constant 0 : index
    %c0_57 = arith.constant 0 : index
    %127 = vector.load %arg4[%c11, %c0_55, %c0_56, %c0_57] : memref<16x8x1x1xf32, #tpu.memory_space<vmem>>, vector<1x8x1x1xf32>
    %128 = vector.shape_cast %127 : vector<1x8x1x1xf32> to vector<8x1x1xf32>
    %129 = vector.extract_strided_slice %110 {offsets = [1, 0], sizes = [31, 31], strides = [1, 1]} : vector<32x32xf32> to vector<31x31xf32>
    %130 = vector.shape_cast %129 : vector<31x31xf32> to vector<1x31x31xf32>
    %131 = vector.broadcast %128 : vector<8x1x1xf32> to vector<8x31x31xf32>
    %132 = vector.broadcast %130 : vector<1x31x31xf32> to vector<8x31x31xf32>
    %133 = arith.mulf %131, %132 : vector<8x31x31xf32>
    %134 = arith.addf %126, %133 : vector<8x31x31xf32>
    %c15 = arith.constant 15 : index
    %c0_58 = arith.constant 0 : index
    %c0_59 = arith.constant 0 : index
    %c0_60 = arith.constant 0 : index
    %135 = vector.load %arg4[%c15, %c0_58, %c0_59, %c0_60] : memref<16x8x1x1xf32, #tpu.memory_space<vmem>>, vector<1x8x1x1xf32>
    %136 = vector.shape_cast %135 : vector<1x8x1x1xf32> to vector<8x1x1xf32>
    %137 = vector.extract_strided_slice %110 {offsets = [1, 1], sizes = [31, 31], strides = [1, 1]} : vector<32x32xf32> to vector<31x31xf32>
    %138 = vector.shape_cast %137 : vector<31x31xf32> to vector<1x31x31xf32>
    %139 = vector.broadcast %136 : vector<8x1x1xf32> to vector<8x31x31xf32>
    %140 = vector.broadcast %138 : vector<1x31x31xf32> to vector<8x31x31xf32>
    %141 = arith.mulf %139, %140 : vector<8x31x31xf32>
    %142 = arith.addf %134, %141 : vector<8x31x31xf32>
    %c0_61 = arith.constant 0 : index
    %c0_62 = arith.constant 0 : index
    %c0_63 = arith.constant 0 : index
    %143 = vector.load %arg5[%c0_61, %c0_62, %c0_63] : memref<8x1x1xf32, #tpu.memory_space<vmem>>, vector<8x1x1xf32>
    %144 = vector.broadcast %143 : vector<8x1x1xf32> to vector<8x31x31xf32>
    %145 = arith.addf %142, %144 : vector<8x31x31xf32>
    %c0_64 = arith.constant 0 : index
    %c0_65 = arith.constant 0 : index
    %c0_66 = arith.constant 0 : index
    %c0_67 = arith.constant 0 : index
    %146 = vector.load %arg6[%c0_64, %c0_65, %c0_66, %c0_67] : memref<1x8x31x31xf32, #tpu.memory_space<vmem>>, vector<1x8x31x31xf32>
    %147 = vector.shape_cast %146 : vector<1x8x31x31xf32> to vector<8x31x31xf32>
    %148 = vector.shape_cast %145 : vector<8x31x31xf32> to vector<1x8x31x31xf32>
    tpu.vector_store %arg6[%c0_64, %c0_65, %c0_66, %c0_67], %148 {strides = array<i32>} : memref<1x8x31x31xf32, #tpu.memory_space<vmem>>, vector<1x8x31x31xf32>,
    return
  }
  func.func @transform_0(%arg0: i32) -> (i32, i32, i32, i32) {
    %c0_i32 = arith.constant 0 : i32
    %c0_i32_0 = arith.constant 0 : i32
    %c0_i32_1 = arith.constant 0 : i32
    %c0_i32_2 = arith.constant 0 : i32
    return %arg0, %c0_i32, %c0_i32_0, %c0_i32_1 : i32, i32, i32, i32
  }
  func.func @transform_1(%arg0: i32) -> (i32, i32) {
    %c0_i32 = arith.constant 0 : i32
    %c0_i32_0 = arith.constant 0 : i32
    %c0_i32_1 = arith.constant 0 : i32
    return %c0_i32, %c0_i32_0 : i32, i32
  }
  func.func @transform_2(%arg0: i32) -> (i32, i32) {
    %c0_i32 = arith.constant 0 : i32
    %c0_i32_0 = arith.constant 0 : i32
    %c0_i32_1 = arith.constant 0 : i32
    return %c0_i32, %c0_i32_0 : i32, i32
  }
  func.func @transform_3(%arg0: i32) -> (i32, i32, i32, i32) {
    %c0_i32 = arith.constant 0 : i32
    %c0_i32_0 = arith.constant 0 : i32
    %c0_i32_1 = arith.constant 0 : i32
    %c0_i32_2 = arith.constant 0 : i32
    %c0_i32_3 = arith.constant 0 : i32
    return %c0_i32, %c0_i32_0, %c0_i32_1, %c0_i32_2 : i32, i32, i32, i32
  }
  func.func @transform_4(%arg0: i32) -> (i32, i32, i32) {
    %c0_i32 = arith.constant 0 : i32
    %c0_i32_0 = arith.constant 0 : i32
    %c0_i32_1 = arith.constant 0 : i32
    %c0_i32_2 = arith.constant 0 : i32
    return %c0_i32, %c0_i32_0, %c0_i32_1 : i32, i32, i32
  }
  func.func @transform_5(%arg0: i32) -> (i32, i32, i32, i32) {
    %c0_i32 = arith.constant 0 : i32
    %c0_i32_0 = arith.constant 0 : i32
    %c0_i32_1 = arith.constant 0 : i32
    %c0_i32_2 = arith.constant 0 : i32
    return %arg0, %c0_i32, %c0_i32_0, %c0_i32_1 : i32, i32, i32, i32
  }
}

</mosaic_0001>

<llo_original>
// kernel: upsample_conv_forward.1
$region0: #{upsample_conv_forward.1}
  #allocation0 [shape = 'u32[]', space=smem, size = 0x4, offset = 0x4, fixed_abs, tag = 'smem constant byte address 0x4 - core index']
  #allocation1 [shape = 'u32[144,128]{1,0:T(1,128)}', space=vmem, size = 0x12000, scoped, tag = 'internal scratch']
  %s0 = inlined_call_operand.vmem [shape: f32[2,4,16,16], index: 0, kind: input, shape index: {}]
  %s1 = inlined_call_operand.vmem [shape: f32[32,16], index: 1, kind: input, shape index: {}]
  %s2 = inlined_call_operand.vmem [shape: f32[16,32], index: 2, kind: input, shape index: {}]
  %s3 = inlined_call_operand.vmem [shape: f32[16,8,1,1], index: 3, kind: input, shape index: {}]
  %s4 = inlined_call_operand.vmem [shape: f32[8,1,1], index: 4, kind: input, shape index: {}]
  %s5 = inlined_call_operand.vmem [shape: f32[2,8,31,31], index: 5, kind: output, shape index: {}]
  %s6 = sld [smem:[#allocation0]]
  $region53: #{upsample_conv_forward.1} parent=0
    _
  %s8 = ssub.s32 1, %s6
  %s9 = scalar_select 0, %s8, %s6
  loop: start=0, step=1, limit=4
  $region2: #{upsample_conv_forward.1} parent=0 // loop_pre_header
    _
  $region3: #{upsample_conv_forward.1} parent=0 // loop_header
    %s11 = sphi 0, %s15
    %p12 = scmp.ge.s32.totalorder %s11, 4
    %s21 = sphi 0, %s23
    %s24 = sphi 0, %s21
    %s25 = sphi 0, %s24
    %s41 = sphi 0, %s25
    %s45 = sphi 0, %s45
    %s47 = sphi 0, %s45
    %s48 = sphi 0, %s47
    %s62 = sphi 0, %s48
    %s66 = sphi 0, %s66
    %s68 = sphi 0, %s66
    %s69 = sphi 0, %s68
    %s83 = sphi 0, %s69
    %s87 = sphi 0, %s87
    %s89 = sphi 0, %s87
    %s90 = sphi 0, %s89
    %s104 = sphi 0, %s90
    %s108 = sphi 0, %s108
    %s110 = sphi 0, %s108
    %s111 = sphi 0, %s110
    %s125 = sphi 0, %s111
    %s131 = sphi 0, %s133
    %s134 = sphi 0, %s131
    %s135 = sphi 0, %s134
    %s151 = sphi 0, %s135
  $region4: #{upsample_conv_forward.1} parent=0 // loop_header_branch
    %14 = sbr.rel (%p12) target = $region8
  $region5: #{upsample_conv_forward.1} parent=0 // loop_body
    %s16 = ssub.s32 %s11, 1
    %s17 = ssub.s32 %s11, 2
    %s18 = sadd.s32 %s11, 1
    %s19 = ssub.s32 %s11, %s18
    %p20 = scmp.eq.s32.totalorder %s19, 0
    %s22 = sadd.s32 %s21, 1
    %s23 = scalar_select %p20, %s21, %s22
    %p26 = pneg %p20
    %p27 = scmp.eq.s32.totalorder %s11, 1
    %p28 = por %p26, %p27
    %p29 = scmp.ne.s32.totalorder %s21, %s24
    %p30 = scmp.eq.s32.totalorder %s11, 0
    %p31 = por %p29, %p30
    %p32 = scmp.ne.s32.totalorder %s21, %s24
    %p33 = scmp.eq.s32.totalorder %s16, 1
    %p34 = por %p32, %p33
    %p35 = scmp.ne.s32.totalorder %s24, %s25
    %p36 = scmp.eq.s32.totalorder %s16, 0
    %p37 = por %p35, %p36
    %p38 = scmp.ne.s32.totalorder %s24, %s25
    %p39 = scmp.eq.s32.totalorder %s17, 1
    %p40 = por %p38, %p39
    %p42 = scmp.ne.s32.totalorder %s25, %s41
    %p43 = scmp.eq.s32.totalorder %s17, 0
    %p44 = por %p42, %p43
    %s46 = sadd.s32 %s45, 1
    %p49 = scmp.eq.s32.totalorder %s11, 1
    %p50 = scmp.ne.s32.totalorder %s45, %s47
    %p51 = scmp.eq.s32.totalorder %s11, 0
    %p52 = por %p50, %p51
    %p53 = scmp.ne.s32.totalorder %s45, %s47
    %p54 = scmp.eq.s32.totalorder %s16, 1
    %p55 = por %p53, %p54
    %p56 = scmp.ne.s32.totalorder %s47, %s48
    %p57 = scmp.eq.s32.totalorder %s16, 0
    %p58 = por %p56, %p57
    %p59 = scmp.ne.s32.totalorder %s47, %s48
    %p60 = scmp.eq.s32.totalorder %s17, 1
    %p61 = por %p59, %p60
    %p63 = scmp.ne.s32.totalorder %s48, %s62
    %p64 = scmp.eq.s32.totalorder %s17, 0
    %p65 = por %p63, %p64
    %s67 = sadd.s32 %s66, 1
    %p70 = scmp.eq.s32.totalorder %s11, 1
    %p71 = scmp.ne.s32.totalorder %s66, %s68
    %p72 = scmp.eq.s32.totalorder %s11, 0
    %p73 = por %p71, %p72
    %p74 = scmp.ne.s32.totalorder %s66, %s68
    %p75 = scmp.eq.s32.totalorder %s16, 1
    %p76 = por %p74, %p75
    %p77 = scmp.ne.s32.totalorder %s68, %s69
    %p78 = scmp.eq.s32.totalorder %s16, 0
    %p79 = por %p77, %p78
    %p80 = scmp.ne.s32.totalorder %s68, %s69
    %p81 = scmp.eq.s32.totalorder %s17, 1
    %p82 = por %p80, %p81
    %p84 = scmp.ne.s32.totalorder %s69, %s83
    %p85 = scmp.eq.s32.totalorder %s17, 0
    %p86 = por %p84, %p85
    %s88 = sadd.s32 %s87, 1
    %p91 = scmp.eq.s32.totalorder %s11, 1
    %p92 = scmp.ne.s32.totalorder %s87, %s89
    %p93 = scmp.eq.s32.totalorder %s11, 0
    %p94 = por %p92, %p93
    %p95 = scmp.ne.s32.totalorder %s87, %s89
    %p96 = scmp.eq.s32.totalorder %s16, 1
    %p97 = por %p95, %p96
    %p98 = scmp.ne.s32.totalorder %s89, %s90
    %p99 = scmp.eq.s32.totalorder %s16, 0
    %p100 = por %p98, %p99
    %p101 = scmp.ne.s32.totalorder %s89, %s90
    %p102 = scmp.eq.s32.totalorder %s17, 1
    %p103 = por %p101, %p102
    %p105 = scmp.ne.s32.totalorder %s90, %s104
    %p106 = scmp.eq.s32.totalorder %s17, 0
    %p107 = por %p105, %p106
    %s109 = sadd.s32 %s108, 1
    %p112 = scmp.eq.s32.totalorder %s11, 1
    %p113 = scmp.ne.s32.totalorder %s108, %s110
    %p114 = scmp.eq.s32.totalorder %s11, 0
    %p115 = por %p113, %p114
    %p116 = scmp.ne.s32.totalorder %s108, %s110
    %p117 = scmp.eq.s32.totalorder %s16, 1
    %p118 = por %p116, %p117
    %p119 = scmp.ne.s32.totalorder %s110, %s111
    %p120 = scmp.eq.s32.totalorder %s16, 0
    %p121 = por %p119, %p120
    %p122 = scmp.ne.s32.totalorder %s110, %s111
    %p123 = scmp.eq.s32.totalorder %s17, 1
    %p124 = por %p122, %p123
    %p126 = scmp.ne.s32.totalorder %s111, %s125
    %p127 = scmp.eq.s32.totalorder %s17, 0
    %p128 = por %p126, %p127
    %s129 = ssub.s32 %s11, %s18
    %p130 = scmp.eq.s32.totalorder %s129, 0
    %s132 = sadd.s32 %s131, 1
    %s133 = scalar_select %p130, %s131, %s132
    %p136 = pneg %p130
    %p137 = scmp.eq.s32.totalorder %s11, 1
    %p138 = por %p136, %p137
    %p139 = scmp.ne.s32.totalorder %s131, %s134
    %p140 = scmp.eq.s32.totalorder %s11, 0
    %p141 = por %p139, %p140
    %p142 = scmp.ne.s32.totalorder %s131, %s134
    %p143 = scmp.eq.s32.totalorder %s16, 1
    %p144 = por %p142, %p143
    %p145 = scmp.ne.s32.totalorder %s134, %s135
    %p146 = scmp.eq.s32.totalorder %s16, 0
    %p147 = por %p145, %p146
    %p148 = scmp.ne.s32.totalorder %s134, %s135
    %p149 = scmp.eq.s32.totalorder %s17, 1
    %p150 = por %p148, %p149
    %p152 = scmp.ne.s32.totalorder %s135, %s151
    %p153 = scmp.eq.s32.totalorder %s17, 0
    %p154 = por %p152, %p153
    %p155 = scmp.le.s32.totalorder 1, %s11
    %p156 = scmp.lt.s32.totalorder %s11, 3
    %p157 = pnand %p155, %p156
    %p158 = pneg %p157
    // Predicated region
    $region9: #{upsample_conv_forward.1} parent=5 // pred_check
      _
    $region10: #{upsample_conv_forward.1} parent=5 // pred_check_branch
      %160 = sbr.rel (%p157) target = $region12
    $region11: #{upsample_conv_forward.1} parent=5 // pred_region
      %s161 = ssub.s32 %s11, 1
      // Predicated region
      $region13: #{upsample_conv_forward.1} parent=11 // pred_check
        %p162 = pneg %p58
      $region14: #{upsample_conv_forward.1} parent=11 // pred_check_branch
        %164 = sbr.rel (%p162) target = $region16
      $region15: #{upsample_conv_forward.1} parent=11 // pred_region
        _
      $region16: #{upsample_conv_forward.1} parent=11 // pred_fallthru
        _
      // Predicated region
      $region17: #{upsample_conv_forward.1} parent=11 // pred_check
        %p165 = pneg %p79
      $region18: #{upsample_conv_forward.1} parent=11 // pred_check_branch
        %167 = sbr.rel (%p165) target = $region20
      $region19: #{upsample_conv_forward.1} parent=11 // pred_region
        _
      $region20: #{upsample_conv_forward.1} parent=11 // pred_fallthru
        _
      // Predicated region
      $region21: #{upsample_conv_forward.1} parent=11 // pred_check
        %p168 = pneg %p100
      $region22: #{upsample_conv_forward.1} parent=11 // pred_check_branch
        %170 = sbr.rel (%p168) target = $region24
      $region23: #{upsample_conv_forward.1} parent=11 // pred_region
        _
      $region24: #{upsample_conv_forward.1} parent=11 // pred_fallthru
        _
      // Predicated region
      $region25: #{upsample_conv_forward.1} parent=11 // pred_check
        %p171 = pneg %p121
      $region26: #{upsample_conv_forward.1} parent=11 // pred_check_branch
        %173 = sbr.rel (%p171) target = $region28
      $region27: #{upsample_conv_forward.1} parent=11 // pred_region
        _
      $region28: #{upsample_conv_forward.1} parent=11 // pred_fallthru
        _
    $region12: #{upsample_conv_forward.1} parent=5 // pred_fallthru
      _
    %p174 = scmp.lt.s32.totalorder %s11, 2
    // Predicated region
    $region29: #{upsample_conv_forward.1} parent=5 // pred_check
      %p175 = pneg %p174
    $region30: #{upsample_conv_forward.1} parent=5 // pred_check_branch
      %177 = sbr.rel (%p175) target = $region32
    $region31: #{upsample_conv_forward.1} parent=5 // pred_region
      // Predicated region
      $region33: #{upsample_conv_forward.1} parent=31 // pred_check
        %p178 = pneg %p31
      $region34: #{upsample_conv_forward.1} parent=31 // pred_check_branch
        %180 = sbr.rel (%p178) target = $region36
      $region35: #{upsample_conv_forward.1} parent=31 // pred_region
        %p181 = scmp.lt.s32.totalorder %s11, 1
        %s182 = scalar_select %p181, %s11, 1
        %s183 = smul.addr %s182, 8
        %s184 = smul.addr %s183, 8
        %s185 = scalar_lea.vmem %s0, %s184
      $region36: #{upsample_conv_forward.1} parent=31 // pred_fallthru
        _
    $region32: #{upsample_conv_forward.1} parent=5 // pred_fallthru
      _
    %p186 = scmp.le.s32.totalorder 1, %s11
    %p187 = scmp.lt.s32.totalorder %s11, 3
    %p188 = pnand %p186, %p187
    %p189 = pneg %p188
    // Predicated region
    $region37: #{upsample_conv_forward.1} parent=5 // pred_check
      _
    $region38: #{upsample_conv_forward.1} parent=5 // pred_check_branch
      %191 = sbr.rel (%p188) target = $region40
    $region39: #{upsample_conv_forward.1} parent=5 // pred_region
      %s192 = ssub.s32 %s11, 1
      %p193 = scmp.lt.s32.totalorder %s16, 1
      %s194 = scalar_select %p193, %s16, 1
      %s195 = smul.addr %s194, 8
      %s196 = smul.addr %s195, 8
      %s197 = scalar_lea.vmem %s0, %s196
      %p198 = pneg %p37
      %p199 = pneg %p34
      %p200 = pneg %p58
      %p201 = pneg %p55
      %p202 = pneg %p79
      %p203 = pneg %p76
      %p204 = pneg %p100
      %p205 = pneg %p97
      %p206 = pneg %p121
      %p207 = pneg %p118
      %p208 = pneg %p147
      %p209 = pneg %p144
      %p210 = scmp.lt.s32.totalorder %s16, 1
      %s211 = scalar_select %p210, %s16, 1
      %s212 = smul.addr %s211, 32
      %s213 = smul.addr %s212, 8
      %s214 = scalar_lea.vmem %s5, %s213
      %p215 = scmp.lt.s32.totalorder %s16, 1
      %s216 = scalar_select %p215, %s16, 1
      %s217 = smul.addr %s216, 8
      %s218 = smul.addr %s217, 8
      %s219 = scalar_lea.vmem %s0, %s218
      %p220 = scmp.lt.s32.totalorder %s16, 1
      %s221 = scalar_select %p220, %s16, 1
      %s222 = smul.addr %s221, 32
      %s223 = smul.addr %s222, 8
      %s224 = scalar_lea.vmem %s5, %s223
      %v225 = vld [vmem:[%s2] sm:$0xff]
      %v226 = vld [vmem:[%s2 + $0x8] sm:$0xff]
      %v227 = vld [vmem:[%s1] sm:$0xff]
      %v228 = vld [vmem:[%s1 + $0x8] sm:$0xff]
      %v229 = vld [vmem:[%s1 + $0x10] sm:$0xff]
      %v230 = vld [vmem:[%s1 + $0x18] sm:$0xff]
      %v231 = vld [vmem:[%s219] sm:$0xff]
      %v232 = vld [vmem:[%s219 + $0x8] sm:$0xff]
      %v233 = vld [vmem:[%s219 + $0x10] sm:$0xff]
      %v234 = vld [vmem:[%s219 + $0x18] sm:$0xff]
      %v235 = vld [vmem:[%s219 + $0x20] sm:$0xff]
      %v236 = vld [vmem:[%s219 + $0x28] sm:$0xff]
      %v237 = vld [vmem:[%s219 + $0x30] sm:$0xff]
      %v238 = vld [vmem:[%s219 + $0x38] sm:$0xff]
      %vm239 = vcmask 130048
      %v241 = vsel %vm239, %v231, 0
      %v244 = vsel %vm239, %v232, 0
      %v247 = vsel %vm239, %v233, 0
      %v250 = vsel %vm239, %v234, 0
      %v253 = vsel %vm239, %v235, 0
      %v256 = vsel %vm239, %v236, 0
      %v259 = vsel %vm239, %v237, 0
      %v262 = vsel %vm239, %v238, 0
      %264 = vmatprep.subr.mxu0 0.0
      %265 = vmatpush1.msra.mxu0 %v225
      %266 = vmatprep.subr.mxu0 0.0
      %267 = vmatpush1.msra.mxu0 %v226
      %268 = vmatprep.subr.mxu0 0.0
      %269 = vmatpush1.msra.mxu0 0.0
      %270 = vmatprep.subr.mxu0 0.0
      %271 = vmatpush1.msra.mxu0 0.0
      %272 = vmatprep.subr.mxu0 0.0
      %273 = vmatpush1.msra.mxu0 0.0
      %274 = vmatprep.subr.mxu0 0.0
      %275 = vmatpush1.msra.mxu0 0.0
      %276 = vmatprep.subr.mxu0 0.0
      %277 = vmatpush1.msra.mxu0 0.0
      %278 = vmatprep.subr.mxu0 0.0
      %279 = vmatpush1.msra.mxu0 0.0
      %280 = vmatprep.subr.mxu0 0.0
      %281 = vmatpush1.msra.mxu0 0.0
      %282 = vmatprep.subr.mxu0 0.0
      %283 = vmatpush1.msra.mxu0 0.0
      %284 = vmatprep.subr.mxu0 0.0
      %285 = vmatpush1.msra.mxu0 0.0
      %286 = vmatprep.subr.mxu0 0.0
      %287 = vmatpush1.msra.mxu0 0.0
      %288 = vmatprep.subr.mxu0 0.0
      %289 = vmatpush1.msra.mxu0 0.0
      %290 = vmatprep.subr.mxu0 0.0
      %291 = vmatpush1.msra.mxu0 0.0
      %292 = vmatprep.subr.mxu0 0.0
      %293 = vmatpush1.msra.mxu0 0.0
      %294 = vmatprep.subr.mxu0 0.0
      %295 = vmatpush1.msra.mxu0 0.0
      %296 = vmatprep.subr.mxu0 0.0
      %297 = vmatpush1.msra.mxu0 0.0
      %298 = vmatprep.subr.mxu0 0.0
      %299 = vmatpush1.msra.mxu0 0.0
      %300 = vmatprep.subr.mxu0 0.0
      %301 = vmatpush1.msra.mxu0 0.0
      %302 = vmatprep.subr.mxu0 0.0
      %303 = vmatpush1.msra.mxu0 0.0
      %304 = vmatprep.subr.mxu0 0.0
      %305 = vmatpush1.msra.mxu0 0.0
      %306 = vmatprep.subr.mxu0 0.0
      %307 = vmatpush1.msra.mxu0 0.0
      %308 = vmatprep.subr.mxu0 0.0
      %309 = vmatpush1.msra.mxu0 0.0
      %310 = vmatprep.subr.mxu0 0.0
      %311 = vmatpush1.msra.mxu0 0.0
      %312 = vmatprep.subr.mxu0 0.0
      %313 = vmatpush1.msra.mxu0 0.0
      %314 = vmatprep.subr.mxu0 0.0
      %315 = vmatpush1.msra.mxu0 0.0
      %316 = vmatprep.subr.mxu0 0.0
      %317 = vmatpush1.msra.mxu0 0.0
      %318 = vmatprep.subr.mxu0 0.0
      %319 = vmatpush1.msra.mxu0 0.0
      %320 = vmatprep.subr.mxu0 0.0
      %321 = vmatpush1.msra.mxu0 0.0
      %322 = vmatprep.subr.mxu0 0.0
      %323 = vmatpush1.msra.mxu0 0.0
      %324 = vmatprep.subr.mxu0 0.0
      %325 = vmatpush1.msra.mxu0 0.0
      %326 = vmatprep.subr.mxu0 0.0
      %327 = vmatpush1.msra.mxu0 0.0
      %328 = vmatprep.mubr.f32.mxu0 0.0
      %329 = vmatmul.mubr.f32.gmra.mrb[0].mxu0 %v241
      %v330 = vpop.f32.mrb[0].mxu0
      %v331 = vadd.f32 0.0, %v330
      %v332 = vpop.f32.mrb[0].mxu0
      %333 = vmatprep.mubr.f32.mxu0 0.0
      %334 = vmatmul.mubr.f32.gmra.mrb[0].mxu0 %v244
      %v335 = vpop.f32.mrb[0].mxu0
      %v336 = vadd.f32 0.0, %v335
      %v337 = vpop.f32.mrb[0].mxu0
      %338 = vmatprep.mubr.f32.mxu0 0.0
      %339 = vmatmul.mubr.f32.gmra.mrb[0].mxu0 %v247
      %v340 = vpop.f32.mrb[0].mxu0
      %v341 = vadd.f32 0.0, %v340
      %v342 = vpop.f32.mrb[0].mxu0
      %343 = vmatprep.mubr.f32.mxu0 0.0
      %344 = vmatmul.mubr.f32.gmra.mrb[0].mxu0 %v250
      %v345 = vpop.f32.mrb[0].mxu0
      %v346 = vadd.f32 0.0, %v345
      %v347 = vpop.f32.mrb[0].mxu0
      %348 = vmatprep.mubr.f32.mxu0 0.0
      %349 = vmatmul.mubr.f32.gmra.mrb[0].mxu0 %v253
      %v350 = vpop.f32.mrb[0].mxu0
      %v351 = vadd.f32 0.0, %v350
      %v352 = vpop.f32.mrb[0].mxu0
      %353 = vmatprep.mubr.f32.mxu0 0.0
      %354 = vmatmul.mubr.f32.gmra.mrb[0].mxu0 %v256
      %v355 = vpop.f32.mrb[0].mxu0
      %v356 = vadd.f32 0.0, %v355
      %v357 = vpop.f32.mrb[0].mxu0
      %358 = vmatprep.mubr.f32.mxu0 0.0
      %359 = vmatmul.mubr.f32.gmra.mrb[0].mxu0 %v259
      %v360 = vpop.f32.mrb[0].mxu0
      %v361 = vadd.f32 0.0, %v360
      %v362 = vpop.f32.mrb[0].mxu0
      %363 = vmatprep.mubr.f32.mxu0 0.0
      %364 = vmatmul.mubr.f32.gmra.mrb[0].mxu0 %v262
      %v365 = vpop.f32.mrb[0].mxu0
      %v366 = vadd.f32 0.0, %v365
      %v367 = vpop.f32.mrb[0].mxu0
      %368 = vdwg.mxu0
      %v370 = vsel %vm239, %v227, 0
      %v373 = vsel %vm239, %v228, 0
      %v376 = vsel %vm239, %v229, 0
      %v379 = vsel %vm239, %v230, 0
      %381 = vmatprep.subr.mxu0 0.0
      %382 = vmatpush1.msra.mxu0 %v331
      %383 = vmatprep.subr.mxu0 0.0
      %384 = vmatpush1.msra.mxu0 %v336
      %385 = vmatprep.subr.mxu0 0.0
      %386 = vmatpush1.msra.mxu0 0.0
      %387 = vmatprep.subr.mxu0 0.0
      %388 = vmatpush1.msra.mxu0 0.0
      %389 = vmatprep.subr.mxu0 0.0
      %390 = vmatpush1.msra.mxu0 0.0
      %391 = vmatprep.subr.mxu0 0.0
      %392 = vmatpush1.msra.mxu0 0.0
      %393 = vmatprep.subr.mxu0 0.0
      %394 = vmatpush1.msra.mxu0 0.0
      %395 = vmatprep.subr.mxu0 0.0
      %396 = vmatpush1.msra.mxu0 0.0
      %397 = vmatprep.subr.mxu0 0.0
      %398 = vmatpush1.msra.mxu0 0.0
      %399 = vmatprep.subr.mxu0 0.0
      %400 = vmatpush1.msra.mxu0 0.0
      %401 = vmatprep.subr.mxu0 0.0
      %402 = vmatpush1.msra.mxu0 0.0
      %403 = vmatprep.subr.mxu0 0.0
      %404 = vmatpush1.msra.mxu0 0.0
      %405 = vmatprep.subr.mxu0 0.0
      %406 = vmatpush1.msra.mxu0 0.0
      %407 = vmatprep.subr.mxu0 0.0
      %408 = vmatpush1.msra.mxu0 0.0
      %409 = vmatprep.subr.mxu0 0.0
      %410 = vmatpush1.msra.mxu0 0.0
      %411 = vmatprep.subr.mxu0 0.0
      %412 = vmatpush1.msra.mxu0 0.0
      %413 = vmatprep.subr.mxu0 0.0
      %414 = vmatpush1.msra.mxu0 0.0
      %415 = vmatprep.subr.mxu0 0.0
      %416 = vmatpush1.msra.mxu0 0.0
      %417 = vmatprep.subr.mxu0 0.0
      %418 = vmatpush1.msra.mxu0 0.0
      %419 = vmatprep.subr.mxu0 0.0
      %420 = vmatpush1.msra.mxu0 0.0
      %421 = vmatprep.subr.mxu0 0.0
      %422 = vmatpush1.msra.mxu0 0.0
      %423 = vmatprep.subr.mxu0 0.0
      %424 = vmatpush1.msra.mxu0 0.0
      %425 = vmatprep.subr.mxu0 0.0
      %426 = vmatpush1.msra.mxu0 0.0
      %427 = vmatprep.subr.mxu0 0.0
      %428 = vmatpush1.msra.mxu0 0.0
      %429 = vmatprep.subr.mxu0 0.0
      %430 = vmatpush1.msra.mxu0 0.0
      %431 = vmatprep.subr.mxu0 0.0
      %432 = vmatpush1.msra.mxu0 0.0
      %433 = vmatprep.subr.mxu0 0.0
      %434 = vmatpush1.msra.mxu0 0.0
      %435 = vmatprep.subr.mxu0 0.0
      %436 = vmatpush1.msra.mxu0 0.0
      %437 = vmatprep.subr.mxu0 0.0
      %438 = vmatpush1.msra.mxu0 0.0
      %439 = vmatprep.subr.mxu0 0.0
      %440 = vmatpush1.msra.mxu0 0.0
      %441 = vmatprep.subr.mxu0 0.0
      %442 = vmatpush1.msra.mxu0 0.0
      %443 = vmatprep.subr.mxu0 0.0
      %444 = vmatpush1.msra.mxu0 0.0
      %445 = vmatprep.mubr.f32.mxu0 0.0
      %446 = vmatmul.mubr.f32.gmra.mrb[0].mxu0 %v370
      %v447 = vpop.f32.mrb[0].mxu0
      %v448 = vadd.f32 0.0, %v447
      %v449 = vpop.f32.mrb[0].mxu0
      %450 = vmatprep.mubr.f32.mxu0 0.0
      %451 = vmatmul.mubr.f32.gmra.mrb[0].mxu0 %v373
      %v452 = vpop.f32.mrb[0].mxu0
      %v453 = vadd.f32 0.0, %v452
      %v454 = vpop.f32.mrb[0].mxu0
      %455 = vmatprep.mubr.f32.mxu0 0.0
      %456 = vmatmul.mubr.f32.gmra.mrb[0].mxu0 %v376
      %v457 = vpop.f32.mrb[0].mxu0
      %v458 = vadd.f32 0.0, %v457
      %v459 = vpop.f32.mrb[0].mxu0
      %460 = vmatprep.mubr.f32.mxu0 0.0
      %461 = vmatmul.mubr.f32.gmra.mrb[0].mxu0 %v379
      %v462 = vpop.f32.mrb[0].mxu0
      %v463 = vadd.f32 0.0, %v462
      %v464 = vpop.f32.mrb[0].mxu0
      %465 = vdwg.mxu0
      %v466 = vld [vmem:[%s3] sm:$0x1]
      %v467 = vld [vmem:[%s3 + $0x1] sm:$0x1]
      %v468 = vld [vmem:[%s3 + $0x2] sm:$0x1]
      %v469 = vld [vmem:[%s3 + $0x3] sm:$0x1]
      %v470 = vld [vmem:[%s3 + $0x4] sm:$0x1]
      %v471 = vld [vmem:[%s3 + $0x5] sm:$0x1]
      %v472 = vld [vmem:[%s3 + $0x6] sm:$0x1]
      %v473 = vld [vmem:[%s3 + $0x7] sm:$0x1]
      %v482 = vlaneseq
      %v483 = vshrl.u32 %v482, 7
      %v484 = vsub.s32 0, %v483
      %v485 = vrot.slane %v466, %v484
      %v486 = vlaneseq
      %v487 = vshrl.u32 %v486, 7
      %v488 = vsub.s32 0, %v487
      %v489 = vrot.slane %v467, %v488
      %v490 = vlaneseq
      %v491 = vshrl.u32 %v490, 7
      %v492 = vsub.s32 0, %v491
      %v493 = vrot.slane %v468, %v492
      %v494 = vlaneseq
      %v495 = vshrl.u32 %v494, 7
      %v496 = vsub.s32 0, %v495
      %v497 = vrot.slane %v469, %v496
      %v498 = vlaneseq
      %v499 = vshrl.u32 %v498, 7
      %v500 = vsub.s32 0, %v499
      %v501 = vrot.slane %v470, %v500
      %v502 = vlaneseq
      %v503 = vshrl.u32 %v502, 7
      %v504 = vsub.s32 0, %v503
      %v505 = vrot.slane %v471, %v504
      %v506 = vlaneseq
      %v507 = vshrl.u32 %v506, 7
      %v508 = vsub.s32 0, %v507
      %v509 = vrot.slane %v472, %v508
      %v510 = vlaneseq
      %v511 = vshrl.u32 %v510, 7
      %v512 = vsub.s32 0, %v511
      %v513 = vrot.slane %v473, %v512
      %514 = vset.pattern.permute.xlu0 0
      %515 = vperm.xlu0 %514, %v485
      %v516 = vpop.permute.xlu0 %515
      %518 = vset.pattern.permute.xlu0 0
      %519 = vperm.xlu0 %518, %v489
      %v520 = vpop.permute.xlu0 %519
      %522 = vset.pattern.permute.xlu0 0
      %523 = vperm.xlu0 %522, %v493
      %v524 = vpop.permute.xlu0 %523
      %526 = vset.pattern.permute.xlu0 0
      %527 = vperm.xlu0 %526, %v497
      %v528 = vpop.permute.xlu0 %527
      %530 = vset.pattern.permute.xlu0 0
      %531 = vperm.xlu0 %530, %v501
      %v532 = vpop.permute.xlu0 %531
      %534 = vset.pattern.permute.xlu0 0
      %535 = vperm.xlu0 %534, %v505
      %v536 = vpop.permute.xlu0 %535
      %538 = vset.pattern.permute.xlu0 0
      %539 = vperm.xlu0 %538, %v509
      %v540 = vpop.permute.xlu0 %539
      %542 = vset.pattern.permute.xlu0 0
      %543 = vperm.xlu0 %542, %v513
      %v544 = vpop.permute.xlu0 %543
      %v546 = vmul.f32 %v516, %v448
      %v547 = vmul.f32 %v516, %v453
      %v548 = vmul.f32 %v516, %v458
      %v549 = vmul.f32 %v516, %v463
      %v550 = vmul.f32 %v520, %v448
      %v551 = vmul.f32 %v520, %v453
      %v552 = vmul.f32 %v520, %v458
      %v553 = vmul.f32 %v520, %v463
      %v554 = vmul.f32 %v524, %v448
      %v555 = vmul.f32 %v524, %v453
      %v556 = vmul.f32 %v524, %v458
      %v557 = vmul.f32 %v524, %v463
      %v558 = vmul.f32 %v528, %v448
      %v559 = vmul.f32 %v528, %v453
      %v560 = vmul.f32 %v528, %v458
      %v561 = vmul.f32 %v528, %v463
      %v562 = vmul.f32 %v532, %v448
      %v563 = vmul.f32 %v532, %v453
      %v564 = vmul.f32 %v532, %v458
      %v565 = vmul.f32 %v532, %v463
      %v566 = vmul.f32 %v536, %v448
      %v567 = vmul.f32 %v536, %v453
      %v568 = vmul.f32 %v536, %v458
      %v569 = vmul.f32 %v536, %v463
      %v570 = vmul.f32 %v540, %v448
      %v571 = vmul.f32 %v540, %v453
      %v572 = vmul.f32 %v540, %v458
      %v573 = vmul.f32 %v540, %v463
      %v574 = vmul.f32 %v544, %v448
      %v575 = vmul.f32 %v544, %v453
      %v576 = vmul.f32 %v544, %v458
      %v577 = vmul.f32 %v544, %v463
      %v578 = vadd.f32 %v546, 0.0
      %v579 = vadd.f32 %v547, 0.0
      %v580 = vadd.f32 %v548, 0.0
      %v581 = vadd.f32 %v549, 0.0
      %v582 = vadd.f32 %v550, 0.0
      %v583 = vadd.f32 %v551, 0.0
      %v584 = vadd.f32 %v552, 0.0
      %v585 = vadd.f32 %v553, 0.0
      %v586 = vadd.f32 %v554, 0.0
      %v587 = vadd.f32 %v555, 0.0
      %v588 = vadd.f32 %v556, 0.0
      %v589 = vadd.f32 %v557, 0.0
      %v590 = vadd.f32 %v558, 0.0
      %v591 = vadd.f32 %v559, 0.0
      %v592 = vadd.f32 %v560, 0.0
      %v593 = vadd.f32 %v561, 0.0
      %v594 = vadd.f32 %v562, 0.0
      %v595 = vadd.f32 %v563, 0.0
      %v596 = vadd.f32 %v564, 0.0
      %v597 = vadd.f32 %v565, 0.0
      %v598 = vadd.f32 %v566, 0.0
      %v599 = vadd.f32 %v567, 0.0
      %v600 = vadd.f32 %v568, 0.0
      %v601 = vadd.f32 %v569, 0.0
      %v602 = vadd.f32 %v570, 0.0
      %v603 = vadd.f32 %v571, 0.0
      %v604 = vadd.f32 %v572, 0.0
      %v605 = vadd.f32 %v573, 0.0
      %v606 = vadd.f32 %v574, 0.0
      %v607 = vadd.f32 %v575, 0.0
      %v608 = vadd.f32 %v576, 0.0
      %v609 = vadd.f32 %v577, 0.0
      %s610 = scalar_lea.vmem %s3, 32
      %v611 = vld [vmem:[%s610] sm:$0x1]
      %v612 = vld [vmem:[%s610 + $0x1] sm:$0x1]
      %v613 = vld [vmem:[%s610 + $0x2] sm:$0x1]
      %v614 = vld [vmem:[%s610 + $0x3] sm:$0x1]
      %v615 = vld [vmem:[%s610 + $0x4] sm:$0x1]
      %v616 = vld [vmem:[%s610 + $0x5] sm:$0x1]
      %v617 = vld [vmem:[%s610 + $0x6] sm:$0x1]
      %v618 = vld [vmem:[%s610 + $0x7] sm:$0x1]
      %v627 = vlaneseq
      %v628 = vshrl.u32 %v627, 7
      %v629 = vsub.s32 0, %v628
      %v630 = vrot.slane %v611, %v629
      %v631 = vlaneseq
      %v632 = vshrl.u32 %v631, 7
      %v633 = vsub.s32 0, %v632
      %v634 = vrot.slane %v612, %v633
      %v635 = vlaneseq
      %v636 = vshrl.u32 %v635, 7
      %v637 = vsub.s32 0, %v636
      %v638 = vrot.slane %v613, %v637
      %v639 = vlaneseq
      %v640 = vshrl.u32 %v639, 7
      %v641 = vsub.s32 0, %v640
      %v642 = vrot.slane %v614, %v641
      %v643 = vlaneseq
      %v644 = vshrl.u32 %v643, 7
      %v645 = vsub.s32 0, %v644
      %v646 = vrot.slane %v615, %v645
      %v647 = vlaneseq
      %v648 = vshrl.u32 %v647, 7
      %v649 = vsub.s32 0, %v648
      %v650 = vrot.slane %v616, %v649
      %v651 = vlaneseq
      %v652 = vshrl.u32 %v651, 7
      %v653 = vsub.s32 0, %v652
      %v654 = vrot.slane %v617, %v653
      %v655 = vlaneseq
      %v656 = vshrl.u32 %v655, 7
      %v657 = vsub.s32 0, %v656
      %v658 = vrot.slane %v618, %v657
      %659 = vset.pattern.permute.xlu0 0
      %660 = vperm.xlu0 %659, %v630
      %v661 = vpop.permute.xlu0 %660
      %663 = vset.pattern.permute.xlu0 0
      %664 = vperm.xlu0 %663, %v634
      %v665 = vpop.permute.xlu0 %664
      %667 = vset.pattern.permute.xlu0 0
      %668 = vperm.xlu0 %667, %v638
      %v669 = vpop.permute.xlu0 %668
      %671 = vset.pattern.permute.xlu0 0
      %672 = vperm.xlu0 %671, %v642
      %v673 = vpop.permute.xlu0 %672
      %675 = vset.pattern.permute.xlu0 0
      %676 = vperm.xlu0 %675, %v646
      %v677 = vpop.permute.xlu0 %676
      %679 = vset.pattern.permute.xlu0 0
      %680 = vperm.xlu0 %679, %v650
      %v681 = vpop.permute.xlu0 %680
      %683 = vset.pattern.permute.xlu0 0
      %684 = vperm.xlu0 %683, %v654
      %v685 = vpop.permute.xlu0 %684
      %687 = vset.pattern.permute.xlu0 0
      %688 = vperm.xlu0 %687, %v658
      %v689 = vpop.permute.xlu0 %688
      %v691 = vmul.f32 %v661, %v448
      %v692 = vmul.f32 %v661, %v453
      %v693 = vmul.f32 %v661, %v458
      %v694 = vmul.f32 %v661, %v463
      %v695 = vmul.f32 %v665, %v448
      %v696 = vmul.f32 %v665, %v453
      %v697 = vmul.f32 %v665, %v458
      %v698 = vmul.f32 %v665, %v463
      %v699 = vmul.f32 %v669, %v448
      %v700 = vmul.f32 %v669, %v453
      %v701 = vmul.f32 %v669, %v458
      %v702 = vmul.f32 %v669, %v463
      %v703 = vmul.f32 %v673, %v448
      %v704 = vmul.f32 %v673, %v453
      %v705 = vmul.f32 %v673, %v458
      %v706 = vmul.f32 %v673, %v463
      %v707 = vmul.f32 %v677, %v448
      %v708 = vmul.f32 %v677, %v453
      %v709 = vmul.f32 %v677, %v458
      %v710 = vmul.f32 %v677, %v463
      %v711 = vmul.f32 %v681, %v448
      %v712 = vmul.f32 %v681, %v453
      %v713 = vmul.f32 %v681, %v458
      %v714 = vmul.f32 %v681, %v463
      %v715 = vmul.f32 %v685, %v448
      %v716 = vmul.f32 %v685, %v453
      %v717 = vmul.f32 %v685, %v458
      %v718 = vmul.f32 %v685, %v463
      %v719 = vmul.f32 %v689, %v448
      %v720 = vmul.f32 %v689, %v453
      %v721 = vmul.f32 %v689, %v458
      %v722 = vmul.f32 %v689, %v463
      %755 = vrot.lane.b32.xlu0 %v691, 127
      %v756 = vpop.permute.xlu0 %755
      %757 = vrot.lane.b32.xlu0 %v692, 127
      %v758 = vpop.permute.xlu0 %757
      %759 = vrot.lane.b32.xlu0 %v693, 127
      %v760 = vpop.permute.xlu0 %759
      %761 = vrot.lane.b32.xlu0 %v694, 127
      %v762 = vpop.permute.xlu0 %761
      %763 = vrot.lane.b32.xlu0 %v695, 127
      %v764 = vpop.permute.xlu0 %763
      %765 = vrot.lane.b32.xlu0 %v696, 127
      %v766 = vpop.permute.xlu0 %765
      %767 = vrot.lane.b32.xlu0 %v697, 127
      %v768 = vpop.permute.xlu0 %767
      %769 = vrot.lane.b32.xlu0 %v698, 127
      %v770 = vpop.permute.xlu0 %769
      %771 = vrot.lane.b32.xlu0 %v699, 127
      %v772 = vpop.permute.xlu0 %771
      %773 = vrot.lane.b32.xlu0 %v700, 127
      %v774 = vpop.permute.xlu0 %773
      %775 = vrot.lane.b32.xlu0 %v701, 127
      %v776 = vpop.permute.xlu0 %775
      %777 = vrot.lane.b32.xlu0 %v702, 127
      %v778 = vpop.permute.xlu0 %777
      %779 = vrot.lane.b32.xlu0 %v703, 127
      %v780 = vpop.permute.xlu0 %779
      %781 = vrot.lane.b32.xlu0 %v704, 127
      %v782 = vpop.permute.xlu0 %781
      %783 = vrot.lane.b32.xlu0 %v705, 127
      %v784 = vpop.permute.xlu0 %783
      %785 = vrot.lane.b32.xlu0 %v706, 127
      %v786 = vpop.permute.xlu0 %785
      %787 = vrot.lane.b32.xlu0 %v707, 127
      %v788 = vpop.permute.xlu0 %787
      %789 = vrot.lane.b32.xlu0 %v708, 127
      %v790 = vpop.permute.xlu0 %789
      %791 = vrot.lane.b32.xlu0 %v709, 127
      %v792 = vpop.permute.xlu0 %791
      %793 = vrot.lane.b32.xlu0 %v710, 127
      %v794 = vpop.permute.xlu0 %793
      %795 = vrot.lane.b32.xlu0 %v711, 127
      %v796 = vpop.permute.xlu0 %795
      %797 = vrot.lane.b32.xlu0 %v712, 127
      %v798 = vpop.permute.xlu0 %797
      %799 = vrot.lane.b32.xlu0 %v713, 127
      %v800 = vpop.permute.xlu0 %799
      %801 = vrot.lane.b32.xlu0 %v714, 127
      %v802 = vpop.permute.xlu0 %801
      %803 = vrot.lane.b32.xlu0 %v715, 127
      %v804 = vpop.permute.xlu0 %803
      %805 = vrot.lane.b32.xlu0 %v716, 127
      %v806 = vpop.permute.xlu0 %805
      %807 = vrot.lane.b32.xlu0 %v717, 127
      %v808 = vpop.permute.xlu0 %807
      %809 = vrot.lane.b32.xlu0 %v718, 127
      %v810 = vpop.permute.xlu0 %809
      %811 = vrot.lane.b32.xlu0 %v719, 127
      %v812 = vpop.permute.xlu0 %811
      %813 = vrot.lane.b32.xlu0 %v720, 127
      %v814 = vpop.permute.xlu0 %813
      %815 = vrot.lane.b32.xlu0 %v721, 127
      %v816 = vpop.permute.xlu0 %815
      %817 = vrot.lane.b32.xlu0 %v722, 127
      %v818 = vpop.permute.xlu0 %817
      %v851 = vadd.f32 %v578, %v756
      %v852 = vadd.f32 %v579, %v758
      %v853 = vadd.f32 %v580, %v760
      %v854 = vadd.f32 %v581, %v762
      %v855 = vadd.f32 %v582, %v764
      %v856 = vadd.f32 %v583, %v766
      %v857 = vadd.f32 %v584, %v768
      %v858 = vadd.f32 %v585, %v770
      %v859 = vadd.f32 %v586, %v772
      %v860 = vadd.f32 %v587, %v774
      %v861 = vadd.f32 %v588, %v776
      %v862 = vadd.f32 %v589, %v778
      %v863 = vadd.f32 %v590, %v780
      %v864 = vadd.f32 %v591, %v782
      %v865 = vadd.f32 %v592, %v784
      %v866 = vadd.f32 %v593, %v786
      %v867 = vadd.f32 %v594, %v788
      %v868 = vadd.f32 %v595, %v790
      %v869 = vadd.f32 %v596, %v792
      %v870 = vadd.f32 %v597, %v794
      %v871 = vadd.f32 %v598, %v796
      %v872 = vadd.f32 %v599, %v798
      %v873 = vadd.f32 %v600, %v800
      %v874 = vadd.f32 %v601, %v802
      %v875 = vadd.f32 %v602, %v804
      %v876 = vadd.f32 %v603, %v806
      %v877 = vadd.f32 %v604, %v808
      %v878 = vadd.f32 %v605, %v810
      %v879 = vadd.f32 %v606, %v812
      %v880 = vadd.f32 %v607, %v814
      %v881 = vadd.f32 %v608, %v816
      %v882 = vadd.f32 %v609, %v818
      %s883 = scalar_lea.vmem %s3, 64
      %v884 = vld [vmem:[%s883] sm:$0x1]
      %v885 = vld [vmem:[%s883 + $0x1] sm:$0x1]
      %v886 = vld [vmem:[%s883 + $0x2] sm:$0x1]
      %v887 = vld [vmem:[%s883 + $0x3] sm:$0x1]
      %v888 = vld [vmem:[%s883 + $0x4] sm:$0x1]
      %v889 = vld [vmem:[%s883 + $0x5] sm:$0x1]
      %v890 = vld [vmem:[%s883 + $0x6] sm:$0x1]
      %v891 = vld [vmem:[%s883 + $0x7] sm:$0x1]
      %v900 = vlaneseq
      %v901 = vshrl.u32 %v900, 7
      %v902 = vsub.s32 0, %v901
      %v903 = vrot.slane %v884, %v902
      %v904 = vlaneseq
      %v905 = vshrl.u32 %v904, 7
      %v906 = vsub.s32 0, %v905
      %v907 = vrot.slane %v885, %v906
      %v908 = vlaneseq
      %v909 = vshrl.u32 %v908, 7
      %v910 = vsub.s32 0, %v909
      %v911 = vrot.slane %v886, %v910
      %v912 = vlaneseq
      %v913 = vshrl.u32 %v912, 7
      %v914 = vsub.s32 0, %v913
      %v915 = vrot.slane %v887, %v914
      %v916 = vlaneseq
      %v917 = vshrl.u32 %v916, 7
      %v918 = vsub.s32 0, %v917
      %v919 = vrot.slane %v888, %v918
      %v920 = vlaneseq
      %v921 = vshrl.u32 %v920, 7
      %v922 = vsub.s32 0, %v921
      %v923 = vrot.slane %v889, %v922
      %v924 = vlaneseq
      %v925 = vshrl.u32 %v924, 7
      %v926 = vsub.s32 0, %v925
      %v927 = vrot.slane %v890, %v926
      %v928 = vlaneseq
      %v929 = vshrl.u32 %v928, 7
      %v930 = vsub.s32 0, %v929
      %v931 = vrot.slane %v891, %v930
      %932 = vset.pattern.permute.xlu0 0
      %933 = vperm.xlu0 %932, %v903
      %v934 = vpop.permute.xlu0 %933
      %936 = vset.pattern.permute.xlu0 0
      %937 = vperm.xlu0 %936, %v907
      %v938 = vpop.permute.xlu0 %937
      %940 = vset.pattern.permute.xlu0 0
      %941 = vperm.xlu0 %940, %v911
      %v942 = vpop.permute.xlu0 %941
      %944 = vset.pattern.permute.xlu0 0
      %945 = vperm.xlu0 %944, %v915
      %v946 = vpop.permute.xlu0 %945
      %948 = vset.pattern.permute.xlu0 0
      %949 = vperm.xlu0 %948, %v919
      %v950 = vpop.permute.xlu0 %949
      %952 = vset.pattern.permute.xlu0 0
      %953 = vperm.xlu0 %952, %v923
      %v954 = vpop.permute.xlu0 %953
      %956 = vset.pattern.permute.xlu0 0
      %957 = vperm.xlu0 %956, %v927
      %v958 = vpop.permute.xlu0 %957
      %960 = vset.pattern.permute.xlu0 0
      %961 = vperm.xlu0 %960, %v931
      %v962 = vpop.permute.xlu0 %961
      %v964 = vmul.f32 %v934, %v448
      %v965 = vmul.f32 %v934, %v453
      %v966 = vmul.f32 %v934, %v458
      %v967 = vmul.f32 %v934, %v463
      %v968 = vmul.f32 %v938, %v448
      %v969 = vmul.f32 %v938, %v453
      %v970 = vmul.f32 %v938, %v458
      %v971 = vmul.f32 %v938, %v463
      %v972 = vmul.f32 %v942, %v448
      %v973 = vmul.f32 %v942, %v453
      %v974 = vmul.f32 %v942, %v458
      %v975 = vmul.f32 %v942, %v463
      %v976 = vmul.f32 %v946, %v448
      %v977 = vmul.f32 %v946, %v453
      %v978 = vmul.f32 %v946, %v458
      %v979 = vmul.f32 %v946, %v463
      %v980 = vmul.f32 %v950, %v448
      %v981 = vmul.f32 %v950, %v453
      %v982 = vmul.f32 %v950, %v458
      %v983 = vmul.f32 %v950, %v463
      %v984 = vmul.f32 %v954, %v448
      %v985 = vmul.f32 %v954, %v453
      %v986 = vmul.f32 %v954, %v458
      %v987 = vmul.f32 %v954, %v463
      %v988 = vmul.f32 %v958, %v448
      %v989 = vmul.f32 %v958, %v453
      %v990 = vmul.f32 %v958, %v458
      %v991 = vmul.f32 %v958, %v463
      %v992 = vmul.f32 %v962, %v448
      %v993 = vmul.f32 %v962, %v453
      %v994 = vmul.f32 %v962, %v458
      %v995 = vmul.f32 %v962, %v463
      %vm1028 = vcmask 1046528
      %v1029 = vrot.slane %v964, 1
      %v1030 = vrot.slane %v965, 1
      %v1031 = vsel %vm1028, %v1029, %v1030
      %v1032 = vrot.slane %v966, 1
      %v1033 = vsel %vm1028, %v1030, %v1032
      %v1034 = vrot.slane %v967, 1
      %v1035 = vsel %vm1028, %v1032, %v1034
      %v1036 = vrot.slane %v968, 1
      %v1037 = vrot.slane %v969, 1
      %v1038 = vsel %vm1028, %v1036, %v1037
      %v1039 = vrot.slane %v970, 1
      %v1040 = vsel %vm1028, %v1037, %v1039
      %v1041 = vrot.slane %v971, 1
      %v1042 = vsel %vm1028, %v1039, %v1041
      %v1043 = vrot.slane %v972, 1
      %v1044 = vrot.slane %v973, 1
      %v1045 = vsel %vm1028, %v1043, %v1044
      %v1046 = vrot.slane %v974, 1
      %v1047 = vsel %vm1028, %v1044, %v1046
      %v1048 = vrot.slane %v975, 1
      %v1049 = vsel %vm1028, %v1046, %v1048
      %v1050 = vrot.slane %v976, 1
      %v1051 = vrot.slane %v977, 1
      %v1052 = vsel %vm1028, %v1050, %v1051
      %v1053 = vrot.slane %v978, 1
      %v1054 = vsel %vm1028, %v1051, %v1053
      %v1055 = vrot.slane %v979, 1
      %v1056 = vsel %vm1028, %v1053, %v1055
      %v1057 = vrot.slane %v980, 1
      %v1058 = vrot.slane %v981, 1
      %v1059 = vsel %vm1028, %v1057, %v1058
      %v1060 = vrot.slane %v982, 1
      %v1061 = vsel %vm1028, %v1058, %v1060
      %v1062 = vrot.slane %v983, 1
      %v1063 = vsel %vm1028, %v1060, %v1062
      %v1064 = vrot.slane %v984, 1
      %v1065 = vrot.slane %v985, 1
      %v1066 = vsel %vm1028, %v1064, %v1065
      %v1067 = vrot.slane %v986, 1
      %v1068 = vsel %vm1028, %v1065, %v1067
      %v1069 = vrot.slane %v987, 1
      %v1070 = vsel %vm1028, %v1067, %v1069
      %v1071 = vrot.slane %v988, 1
      %v1072 = vrot.slane %v989, 1
      %v1073 = vsel %vm1028, %v1071, %v1072
      %v1074 = vrot.slane %v990, 1
      %v1075 = vsel %vm1028, %v1072, %v1074
      %v1076 = vrot.slane %v991, 1
      %v1077 = vsel %vm1028, %v1074, %v1076
      %v1078 = vrot.slane %v992, 1
      %v1079 = vrot.slane %v993, 1
      %v1080 = vsel %vm1028, %v1078, %v1079
      %v1081 = vrot.slane %v994, 1
      %v1082 = vsel %vm1028, %v1079, %v1081
      %v1083 = vrot.slane %v995, 1
      %v1084 = vsel %vm1028, %v1081, %v1083
      %v1117 = vadd.f32 %v851, %v1031
      %v1118 = vadd.f32 %v852, %v1033
      %v1119 = vadd.f32 %v853, %v1035
      %v1120 = vadd.f32 %v854, %v1034
      %v1121 = vadd.f32 %v855, %v1038
      %v1122 = vadd.f32 %v856, %v1040
      %v1123 = vadd.f32 %v857, %v1042
      %v1124 = vadd.f32 %v858, %v1041
      %v1125 = vadd.f32 %v859, %v1045
      %v1126 = vadd.f32 %v860, %v1047
      %v1127 = vadd.f32 %v861, %v1049
      %v1128 = vadd.f32 %v862, %v1048
      %v1129 = vadd.f32 %v863, %v1052
      %v1130 = vadd.f32 %v864, %v1054
      %v1131 = vadd.f32 %v865, %v1056
      %v1132 = vadd.f32 %v866, %v1055
      %v1133 = vadd.f32 %v867, %v1059
      %v1134 = vadd.f32 %v868, %v1061
      %v1135 = vadd.f32 %v869, %v1063
      %v1136 = vadd.f32 %v870, %v1062
      %v1137 = vadd.f32 %v871, %v1066
      %v1138 = vadd.f32 %v872, %v1068
      %v1139 = vadd.f32 %v873, %v1070
      %v1140 = vadd.f32 %v874, %v1069
      %v1141 = vadd.f32 %v875, %v1073
      %v1142 = vadd.f32 %v876, %v1075
      %v1143 = vadd.f32 %v877, %v1077
      %v1144 = vadd.f32 %v878, %v1076
      %v1145 = vadd.f32 %v879, %v1080
      %v1146 = vadd.f32 %v880, %v1082
      %v1147 = vadd.f32 %v881, %v1084
      %v1148 = vadd.f32 %v882, %v1083
      %s1149 = scalar_lea.vmem %s3, 96
      %v1150 = vld [vmem:[%s1149] sm:$0x1]
      %v1151 = vld [vmem:[%s1149 + $0x1] sm:$0x1]
      %v1152 = vld [vmem:[%s1149 + $0x2] sm:$0x1]
      %v1153 = vld [vmem:[%s1149 + $0x3] sm:$0x1]
      %v1154 = vld [vmem:[%s1149 + $0x4] sm:$0x1]
      %v1155 = vld [vmem:[%s1149 + $0x5] sm:$0x1]
      %v1156 = vld [vmem:[%s1149 + $0x6] sm:$0x1]
      %v1157 = vld [vmem:[%s1149 + $0x7] sm:$0x1]
      %v1166 = vlaneseq
      %v1167 = vshrl.u32 %v1166, 7
      %v1168 = vsub.s32 0, %v1167
      %v1169 = vrot.slane %v1150, %v1168
      %v1170 = vlaneseq
      %v1171 = vshrl.u32 %v1170, 7
      %v1172 = vsub.s32 0, %v1171
      %v1173 = vrot.slane %v1151, %v1172
      %v1174 = vlaneseq
      %v1175 = vshrl.u32 %v1174, 7
      %v1176 = vsub.s32 0, %v1175
      %v1177 = vrot.slane %v1152, %v1176
      %v1178 = vlaneseq
      %v1179 = vshrl.u32 %v1178, 7
      %v1180 = vsub.s32 0, %v1179
      %v1181 = vrot.slane %v1153, %v1180
      %v1182 = vlaneseq
      %v1183 = vshrl.u32 %v1182, 7
      %v1184 = vsub.s32 0, %v1183
      %v1185 = vrot.slane %v1154, %v1184
      %v1186 = vlaneseq
      %v1187 = vshrl.u32 %v1186, 7
      %v1188 = vsub.s32 0, %v1187
      %v1189 = vrot.slane %v1155, %v1188
      %v1190 = vlaneseq
      %v1191 = vshrl.u32 %v1190, 7
      %v1192 = vsub.s32 0, %v1191
      %v1193 = vrot.slane %v1156, %v1192
      %v1194 = vlaneseq
      %v1195 = vshrl.u32 %v1194, 7
      %v1196 = vsub.s32 0, %v1195
      %v1197 = vrot.slane %v1157, %v1196
      %1198 = vset.pattern.permute.xlu0 0
      %1199 = vperm.xlu0 %1198, %v1169
      %v1200 = vpop.permute.xlu0 %1199
      %1202 = vset.pattern.permute.xlu0 0
      %1203 = vperm.xlu0 %1202, %v1173
      %v1204 = vpop.permute.xlu0 %1203
      %1206 = vset.pattern.permute.xlu0 0
      %1207 = vperm.xlu0 %1206, %v1177
      %v1208 = vpop.permute.xlu0 %1207
      %1210 = vset.pattern.permute.xlu0 0
      %1211 = vperm.xlu0 %1210, %v1181
      %v1212 = vpop.permute.xlu0 %1211
      %1214 = vset.pattern.permute.xlu0 0
      %1215 = vperm.xlu0 %1214, %v1185
      %v1216 = vpop.permute.xlu0 %1215
      %1218 = vset.pattern.permute.xlu0 0
      %1219 = vperm.xlu0 %1218, %v1189
      %v1220 = vpop.permute.xlu0 %1219
      %1222 = vset.pattern.permute.xlu0 0
      %1223 = vperm.xlu0 %1222, %v1193
      %v1224 = vpop.permute.xlu0 %1223
      %1226 = vset.pattern.permute.xlu0 0
      %1227 = vperm.xlu0 %1226, %v1197
      %v1228 = vpop.permute.xlu0 %1227
      %v1230 = vmul.f32 %v1200, %v448
      %v1231 = vmul.f32 %v1200, %v453
      %v1232 = vmul.f32 %v1200, %v458
      %v1233 = vmul.f32 %v1200, %v463
      %v1234 = vmul.f32 %v1204, %v448
      %v1235 = vmul.f32 %v1204, %v453
      %v1236 = vmul.f32 %v1204, %v458
      %v1237 = vmul.f32 %v1204, %v463
      %v1238 = vmul.f32 %v1208, %v448
      %v1239 = vmul.f32 %v1208, %v453
      %v1240 = vmul.f32 %v1208, %v458
      %v1241 = vmul.f32 %v1208, %v463
      %v1242 = vmul.f32 %v1212, %v448
      %v1243 = vmul.f32 %v1212, %v453
      %v1244 = vmul.f32 %v1212, %v458
      %v1245 = vmul.f32 %v1212, %v463
      %v1246 = vmul.f32 %v1216, %v448
      %v1247 = vmul.f32 %v1216, %v453
      %v1248 = vmul.f32 %v1216, %v458
      %v1249 = vmul.f32 %v1216, %v463
      %v1250 = vmul.f32 %v1220, %v448
      %v1251 = vmul.f32 %v1220, %v453
      %v1252 = vmul.f32 %v1220, %v458
      %v1253 = vmul.f32 %v1220, %v463
      %v1254 = vmul.f32 %v1224, %v448
      %v1255 = vmul.f32 %v1224, %v453
      %v1256 = vmul.f32 %v1224, %v458
      %v1257 = vmul.f32 %v1224, %v463
      %v1258 = vmul.f32 %v1228, %v448
      %v1259 = vmul.f32 %v1228, %v453
      %v1260 = vmul.f32 %v1228, %v458
      %v1261 = vmul.f32 %v1228, %v463
      %v1294 = vrot.slane %v1230, 1
      %v1295 = vrot.slane %v1231, 1
      %v1296 = vsel %vm1028, %v1294, %v1295
      %v1297 = vrot.slane %v1232, 1
      %v1298 = vsel %vm1028, %v1295, %v1297
      %v1299 = vrot.slane %v1233, 1
      %v1300 = vsel %vm1028, %v1297, %v1299
      %v1301 = vrot.slane %v1234, 1
      %v1302 = vrot.slane %v1235, 1
      %v1303 = vsel %vm1028, %v1301, %v1302
      %v1304 = vrot.slane %v1236, 1
      %v1305 = vsel %vm1028, %v1302, %v1304
      %v1306 = vrot.slane %v1237, 1
      %v1307 = vsel %vm1028, %v1304, %v1306
      %v1308 = vrot.slane %v1238, 1
      %v1309 = vrot.slane %v1239, 1
      %v1310 = vsel %vm1028, %v1308, %v1309
      %v1311 = vrot.slane %v1240, 1
      %v1312 = vsel %vm1028, %v1309, %v1311
      %v1313 = vrot.slane %v1241, 1
      %v1314 = vsel %vm1028, %v1311, %v1313
      %v1315 = vrot.slane %v1242, 1
      %v1316 = vrot.slane %v1243, 1
      %v1317 = vsel %vm1028, %v1315, %v1316
      %v1318 = vrot.slane %v1244, 1
      %v1319 = vsel %vm1028, %v1316, %v1318
      %v1320 = vrot.slane %v1245, 1
      %v1321 = vsel %vm1028, %v1318, %v1320
      %v1322 = vrot.slane %v1246, 1
      %v1323 = vrot.slane %v1247, 1
      %v1324 = vsel %vm1028, %v1322, %v1323
      %v1325 = vrot.slane %v1248, 1
      %v1326 = vsel %vm1028, %v1323, %v1325
      %v1327 = vrot.slane %v1249, 1
      %v1328 = vsel %vm1028, %v1325, %v1327
      %v1329 = vrot.slane %v1250, 1
      %v1330 = vrot.slane %v1251, 1
      %v1331 = vsel %vm1028, %v1329, %v1330
      %v1332 = vrot.slane %v1252, 1
      %v1333 = vsel %vm1028, %v1330, %v1332
      %v1334 = vrot.slane %v1253, 1
      %v1335 = vsel %vm1028, %v1332, %v1334
      %v1336 = vrot.slane %v1254, 1
      %v1337 = vrot.slane %v1255, 1
      %v1338 = vsel %vm1028, %v1336, %v1337
      %v1339 = vrot.slane %v1256, 1
      %v1340 = vsel %vm1028, %v1337, %v1339
      %v1341 = vrot.slane %v1257, 1
      %v1342 = vsel %vm1028, %v1339, %v1341
      %v1343 = vrot.slane %v1258, 1
      %v1344 = vrot.slane %v1259, 1
      %v1345 = vsel %vm1028, %v1343, %v1344
      %v1346 = vrot.slane %v1260, 1
      %v1347 = vsel %vm1028, %v1344, %v1346
      %v1348 = vrot.slane %v1261, 1
      %v1349 = vsel %vm1028, %v1346, %v1348
      %1350 = vrot.lane.b32.xlu0 %v1296, 127
      %v1351 = vpop.permute.xlu0 %1350
      %1352 = vrot.lane.b32.xlu0 %v1298, 127
      %v1353 = vpop.permute.xlu0 %1352
      %1354 = vrot.lane.b32.xlu0 %v1300, 127
      %v1355 = vpop.permute.xlu0 %1354
      %1356 = vrot.lane.b32.xlu0 %v1299, 127
      %v1357 = vpop.permute.xlu0 %1356
      %1358 = vrot.lane.b32.xlu0 %v1303, 127
      %v1359 = vpop.permute.xlu0 %1358
      %1360 = vrot.lane.b32.xlu0 %v1305, 127
      %v1361 = vpop.permute.xlu0 %1360
      %1362 = vrot.lane.b32.xlu0 %v1307, 127
      %v1363 = vpop.permute.xlu0 %1362
      %1364 = vrot.lane.b32.xlu0 %v1306, 127
      %v1365 = vpop.permute.xlu0 %1364
      %1366 = vrot.lane.b32.xlu0 %v1310, 127
      %v1367 = vpop.permute.xlu0 %1366
      %1368 = vrot.lane.b32.xlu0 %v1312, 127
      %v1369 = vpop.permute.xlu0 %1368
      %1370 = vrot.lane.b32.xlu0 %v1314, 127
      %v1371 = vpop.permute.xlu0 %1370
      %1372 = vrot.lane.b32.xlu0 %v1313, 127
      %v1373 = vpop.permute.xlu0 %1372
      %1374 = vrot.lane.b32.xlu0 %v1317, 127
      %v1375 = vpop.permute.xlu0 %1374
      %1376 = vrot.lane.b32.xlu0 %v1319, 127
      %v1377 = vpop.permute.xlu0 %1376
      %1378 = vrot.lane.b32.xlu0 %v1321, 127
      %v1379 = vpop.permute.xlu0 %1378
      %1380 = vrot.lane.b32.xlu0 %v1320, 127
      %v1381 = vpop.permute.xlu0 %1380
      %1382 = vrot.lane.b32.xlu0 %v1324, 127
      %v1383 = vpop.permute.xlu0 %1382
      %1384 = vrot.lane.b32.xlu0 %v1326, 127
      %v1385 = vpop.permute.xlu0 %1384
      %1386 = vrot.lane.b32.xlu0 %v1328, 127
      %v1387 = vpop.permute.xlu0 %1386
      %1388 = vrot.lane.b32.xlu0 %v1327, 127
      %v1389 = vpop.permute.xlu0 %1388
      %1390 = vrot.lane.b32.xlu0 %v1331, 127
      %v1391 = vpop.permute.xlu0 %1390
      %1392 = vrot.lane.b32.xlu0 %v1333, 127
      %v1393 = vpop.permute.xlu0 %1392
      %1394 = vrot.lane.b32.xlu0 %v1335, 127
      %v1395 = vpop.permute.xlu0 %1394
      %1396 = vrot.lane.b32.xlu0 %v1334, 127
      %v1397 = vpop.permute.xlu0 %1396
      %1398 = vrot.lane.b32.xlu0 %v1338, 127
      %v1399 = vpop.permute.xlu0 %1398
      %1400 = vrot.lane.b32.xlu0 %v1340, 127
      %v1401 = vpop.permute.xlu0 %1400
      %1402 = vrot.lane.b32.xlu0 %v1342, 127
      %v1403 = vpop.permute.xlu0 %1402
      %1404 = vrot.lane.b32.xlu0 %v1341, 127
      %v1405 = vpop.permute.xlu0 %1404
      %1406 = vrot.lane.b32.xlu0 %v1345, 127
      %v1407 = vpop.permute.xlu0 %1406
      %1408 = vrot.lane.b32.xlu0 %v1347, 127
      %v1409 = vpop.permute.xlu0 %1408
      %1410 = vrot.lane.b32.xlu0 %v1349, 127
      %v1411 = vpop.permute.xlu0 %1410
      %1412 = vrot.lane.b32.xlu0 %v1348, 127
      %v1413 = vpop.permute.xlu0 %1412
      %v1446 = vadd.f32 %v1117, %v1351
      %v1447 = vadd.f32 %v1118, %v1353
      %v1448 = vadd.f32 %v1119, %v1355
      %v1449 = vadd.f32 %v1120, %v1357
      %v1450 = vadd.f32 %v1121, %v1359
      %v1451 = vadd.f32 %v1122, %v1361
      %v1452 = vadd.f32 %v1123, %v1363
      %v1453 = vadd.f32 %v1124, %v1365
      %v1454 = vadd.f32 %v1125, %v1367
      %v1455 = vadd.f32 %v1126, %v1369
      %v1456 = vadd.f32 %v1127, %v1371
      %v1457 = vadd.f32 %v1128, %v1373
      %v1458 = vadd.f32 %v1129, %v1375
      %v1459 = vadd.f32 %v1130, %v1377
      %v1460 = vadd.f32 %v1131, %v1379
      %v1461 = vadd.f32 %v1132, %v1381
      %v1462 = vadd.f32 %v1133, %v1383
      %v1463 = vadd.f32 %v1134, %v1385
      %v1464 = vadd.f32 %v1135, %v1387
      %v1465 = vadd.f32 %v1136, %v1389
      %v1466 = vadd.f32 %v1137, %v1391
      %v1467 = vadd.f32 %v1138, %v1393
      %v1468 = vadd.f32 %v1139, %v1395
      %v1469 = vadd.f32 %v1140, %v1397
      %v1470 = vadd.f32 %v1141, %v1399
      %v1471 = vadd.f32 %v1142, %v1401
      %v1472 = vadd.f32 %v1143, %v1403
      %v1473 = vadd.f32 %v1144, %v1405
      %v1474 = vadd.f32 %v1145, %v1407
      %v1475 = vadd.f32 %v1146, %v1409
      %v1476 = vadd.f32 %v1147, %v1411
      %v1477 = vadd.f32 %v1148, %v1413
      %1478 = vmatprep.subr.mxu0 0.0
      %1479 = vmatpush1.msra.mxu0 %v341
      %1480 = vmatprep.subr.mxu0 0.0
      %1481 = vmatpush1.msra.mxu0 %v346
      %1482 = vmatprep.subr.mxu0 0.0
      %1483 = vmatpush1.msra.mxu0 0.0
      %1484 = vmatprep.subr.mxu0 0.0
      %1485 = vmatpush1.msra.mxu0 0.0
      %1486 = vmatprep.subr.mxu0 0.0
      %1487 = vmatpush1.msra.mxu0 0.0
      %1488 = vmatprep.subr.mxu0 0.0
      %1489 = vmatpush1.msra.mxu0 0.0
      %1490 = vmatprep.subr.mxu0 0.0
      %1491 = vmatpush1.msra.mxu0 0.0
      %1492 = vmatprep.subr.mxu0 0.0
      %1493 = vmatpush1.msra.mxu0 0.0
      %1494 = vmatprep.subr.mxu0 0.0
      %1495 = vmatpush1.msra.mxu0 0.0
      %1496 = vmatprep.subr.mxu0 0.0
      %1497 = vmatpush1.msra.mxu0 0.0
      %1498 = vmatprep.subr.mxu0 0.0
      %1499 = vmatpush1.msra.mxu0 0.0
      %1500 = vmatprep.subr.mxu0 0.0
      %1501 = vmatpush1.msra.mxu0 0.0
      %1502 = vmatprep.subr.mxu0 0.0
      %1503 = vmatpush1.msra.mxu0 0.0
      %1504 = vmatprep.subr.mxu0 0.0
      %1505 = vmatpush1.msra.mxu0 0.0
      %1506 = vmatprep.subr.mxu0 0.0
      %1507 = vmatpush1.msra.mxu0 0.0
      %1508 = vmatprep.subr.mxu0 0.0
      %1509 = vmatpush1.msra.mxu0 0.0
      %1510 = vmatprep.subr.mxu0 0.0
      %1511 = vmatpush1.msra.mxu0 0.0
      %1512 = vmatprep.subr.mxu0 0.0
      %1513 = vmatpush1.msra.mxu0 0.0
      %1514 = vmatprep.subr.mxu0 0.0
      %1515 = vmatpush1.msra.mxu0 0.0
      %1516 = vmatprep.subr.mxu0 0.0
      %1517 = vmatpush1.msra.mxu0 0.0
      %1518 = vmatprep.subr.mxu0 0.0
      %1519 = vmatpush1.msra.mxu0 0.0
      %1520 = vmatprep.subr.mxu0 0.0
      %1521 = vmatpush1.msra.mxu0 0.0
      %1522 = vmatprep.subr.mxu0 0.0
      %1523 = vmatpush1.msra.mxu0 0.0
      %1524 = vmatprep.subr.mxu0 0.0
      %1525 = vmatpush1.msra.mxu0 0.0
      %1526 = vmatprep.subr.mxu0 0.0
      %1527 = vmatpush1.msra.mxu0 0.0
      %1528 = vmatprep.subr.mxu0 0.0
      %1529 = vmatpush1.msra.mxu0 0.0
      %1530 = vmatprep.subr.mxu0 0.0
      %1531 = vmatpush1.msra.mxu0 0.0
      %1532 = vmatprep.subr.mxu0 0.0
      %1533 = vmatpush1.msra.mxu0 0.0
      %1534 = vmatprep.subr.mxu0 0.0
      %1535 = vmatpush1.msra.mxu0 0.0
      %1536 = vmatprep.subr.mxu0 0.0
      %1537 = vmatpush1.msra.mxu0 0.0
      %1538 = vmatprep.subr.mxu0 0.0
      %1539 = vmatpush1.msra.mxu0 0.0
      %1540 = vmatprep.subr.mxu0 0.0
      %1541 = vmatpush1.msra.mxu0 0.0
      %1542 = vmatprep.mubr.f32.mxu0 0.0
      %1543 = vmatmul.mubr.f32.gmra.mrb[0].mxu0 %v370
      %v1544 = vpop.f32.mrb[0].mxu0
      %v1545 = vadd.f32 0.0, %v1544
      %v1546 = vpop.f32.mrb[0].mxu0
      %1547 = vmatprep.mubr.f32.mxu0 0.0
      %1548 = vmatmul.mubr.f32.gmra.mrb[0].mxu0 %v373
      %v1549 = vpop.f32.mrb[0].mxu0
      %v1550 = vadd.f32 0.0, %v1549
      %v1551 = vpop.f32.mrb[0].mxu0
      %1552 = vmatprep.mubr.f32.mxu0 0.0
      %1553 = vmatmul.mubr.f32.gmra.mrb[0].mxu0 %v376
      %v1554 = vpop.f32.mrb[0].mxu0
      %v1555 = vadd.f32 0.0, %v1554
      %v1556 = vpop.f32.mrb[0].mxu0
      %1557 = vmatprep.mubr.f32.mxu0 0.0
      %1558 = vmatmul.mubr.f32.gmra.mrb[0].mxu0 %v379
      %v1559 = vpop.f32.mrb[0].mxu0
      %v1560 = vadd.f32 0.0, %v1559
      %v1561 = vpop.f32.mrb[0].mxu0
      %1562 = vdwg.mxu0
      %s1563 = scalar_lea.vmem %s3, 8
      %v1564 = vld [vmem:[%s1563] sm:$0x1]
      %v1565 = vld [vmem:[%s1563 + $0x1] sm:$0x1]
      %v1566 = vld [vmem:[%s1563 + $0x2] sm:$0x1]
      %v1567 = vld [vmem:[%s1563 + $0x3] sm:$0x1]
      %v1568 = vld [vmem:[%s1563 + $0x4] sm:$0x1]
      %v1569 = vld [vmem:[%s1563 + $0x5] sm:$0x1]
      %v1570 = vld [vmem:[%s1563 + $0x6] sm:$0x1]
      %v1571 = vld [vmem:[%s1563 + $0x7] sm:$0x1]
      %v1580 = vlaneseq
      %v1581 = vshrl.u32 %v1580, 7
      %v1582 = vsub.s32 0, %v1581
      %v1583 = vrot.slane %v1564, %v1582
      %v1584 = vlaneseq
      %v1585 = vshrl.u32 %v1584, 7
      %v1586 = vsub.s32 0, %v1585
      %v1587 = vrot.slane %v1565, %v1586
      %v1588 = vlaneseq
      %v1589 = vshrl.u32 %v1588, 7
      %v1590 = vsub.s32 0, %v1589
      %v1591 = vrot.slane %v1566, %v1590
      %v1592 = vlaneseq
      %v1593 = vshrl.u32 %v1592, 7
      %v1594 = vsub.s32 0, %v1593
      %v1595 = vrot.slane %v1567, %v1594
      %v1596 = vlaneseq
      %v1597 = vshrl.u32 %v1596, 7
      %v1598 = vsub.s32 0, %v1597
      %v1599 = vrot.slane %v1568, %v1598
      %v1600 = vlaneseq
      %v1601 = vshrl.u32 %v1600, 7
      %v1602 = vsub.s32 0, %v1601
      %v1603 = vrot.slane %v1569, %v1602
      %v1604 = vlaneseq
      %v1605 = vshrl.u32 %v1604, 7
      %v1606 = vsub.s32 0, %v1605
      %v1607 = vrot.slane %v1570, %v1606
      %v1608 = vlaneseq
      %v1609 = vshrl.u32 %v1608, 7
      %v1610 = vsub.s32 0, %v1609
      %v1611 = vrot.slane %v1571, %v1610
      %1612 = vset.pattern.permute.xlu0 0
      %1613 = vperm.xlu0 %1612, %v1583
      %v1614 = vpop.permute.xlu0 %1613
      %1616 = vset.pattern.permute.xlu0 0
      %1617 = vperm.xlu0 %1616, %v1587
      %v1618 = vpop.permute.xlu0 %1617
      %1620 = vset.pattern.permute.xlu0 0
      %1621 = vperm.xlu0 %1620, %v1591
      %v1622 = vpop.permute.xlu0 %1621
      %1624 = vset.pattern.permute.xlu0 0
      %1625 = vperm.xlu0 %1624, %v1595
      %v1626 = vpop.permute.xlu0 %1625
      %1628 = vset.pattern.permute.xlu0 0
      %1629 = vperm.xlu0 %1628, %v1599
      %v1630 = vpop.permute.xlu0 %1629
      %1632 = vset.pattern.permute.xlu0 0
      %1633 = vperm.xlu0 %1632, %v1603
      %v1634 = vpop.permute.xlu0 %1633
      %1636 = vset.pattern.permute.xlu0 0
      %1637 = vperm.xlu0 %1636, %v1607
      %v1638 = vpop.permute.xlu0 %1637
      %1640 = vset.pattern.permute.xlu0 0
      %1641 = vperm.xlu0 %1640, %v1611
      %v1642 = vpop.permute.xlu0 %1641
      %v1644 = vmul.f32 %v1614, %v1545
      %v1645 = vmul.f32 %v1614, %v1550
      %v1646 = vmul.f32 %v1614, %v1555
      %v1647 = vmul.f32 %v1614, %v1560
      %v1648 = vmul.f32 %v1618, %v1545
      %v1649 = vmul.f32 %v1618, %v1550
      %v1650 = vmul.f32 %v1618, %v1555
      %v1651 = vmul.f32 %v1618, %v1560
      %v1652 = vmul.f32 %v1622, %v1545
      %v1653 = vmul.f32 %v1622, %v1550
      %v1654 = vmul.f32 %v1622, %v1555
      %v1655 = vmul.f32 %v1622, %v1560
      %v1656 = vmul.f32 %v1626, %v1545
      %v1657 = vmul.f32 %v1626, %v1550
      %v1658 = vmul.f32 %v1626, %v1555
      %v1659 = vmul.f32 %v1626, %v1560
      %v1660 = vmul.f32 %v1630, %v1545
      %v1661 = vmul.f32 %v1630, %v1550
      %v1662 = vmul.f32 %v1630, %v1555
      %v1663 = vmul.f32 %v1630, %v1560
      %v1664 = vmul.f32 %v1634, %v1545
      %v1665 = vmul.f32 %v1634, %v1550
      %v1666 = vmul.f32 %v1634, %v1555
      %v1667 = vmul.f32 %v1634, %v1560
      %v1668 = vmul.f32 %v1638, %v1545
      %v1669 = vmul.f32 %v1638, %v1550
      %v1670 = vmul.f32 %v1638, %v1555
      %v1671 = vmul.f32 %v1638, %v1560
      %v1672 = vmul.f32 %v1642, %v1545
      %v1673 = vmul.f32 %v1642, %v1550
      %v1674 = vmul.f32 %v1642, %v1555
      %v1675 = vmul.f32 %v1642, %v1560
      %v1676 = vadd.f32 %v1446, %v1644
      %v1677 = vadd.f32 %v1447, %v1645
      %v1678 = vadd.f32 %v1448, %v1646
      %v1679 = vadd.f32 %v1449, %v1647
      %v1680 = vadd.f32 %v1450, %v1648
      %v1681 = vadd.f32 %v1451, %v1649
      %v1682 = vadd.f32 %v1452, %v1650
      %v1683 = vadd.f32 %v1453, %v1651
      %v1684 = vadd.f32 %v1454, %v1652
      %v1685 = vadd.f32 %v1455, %v1653
      %v1686 = vadd.f32 %v1456, %v1654
      %v1687 = vadd.f32 %v1457, %v1655
      %v1688 = vadd.f32 %v1458, %v1656
      %v1689 = vadd.f32 %v1459, %v1657
      %v1690 = vadd.f32 %v1460, %v1658
      %v1691 = vadd.f32 %v1461, %v1659
      %v1692 = vadd.f32 %v1462, %v1660
      %v1693 = vadd.f32 %v1463, %v1661
      %v1694 = vadd.f32 %v1464, %v1662
      %v1695 = vadd.f32 %v1465, %v1663
      %v1696 = vadd.f32 %v1466, %v1664
      %v1697 = vadd.f32 %v1467, %v1665
      %v1698 = vadd.f32 %v1468, %v1666
      %v1699 = vadd.f32 %v1469, %v1667
      %v1700 = vadd.f32 %v1470, %v1668
      %v1701 = vadd.f32 %v1471, %v1669
      %v1702 = vadd.f32 %v1472, %v1670
      %v1703 = vadd.f32 %v1473, %v1671
      %v1704 = vadd.f32 %v1474, %v1672
      %v1705 = vadd.f32 %v1475, %v1673
      %v1706 = vadd.f32 %v1476, %v1674
      %v1707 = vadd.f32 %v1477, %v1675
      %s1708 = scalar_lea.vmem %s3, 40
      %v1709 = vld [vmem:[%s1708] sm:$0x1]
      %v1710 = vld [vmem:[%s1708 + $0x1] sm:$0x1]
      %v1711 = vld [vmem:[%s1708 + $0x2] sm:$0x1]
      %v1712 = vld [vmem:[%s1708 + $0x3] sm:$0x1]
      %v1713 = vld [vmem:[%s1708 + $0x4] sm:$0x1]
      %v1714 = vld [vmem:[%s1708 + $0x5] sm:$0x1]
      %v1715 = vld [vmem:[%s1708 + $0x6] sm:$0x1]
      %v1716 = vld [vmem:[%s1708 + $0x7] sm:$0x1]
      %v1725 = vlaneseq
      %v1726 = vshrl.u32 %v1725, 7
      %v1727 = vsub.s32 0, %v1726
      %v1728 = vrot.slane %v1709, %v1727
      %v1729 = vlaneseq
      %v1730 = vshrl.u32 %v1729, 7
      %v1731 = vsub.s32 0, %v1730
      %v1732 = vrot.slane %v1710, %v1731
      %v1733 = vlaneseq
      %v1734 = vshrl.u32 %v1733, 7
      %v1735 = vsub.s32 0, %v1734
      %v1736 = vrot.slane %v1711, %v1735
      %v1737 = vlaneseq
      %v1738 = vshrl.u32 %v1737, 7
      %v1739 = vsub.s32 0, %v1738
      %v1740 = vrot.slane %v1712, %v1739
      %v1741 = vlaneseq
      %v1742 = vshrl.u32 %v1741, 7
      %v1743 = vsub.s32 0, %v1742
      %v1744 = vrot.slane %v1713, %v1743
      %v1745 = vlaneseq
      %v1746 = vshrl.u32 %v1745, 7
      %v1747 = vsub.s32 0, %v1746
      %v1748 = vrot.slane %v1714, %v1747
      %v1749 = vlaneseq
      %v1750 = vshrl.u32 %v1749, 7
      %v1751 = vsub.s32 0, %v1750
      %v1752 = vrot.slane %v1715, %v1751
      %v1753 = vlaneseq
      %v1754 = vshrl.u32 %v1753, 7
      %v1755 = vsub.s32 0, %v1754
      %v1756 = vrot.slane %v1716, %v1755
      %1757 = vset.pattern.permute.xlu0 0
      %1758 = vperm.xlu0 %1757, %v1728
      %v1759 = vpop.permute.xlu0 %1758
      %1761 = vset.pattern.permute.xlu0 0
      %1762 = vperm.xlu0 %1761, %v1732
      %v1763 = vpop.permute.xlu0 %1762
      %1765 = vset.pattern.permute.xlu0 0
      %1766 = vperm.xlu0 %1765, %v1736
      %v1767 = vpop.permute.xlu0 %1766
      %1769 = vset.pattern.permute.xlu0 0
      %1770 = vperm.xlu0 %1769, %v1740
      %v1771 = vpop.permute.xlu0 %1770
      %1773 = vset.pattern.permute.xlu0 0
      %1774 = vperm.xlu0 %1773, %v1744
      %v1775 = vpop.permute.xlu0 %1774
      %1777 = vset.pattern.permute.xlu0 0
      %1778 = vperm.xlu0 %1777, %v1748
      %v1779 = vpop.permute.xlu0 %1778
      %1781 = vset.pattern.permute.xlu0 0
      %1782 = vperm.xlu0 %1781, %v1752
      %v1783 = vpop.permute.xlu0 %1782
      %1785 = vset.pattern.permute.xlu0 0
      %1786 = vperm.xlu0 %1785, %v1756
      %v1787 = vpop.permute.xlu0 %1786
      %v1789 = vmul.f32 %v1759, %v1545
      %v1790 = vmul.f32 %v1759, %v1550
      %v1791 = vmul.f32 %v1759, %v1555
      %v1792 = vmul.f32 %v1759, %v1560
      %v1793 = vmul.f32 %v1763, %v1545
      %v1794 = vmul.f32 %v1763, %v1550
      %v1795 = vmul.f32 %v1763, %v1555
      %v1796 = vmul.f32 %v1763, %v1560
      %v1797 = vmul.f32 %v1767, %v1545
      %v1798 = vmul.f32 %v1767, %v1550
      %v1799 = vmul.f32 %v1767, %v1555
      %v1800 = vmul.f32 %v1767, %v1560
      %v1801 = vmul.f32 %v1771, %v1545
      %v1802 = vmul.f32 %v1771, %v1550
      %v1803 = vmul.f32 %v1771, %v1555
      %v1804 = vmul.f32 %v1771, %v1560
      %v1805 = vmul.f32 %v1775, %v1545
      %v1806 = vmul.f32 %v1775, %v1550
      %v1807 = vmul.f32 %v1775, %v1555
      %v1808 = vmul.f32 %v1775, %v1560
      %v1809 = vmul.f32 %v1779, %v1545
      %v1810 = vmul.f32 %v1779, %v1550
      %v1811 = vmul.f32 %v1779, %v1555
      %v1812 = vmul.f32 %v1779, %v1560
      %v1813 = vmul.f32 %v1783, %v1545
      %v1814 = vmul.f32 %v1783, %v1550
      %v1815 = vmul.f32 %v1783, %v1555
      %v1816 = vmul.f32 %v1783, %v1560
      %v1817 = vmul.f32 %v1787, %v1545
      %v1818 = vmul.f32 %v1787, %v1550
      %v1819 = vmul.f32 %v1787, %v1555
      %v1820 = vmul.f32 %v1787, %v1560
      %1853 = vrot.lane.b32.xlu0 %v1789, 127
      %v1854 = vpop.permute.xlu0 %1853
      %1855 = vrot.lane.b32.xlu0 %v1790, 127
      %v1856 = vpop.permute.xlu0 %1855
      %1857 = vrot.lane.b32.xlu0 %v1791, 127
      %v1858 = vpop.permute.xlu0 %1857
      %1859 = vrot.lane.b32.xlu0 %v1792, 127
      %v1860 = vpop.permute.xlu0 %1859
      %1861 = vrot.lane.b32.xlu0 %v1793, 127
      %v1862 = vpop.permute.xlu0 %1861
      %1863 = vrot.lane.b32.xlu0 %v1794, 127
      %v1864 = vpop.permute.xlu0 %1863
      %1865 = vrot.lane.b32.xlu0 %v1795, 127
      %v1866 = vpop.permute.xlu0 %1865
      %1867 = vrot.lane.b32.xlu0 %v1796, 127
      %v1868 = vpop.permute.xlu0 %1867
      %1869 = vrot.lane.b32.xlu0 %v1797, 127
      %v1870 = vpop.permute.xlu0 %1869
      %1871 = vrot.lane.b32.xlu0 %v1798, 127
      %v1872 = vpop.permute.xlu0 %1871
      %1873 = vrot.lane.b32.xlu0 %v1799, 127
      %v1874 = vpop.permute.xlu0 %1873
      %1875 = vrot.lane.b32.xlu0 %v1800, 127
      %v1876 = vpop.permute.xlu0 %1875
      %1877 = vrot.lane.b32.xlu0 %v1801, 127
      %v1878 = vpop.permute.xlu0 %1877
      %1879 = vrot.lane.b32.xlu0 %v1802, 127
      %v1880 = vpop.permute.xlu0 %1879
      %1881 = vrot.lane.b32.xlu0 %v1803, 127
      %v1882 = vpop.permute.xlu0 %1881
      %1883 = vrot.lane.b32.xlu0 %v1804, 127
      %v1884 = vpop.permute.xlu0 %1883
      %1885 = vrot.lane.b32.xlu0 %v1805, 127
      %v1886 = vpop.permute.xlu0 %1885
      %1887 = vrot.lane.b32.xlu0 %v1806, 127
      %v1888 = vpop.permute.xlu0 %1887
      %1889 = vrot.lane.b32.xlu0 %v1807, 127
      %v1890 = vpop.permute.xlu0 %1889
      %1891 = vrot.lane.b32.xlu0 %v1808, 127
      %v1892 = vpop.permute.xlu0 %1891
      %1893 = vrot.lane.b32.xlu0 %v1809, 127
      %v1894 = vpop.permute.xlu0 %1893
      %1895 = vrot.lane.b32.xlu0 %v1810, 127
      %v1896 = vpop.permute.xlu0 %1895
      %1897 = vrot.lane.b32.xlu0 %v1811, 127
      %v1898 = vpop.permute.xlu0 %1897
      %1899 = vrot.lane.b32.xlu0 %v1812, 127
      %v1900 = vpop.permute.xlu0 %1899
      %1901 = vrot.lane.b32.xlu0 %v1813, 127
      %v1902 = vpop.permute.xlu0 %1901
      %1903 = vrot.lane.b32.xlu0 %v1814, 127
      %v1904 = vpop.permute.xlu0 %1903
      %1905 = vrot.lane.b32.xlu0 %v1815, 127
      %v1906 = vpop.permute.xlu0 %1905
      %1907 = vrot.lane.b32.xlu0 %v1816, 127
      %v1908 = vpop.permute.xlu0 %1907
      %1909 = vrot.lane.b32.xlu0 %v1817, 127
      %v1910 = vpop.permute.xlu0 %1909
      %1911 = vrot.lane.b32.xlu0 %v1818, 127
      %v1912 = vpop.permute.xlu0 %1911
      %1913 = vrot.lane.b32.xlu0 %v1819, 127
      %v1914 = vpop.permute.xlu0 %1913
      %1915 = vrot.lane.b32.xlu0 %v1820, 127
      %v1916 = vpop.permute.xlu0 %1915
      %v1949 = vadd.f32 %v1676, %v1854
      %v1950 = vadd.f32 %v1677, %v1856
      %v1951 = vadd.f32 %v1678, %v1858
      %v1952 = vadd.f32 %v1679, %v1860
      %v1953 = vadd.f32 %v1680, %v1862
      %v1954 = vadd.f32 %v1681, %v1864
      %v1955 = vadd.f32 %v1682, %v1866
      %v1956 = vadd.f32 %v1683, %v1868
      %v1957 = vadd.f32 %v1684, %v1870
      %v1958 = vadd.f32 %v1685, %v1872
      %v1959 = vadd.f32 %v1686, %v1874
      %v1960 = vadd.f32 %v1687, %v1876
      %v1961 = vadd.f32 %v1688, %v1878
      %v1962 = vadd.f32 %v1689, %v1880
      %v1963 = vadd.f32 %v1690, %v1882
      %v1964 = vadd.f32 %v1691, %v1884
      %v1965 = vadd.f32 %v1692, %v1886
      %v1966 = vadd.f32 %v1693, %v1888
      %v1967 = vadd.f32 %v1694, %v1890
      %v1968 = vadd.f32 %v1695, %v1892
      %v1969 = vadd.f32 %v1696, %v1894
      %v1970 = vadd.f32 %v1697, %v1896
      %v1971 = vadd.f32 %v1698, %v1898
      %v1972 = vadd.f32 %v1699, %v1900
      %v1973 = vadd.f32 %v1700, %v1902
      %v1974 = vadd.f32 %v1701, %v1904
      %v1975 = vadd.f32 %v1702, %v1906
      %v1976 = vadd.f32 %v1703, %v1908
      %v1977 = vadd.f32 %v1704, %v1910
      %v1978 = vadd.f32 %v1705, %v1912
      %v1979 = vadd.f32 %v1706, %v1914
      %v1980 = vadd.f32 %v1707, %v1916
      %s1981 = scalar_lea.vmem %s3, 72
      %v1982 = vld [vmem:[%s1981] sm:$0x1]
      %v1983 = vld [vmem:[%s1981 + $0x1] sm:$0x1]
      %v1984 = vld [vmem:[%s1981 + $0x2] sm:$0x1]
      %v1985 = vld [vmem:[%s1981 + $0x3] sm:$0x1]
      %v1986 = vld [vmem:[%s1981 + $0x4] sm:$0x1]
      %v1987 = vld [vmem:[%s1981 + $0x5] sm:$0x1]
      %v1988 = vld [vmem:[%s1981 + $0x6] sm:$0x1]
      %v1989 = vld [vmem:[%s1981 + $0x7] sm:$0x1]
      %v1998 = vlaneseq
      %v1999 = vshrl.u32 %v1998, 7
      %v2000 = vsub.s32 0, %v1999
      %v2001 = vrot.slane %v1982, %v2000
      %v2002 = vlaneseq
      %v2003 = vshrl.u32 %v2002, 7
      %v2004 = vsub.s32 0, %v2003
      %v2005 = vrot.slane %v1983, %v2004
      %v2006 = vlaneseq
      %v2007 = vshrl.u32 %v2006, 7
      %v2008 = vsub.s32 0, %v2007
      %v2009 = vrot.slane %v1984, %v2008
      %v2010 = vlaneseq
      %v2011 = vshrl.u32 %v2010, 7
      %v2012 = vsub.s32 0, %v2011
      %v2013 = vrot.slane %v1985, %v2012
      %v2014 = vlaneseq
      %v2015 = vshrl.u32 %v2014, 7
      %v2016 = vsub.s32 0, %v2015
      %v2017 = vrot.slane %v1986, %v2016
      %v2018 = vlaneseq
      %v2019 = vshrl.u32 %v2018, 7
      %v2020 = vsub.s32 0, %v2019
      %v2021 = vrot.slane %v1987, %v2020
      %v2022 = vlaneseq
      %v2023 = vshrl.u32 %v2022, 7
      %v2024 = vsub.s32 0, %v2023
      %v2025 = vrot.slane %v1988, %v2024
      %v2026 = vlaneseq
      %v2027 = vshrl.u32 %v2026, 7
      %v2028 = vsub.s32 0, %v2027
      %v2029 = vrot.slane %v1989, %v2028
      %2030 = vset.pattern.permute.xlu0 0
      %2031 = vperm.xlu0 %2030, %v2001
      %v2032 = vpop.permute.xlu0 %2031
      %2034 = vset.pattern.permute.xlu0 0
      %2035 = vperm.xlu0 %2034, %v2005
      %v2036 = vpop.permute.xlu0 %2035
      %2038 = vset.pattern.permute.xlu0 0
      %2039 = vperm.xlu0 %2038, %v2009
      %v2040 = vpop.permute.xlu0 %2039
      %2042 = vset.pattern.permute.xlu0 0
      %2043 = vperm.xlu0 %2042, %v2013
      %v2044 = vpop.permute.xlu0 %2043
      %2046 = vset.pattern.permute.xlu0 0
      %2047 = vperm.xlu0 %2046, %v2017
      %v2048 = vpop.permute.xlu0 %2047
      %2050 = vset.pattern.permute.xlu0 0
      %2051 = vperm.xlu0 %2050, %v2021
      %v2052 = vpop.permute.xlu0 %2051
      %2054 = vset.pattern.permute.xlu0 0
      %2055 = vperm.xlu0 %2054, %v2025
      %v2056 = vpop.permute.xlu0 %2055
      %2058 = vset.pattern.permute.xlu0 0
      %2059 = vperm.xlu0 %2058, %v2029
      %v2060 = vpop.permute.xlu0 %2059
      %v2062 = vmul.f32 %v2032, %v1545
      %v2063 = vmul.f32 %v2032, %v1550
      %v2064 = vmul.f32 %v2032, %v1555
      %v2065 = vmul.f32 %v2032, %v1560
      %v2066 = vmul.f32 %v2036, %v1545
      %v2067 = vmul.f32 %v2036, %v1550
      %v2068 = vmul.f32 %v2036, %v1555
      %v2069 = vmul.f32 %v2036, %v1560
      %v2070 = vmul.f32 %v2040, %v1545
      %v2071 = vmul.f32 %v2040, %v1550
      %v2072 = vmul.f32 %v2040, %v1555
      %v2073 = vmul.f32 %v2040, %v1560
      %v2074 = vmul.f32 %v2044, %v1545
      %v2075 = vmul.f32 %v2044, %v1550
      %v2076 = vmul.f32 %v2044, %v1555
      %v2077 = vmul.f32 %v2044, %v1560
      %v2078 = vmul.f32 %v2048, %v1545
      %v2079 = vmul.f32 %v2048, %v1550
      %v2080 = vmul.f32 %v2048, %v1555
      %v2081 = vmul.f32 %v2048, %v1560
      %v2082 = vmul.f32 %v2052, %v1545
      %v2083 = vmul.f32 %v2052, %v1550
      %v2084 = vmul.f32 %v2052, %v1555
      %v2085 = vmul.f32 %v2052, %v1560
      %v2086 = vmul.f32 %v2056, %v1545
      %v2087 = vmul.f32 %v2056, %v1550
      %v2088 = vmul.f32 %v2056, %v1555
      %v2089 = vmul.f32 %v2056, %v1560
      %v2090 = vmul.f32 %v2060, %v1545
      %v2091 = vmul.f32 %v2060, %v1550
      %v2092 = vmul.f32 %v2060, %v1555
      %v2093 = vmul.f32 %v2060, %v1560
      %v2126 = vrot.slane %v2062, 1
      %v2127 = vrot.slane %v2063, 1
      %v2128 = vsel %vm1028, %v2126, %v2127
      %v2129 = vrot.slane %v2064, 1
      %v2130 = vsel %vm1028, %v2127, %v2129
      %v2131 = vrot.slane %v2065, 1
      %v2132 = vsel %vm1028, %v2129, %v2131
      %v2133 = vrot.slane %v2066, 1
      %v2134 = vrot.slane %v2067, 1
      %v2135 = vsel %vm1028, %v2133, %v2134
      %v2136 = vrot.slane %v2068, 1
      %v2137 = vsel %vm1028, %v2134, %v2136
      %v2138 = vrot.slane %v2069, 1
      %v2139 = vsel %vm1028, %v2136, %v2138
      %v2140 = vrot.slane %v2070, 1
      %v2141 = vrot.slane %v2071, 1
      %v2142 = vsel %vm1028, %v2140, %v2141
      %v2143 = vrot.slane %v2072, 1
      %v2144 = vsel %vm1028, %v2141, %v2143
      %v2145 = vrot.slane %v2073, 1
      %v2146 = vsel %vm1028, %v2143, %v2145
      %v2147 = vrot.slane %v2074, 1
      %v2148 = vrot.slane %v2075, 1
      %v2149 = vsel %vm1028, %v2147, %v2148
      %v2150 = vrot.slane %v2076, 1
      %v2151 = vsel %vm1028, %v2148, %v2150
      %v2152 = vrot.slane %v2077, 1
      %v2153 = vsel %vm1028, %v2150, %v2152
      %v2154 = vrot.slane %v2078, 1
      %v2155 = vrot.slane %v2079, 1
      %v2156 = vsel %vm1028, %v2154, %v2155
      %v2157 = vrot.slane %v2080, 1
      %v2158 = vsel %vm1028, %v2155, %v2157
      %v2159 = vrot.slane %v2081, 1
      %v2160 = vsel %vm1028, %v2157, %v2159
      %v2161 = vrot.slane %v2082, 1
      %v2162 = vrot.slane %v2083, 1
      %v2163 = vsel %vm1028, %v2161, %v2162
      %v2164 = vrot.slane %v2084, 1
      %v2165 = vsel %vm1028, %v2162, %v2164
      %v2166 = vrot.slane %v2085, 1
      %v2167 = vsel %vm1028, %v2164, %v2166
      %v2168 = vrot.slane %v2086, 1
      %v2169 = vrot.slane %v2087, 1
      %v2170 = vsel %vm1028, %v2168, %v2169
      %v2171 = vrot.slane %v2088, 1
      %v2172 = vsel %vm1028, %v2169, %v2171
      %v2173 = vrot.slane %v2089, 1
      %v2174 = vsel %vm1028, %v2171, %v2173
      %v2175 = vrot.slane %v2090, 1
      %v2176 = vrot.slane %v2091, 1
      %v2177 = vsel %vm1028, %v2175, %v2176
      %v2178 = vrot.slane %v2092, 1
      %v2179 = vsel %vm1028, %v2176, %v2178
      %v2180 = vrot.slane %v2093, 1
      %v2181 = vsel %vm1028, %v2178, %v2180
      %v2214 = vadd.f32 %v1949, %v2128
      %v2215 = vadd.f32 %v1950, %v2130
      %v2216 = vadd.f32 %v1951, %v2132
      %v2217 = vadd.f32 %v1952, %v2131
      %v2218 = vadd.f32 %v1953, %v2135
      %v2219 = vadd.f32 %v1954, %v2137
      %v2220 = vadd.f32 %v1955, %v2139
      %v2221 = vadd.f32 %v1956, %v2138
      %v2222 = vadd.f32 %v1957, %v2142
      %v2223 = vadd.f32 %v1958, %v2144
      %v2224 = vadd.f32 %v1959, %v2146
      %v2225 = vadd.f32 %v1960, %v2145
      %v2226 = vadd.f32 %v1961, %v2149
      %v2227 = vadd.f32 %v1962, %v2151
      %v2228 = vadd.f32 %v1963, %v2153
      %v2229 = vadd.f32 %v1964, %v2152
      %v2230 = vadd.f32 %v1965, %v2156
      %v2231 = vadd.f32 %v1966, %v2158
      %v2232 = vadd.f32 %v1967, %v2160
      %v2233 = vadd.f32 %v1968, %v2159
      %v2234 = vadd.f32 %v1969, %v2163
      %v2235 = vadd.f32 %v1970, %v2165
      %v2236 = vadd.f32 %v1971, %v2167
      %v2237 = vadd.f32 %v1972, %v2166
      %v2238 = vadd.f32 %v1973, %v2170
      %v2239 = vadd.f32 %v1974, %v2172
      %v2240 = vadd.f32 %v1975, %v2174
      %v2241 = vadd.f32 %v1976, %v2173
      %v2242 = vadd.f32 %v1977, %v2177
      %v2243 = vadd.f32 %v1978, %v2179
      %v2244 = vadd.f32 %v1979, %v2181
      %v2245 = vadd.f32 %v1980, %v2180
      %s2246 = scalar_lea.vmem %s3, 104
      %v2247 = vld [vmem:[%s2246] sm:$0x1]
      %v2248 = vld [vmem:[%s2246 + $0x1] sm:$0x1]
      %v2249 = vld [vmem:[%s2246 + $0x2] sm:$0x1]
      %v2250 = vld [vmem:[%s2246 + $0x3] sm:$0x1]
      %v2251 = vld [vmem:[%s2246 + $0x4] sm:$0x1]
      %v2252 = vld [vmem:[%s2246 + $0x5] sm:$0x1]
      %v2253 = vld [vmem:[%s2246 + $0x6] sm:$0x1]
      %v2254 = vld [vmem:[%s2246 + $0x7] sm:$0x1]
      %v2263 = vlaneseq
      %v2264 = vshrl.u32 %v2263, 7
      %v2265 = vsub.s32 0, %v2264
      %v2266 = vrot.slane %v2247, %v2265
      %v2267 = vlaneseq
      %v2268 = vshrl.u32 %v2267, 7
      %v2269 = vsub.s32 0, %v2268
      %v2270 = vrot.slane %v2248, %v2269
      %v2271 = vlaneseq
      %v2272 = vshrl.u32 %v2271, 7
      %v2273 = vsub.s32 0, %v2272
      %v2274 = vrot.slane %v2249, %v2273
      %v2275 = vlaneseq
      %v2276 = vshrl.u32 %v2275, 7
      %v2277 = vsub.s32 0, %v2276
      %v2278 = vrot.slane %v2250, %v2277
      %v2279 = vlaneseq
      %v2280 = vshrl.u32 %v2279, 7
      %v2281 = vsub.s32 0, %v2280
      %v2282 = vrot.slane %v2251, %v2281
      %v2283 = vlaneseq
      %v2284 = vshrl.u32 %v2283, 7
      %v2285 = vsub.s32 0, %v2284
      %v2286 = vrot.slane %v2252, %v2285
      %v2287 = vlaneseq
      %v2288 = vshrl.u32 %v2287, 7
      %v2289 = vsub.s32 0, %v2288
      %v2290 = vrot.slane %v2253, %v2289
      %v2291 = vlaneseq
      %v2292 = vshrl.u32 %v2291, 7
      %v2293 = vsub.s32 0, %v2292
      %v2294 = vrot.slane %v2254, %v2293
      %2295 = vset.pattern.permute.xlu0 0
      %2296 = vperm.xlu0 %2295, %v2266
      %v2297 = vpop.permute.xlu0 %2296
      %2299 = vset.pattern.permute.xlu0 0
      %2300 = vperm.xlu0 %2299, %v2270
      %v2301 = vpop.permute.xlu0 %2300
      %2303 = vset.pattern.permute.xlu0 0
      %2304 = vperm.xlu0 %2303, %v2274
      %v2305 = vpop.permute.xlu0 %2304
      %2307 = vset.pattern.permute.xlu0 0
      %2308 = vperm.xlu0 %2307, %v2278
      %v2309 = vpop.permute.xlu0 %2308
      %2311 = vset.pattern.permute.xlu0 0
      %2312 = vperm.xlu0 %2311, %v2282
      %v2313 = vpop.permute.xlu0 %2312
      %2315 = vset.pattern.permute.xlu0 0
      %2316 = vperm.xlu0 %2315, %v2286
      %v2317 = vpop.permute.xlu0 %2316
      %2319 = vset.pattern.permute.xlu0 0
      %2320 = vperm.xlu0 %2319, %v2290
      %v2321 = vpop.permute.xlu0 %2320
      %2323 = vset.pattern.permute.xlu0 0
      %2324 = vperm.xlu0 %2323, %v2294
      %v2325 = vpop.permute.xlu0 %2324
      %v2327 = vmul.f32 %v2297, %v1545
      %v2328 = vmul.f32 %v2297, %v1550
      %v2329 = vmul.f32 %v2297, %v1555
      %v2330 = vmul.f32 %v2297, %v1560
      %v2331 = vmul.f32 %v2301, %v1545
      %v2332 = vmul.f32 %v2301, %v1550
      %v2333 = vmul.f32 %v2301, %v1555
      %v2334 = vmul.f32 %v2301, %v1560
      %v2335 = vmul.f32 %v2305, %v1545
      %v2336 = vmul.f32 %v2305, %v1550
      %v2337 = vmul.f32 %v2305, %v1555
      %v2338 = vmul.f32 %v2305, %v1560
      %v2339 = vmul.f32 %v2309, %v1545
      %v2340 = vmul.f32 %v2309, %v1550
      %v2341 = vmul.f32 %v2309, %v1555
      %v2342 = vmul.f32 %v2309, %v1560
      %v2343 = vmul.f32 %v2313, %v1545
      %v2344 = vmul.f32 %v2313, %v1550
      %v2345 = vmul.f32 %v2313, %v1555
      %v2346 = vmul.f32 %v2313, %v1560
      %v2347 = vmul.f32 %v2317, %v1545
      %v2348 = vmul.f32 %v2317, %v1550
      %v2349 = vmul.f32 %v2317, %v1555
      %v2350 = vmul.f32 %v2317, %v1560
      %v2351 = vmul.f32 %v2321, %v1545
      %v2352 = vmul.f32 %v2321, %v1550
      %v2353 = vmul.f32 %v2321, %v1555
      %v2354 = vmul.f32 %v2321, %v1560
      %v2355 = vmul.f32 %v2325, %v1545
      %v2356 = vmul.f32 %v2325, %v1550
      %v2357 = vmul.f32 %v2325, %v1555
      %v2358 = vmul.f32 %v2325, %v1560
      %v2391 = vrot.slane %v2327, 1
      %v2392 = vrot.slane %v2328, 1
      %v2393 = vsel %vm1028, %v2391, %v2392
      %v2394 = vrot.slane %v2329, 1
      %v2395 = vsel %vm1028, %v2392, %v2394
      %v2396 = vrot.slane %v2330, 1
      %v2397 = vsel %vm1028, %v2394, %v2396
      %v2398 = vrot.slane %v2331, 1
      %v2399 = vrot.slane %v2332, 1
      %v2400 = vsel %vm1028, %v2398, %v2399
      %v2401 = vrot.slane %v2333, 1
      %v2402 = vsel %vm1028, %v2399, %v2401
      %v2403 = vrot.slane %v2334, 1
      %v2404 = vsel %vm1028, %v2401, %v2403
      %v2405 = vrot.slane %v2335, 1
      %v2406 = vrot.slane %v2336, 1
      %v2407 = vsel %vm1028, %v2405, %v2406
      %v2408 = vrot.slane %v2337, 1
      %v2409 = vsel %vm1028, %v2406, %v2408
      %v2410 = vrot.slane %v2338, 1
      %v2411 = vsel %vm1028, %v2408, %v2410
      %v2412 = vrot.slane %v2339, 1
      %v2413 = vrot.slane %v2340, 1
      %v2414 = vsel %vm1028, %v2412, %v2413
      %v2415 = vrot.slane %v2341, 1
      %v2416 = vsel %vm1028, %v2413, %v2415
      %v2417 = vrot.slane %v2342, 1
      %v2418 = vsel %vm1028, %v2415, %v2417
      %v2419 = vrot.slane %v2343, 1
      %v2420 = vrot.slane %v2344, 1
      %v2421 = vsel %vm1028, %v2419, %v2420
      %v2422 = vrot.slane %v2345, 1
      %v2423 = vsel %vm1028, %v2420, %v2422
      %v2424 = vrot.slane %v2346, 1
      %v2425 = vsel %vm1028, %v2422, %v2424
      %v2426 = vrot.slane %v2347, 1
      %v2427 = vrot.slane %v2348, 1
      %v2428 = vsel %vm1028, %v2426, %v2427
      %v2429 = vrot.slane %v2349, 1
      %v2430 = vsel %vm1028, %v2427, %v2429
      %v2431 = vrot.slane %v2350, 1
      %v2432 = vsel %vm1028, %v2429, %v2431
      %v2433 = vrot.slane %v2351, 1
      %v2434 = vrot.slane %v2352, 1
      %v2435 = vsel %vm1028, %v2433, %v2434
      %v2436 = vrot.slane %v2353, 1
      %v2437 = vsel %vm1028, %v2434, %v2436
      %v2438 = vrot.slane %v2354, 1
      %v2439 = vsel %vm1028, %v2436, %v2438
      %v2440 = vrot.slane %v2355, 1
      %v2441 = vrot.slane %v2356, 1
      %v2442 = vsel %vm1028, %v2440, %v2441
      %v2443 = vrot.slane %v2357, 1
      %v2444 = vsel %vm1028, %v2441, %v2443
      %v2445 = vrot.slane %v2358, 1
      %v2446 = vsel %vm1028, %v2443, %v2445
      %2447 = vrot.lane.b32.xlu0 %v2393, 127
      %v2448 = vpop.permute.xlu0 %2447
      %2449 = vrot.lane.b32.xlu0 %v2395, 127
      %v2450 = vpop.permute.xlu0 %2449
      %2451 = vrot.lane.b32.xlu0 %v2397, 127
      %v2452 = vpop.permute.xlu0 %2451
      %2453 = vrot.lane.b32.xlu0 %v2396, 127
      %v2454 = vpop.permute.xlu0 %2453
      %2455 = vrot.lane.b32.xlu0 %v2400, 127
      %v2456 = vpop.permute.xlu0 %2455
      %2457 = vrot.lane.b32.xlu0 %v2402, 127
      %v2458 = vpop.permute.xlu0 %2457
      %2459 = vrot.lane.b32.xlu0 %v2404, 127
      %v2460 = vpop.permute.xlu0 %2459
      %2461 = vrot.lane.b32.xlu0 %v2403, 127
      %v2462 = vpop.permute.xlu0 %2461
      %2463 = vrot.lane.b32.xlu0 %v2407, 127
      %v2464 = vpop.permute.xlu0 %2463
      %2465 = vrot.lane.b32.xlu0 %v2409, 127
      %v2466 = vpop.permute.xlu0 %2465
      %2467 = vrot.lane.b32.xlu0 %v2411, 127
      %v2468 = vpop.permute.xlu0 %2467
      %2469 = vrot.lane.b32.xlu0 %v2410, 127
      %v2470 = vpop.permute.xlu0 %2469
      %2471 = vrot.lane.b32.xlu0 %v2414, 127
      %v2472 = vpop.permute.xlu0 %2471
      %2473 = vrot.lane.b32.xlu0 %v2416, 127
      %v2474 = vpop.permute.xlu0 %2473
      %2475 = vrot.lane.b32.xlu0 %v2418, 127
      %v2476 = vpop.permute.xlu0 %2475
      %2477 = vrot.lane.b32.xlu0 %v2417, 127
      %v2478 = vpop.permute.xlu0 %2477
      %2479 = vrot.lane.b32.xlu0 %v2421, 127
      %v2480 = vpop.permute.xlu0 %2479
      %2481 = vrot.lane.b32.xlu0 %v2423, 127
      %v2482 = vpop.permute.xlu0 %2481
      %2483 = vrot.lane.b32.xlu0 %v2425, 127
      %v2484 = vpop.permute.xlu0 %2483
      %2485 = vrot.lane.b32.xlu0 %v2424, 127
      %v2486 = vpop.permute.xlu0 %2485
      %2487 = vrot.lane.b32.xlu0 %v2428, 127
      %v2488 = vpop.permute.xlu0 %2487
      %2489 = vrot.lane.b32.xlu0 %v2430, 127
      %v2490 = vpop.permute.xlu0 %2489
      %2491 = vrot.lane.b32.xlu0 %v2432, 127
      %v2492 = vpop.permute.xlu0 %2491
      %2493 = vrot.lane.b32.xlu0 %v2431, 127
      %v2494 = vpop.permute.xlu0 %2493
      %2495 = vrot.lane.b32.xlu0 %v2435, 127
      %v2496 = vpop.permute.xlu0 %2495
      %2497 = vrot.lane.b32.xlu0 %v2437, 127
      %v2498 = vpop.permute.xlu0 %2497
      %2499 = vrot.lane.b32.xlu0 %v2439, 127
      %v2500 = vpop.permute.xlu0 %2499
      %2501 = vrot.lane.b32.xlu0 %v2438, 127
      %v2502 = vpop.permute.xlu0 %2501
      %2503 = vrot.lane.b32.xlu0 %v2442, 127
      %v2504 = vpop.permute.xlu0 %2503
      %2505 = vrot.lane.b32.xlu0 %v2444, 127
      %v2506 = vpop.permute.xlu0 %2505
      %2507 = vrot.lane.b32.xlu0 %v2446, 127
      %v2508 = vpop.permute.xlu0 %2507
      %2509 = vrot.lane.b32.xlu0 %v2445, 127
      %v2510 = vpop.permute.xlu0 %2509
      %v2543 = vadd.f32 %v2214, %v2448
      %v2544 = vadd.f32 %v2215, %v2450
      %v2545 = vadd.f32 %v2216, %v2452
      %v2546 = vadd.f32 %v2217, %v2454
      %v2547 = vadd.f32 %v2218, %v2456
      %v2548 = vadd.f32 %v2219, %v2458
      %v2549 = vadd.f32 %v2220, %v2460
      %v2550 = vadd.f32 %v2221, %v2462
      %v2551 = vadd.f32 %v2222, %v2464
      %v2552 = vadd.f32 %v2223, %v2466
      %v2553 = vadd.f32 %v2224, %v2468
      %v2554 = vadd.f32 %v2225, %v2470
      %v2555 = vadd.f32 %v2226, %v2472
      %v2556 = vadd.f32 %v2227, %v2474
      %v2557 = vadd.f32 %v2228, %v2476
      %v2558 = vadd.f32 %v2229, %v2478
      %v2559 = vadd.f32 %v2230, %v2480
      %v2560 = vadd.f32 %v2231, %v2482
      %v2561 = vadd.f32 %v2232, %v2484
      %v2562 = vadd.f32 %v2233, %v2486
      %v2563 = vadd.f32 %v2234, %v2488
      %v2564 = vadd.f32 %v2235, %v2490
      %v2565 = vadd.f32 %v2236, %v2492
      %v2566 = vadd.f32 %v2237, %v2494
      %v2567 = vadd.f32 %v2238, %v2496
      %v2568 = vadd.f32 %v2239, %v2498
      %v2569 = vadd.f32 %v2240, %v2500
      %v2570 = vadd.f32 %v2241, %v2502
      %v2571 = vadd.f32 %v2242, %v2504
      %v2572 = vadd.f32 %v2243, %v2506
      %v2573 = vadd.f32 %v2244, %v2508
      %v2574 = vadd.f32 %v2245, %v2510
      %2575 = vmatprep.subr.mxu0 0.0
      %2576 = vmatpush1.msra.mxu0 %v351
      %2577 = vmatprep.subr.mxu0 0.0
      %2578 = vmatpush1.msra.mxu0 %v356
      %2579 = vmatprep.subr.mxu0 0.0
      %2580 = vmatpush1.msra.mxu0 0.0
      %2581 = vmatprep.subr.mxu0 0.0
      %2582 = vmatpush1.msra.mxu0 0.0
      %2583 = vmatprep.subr.mxu0 0.0
      %2584 = vmatpush1.msra.mxu0 0.0
      %2585 = vmatprep.subr.mxu0 0.0
      %2586 = vmatpush1.msra.mxu0 0.0
      %2587 = vmatprep.subr.mxu0 0.0
      %2588 = vmatpush1.msra.mxu0 0.0
      %2589 = vmatprep.subr.mxu0 0.0
      %2590 = vmatpush1.msra.mxu0 0.0
      %2591 = vmatprep.subr.mxu0 0.0
      %2592 = vmatpush1.msra.mxu0 0.0
      %2593 = vmatprep.subr.mxu0 0.0
      %2594 = vmatpush1.msra.mxu0 0.0
      %2595 = vmatprep.subr.mxu0 0.0
      %2596 = vmatpush1.msra.mxu0 0.0
      %2597 = vmatprep.subr.mxu0 0.0
      %2598 = vmatpush1.msra.mxu0 0.0
      %2599 = vmatprep.subr.mxu0 0.0
      %2600 = vmatpush1.msra.mxu0 0.0
      %2601 = vmatprep.subr.mxu0 0.0
      %2602 = vmatpush1.msra.mxu0 0.0
      %2603 = vmatprep.subr.mxu0 0.0
      %2604 = vmatpush1.msra.mxu0 0.0
      %2605 = vmatprep.subr.mxu0 0.0
      %2606 = vmatpush1.msra.mxu0 0.0
      %2607 = vmatprep.subr.mxu0 0.0
      %2608 = vmatpush1.msra.mxu0 0.0
      %2609 = vmatprep.subr.mxu0 0.0
      %2610 = vmatpush1.msra.mxu0 0.0
      %2611 = vmatprep.subr.mxu0 0.0
      %2612 = vmatpush1.msra.mxu0 0.0
      %2613 = vmatprep.subr.mxu0 0.0
      %2614 = vmatpush1.msra.mxu0 0.0
      %2615 = vmatprep.subr.mxu0 0.0
      %2616 = vmatpush1.msra.mxu0 0.0
      %2617 = vmatprep.subr.mxu0 0.0
      %2618 = vmatpush1.msra.mxu0 0.0
      %2619 = vmatprep.subr.mxu0 0.0
      %2620 = vmatpush1.msra.mxu0 0.0
      %2621 = vmatprep.subr.mxu0 0.0
      %2622 = vmatpush1.msra.mxu0 0.0
      %2623 = vmatprep.subr.mxu0 0.0
      %2624 = vmatpush1.msra.mxu0 0.0
      %2625 = vmatprep.subr.mxu0 0.0
      %2626 = vmatpush1.msra.mxu0 0.0
      %2627 = vmatprep.subr.mxu0 0.0
      %2628 = vmatpush1.msra.mxu0 0.0
      %2629 = vmatprep.subr.mxu0 0.0
      %2630 = vmatpush1.msra.mxu0 0.0
      %2631 = vmatprep.subr.mxu0 0.0
      %2632 = vmatpush1.msra.mxu0 0.0
      %2633 = vmatprep.subr.mxu0 0.0
      %2634 = vmatpush1.msra.mxu0 0.0
      %2635 = vmatprep.subr.mxu0 0.0
      %2636 = vmatpush1.msra.mxu0 0.0
      %2637 = vmatprep.subr.mxu0 0.0
      %2638 = vmatpush1.msra.mxu0 0.0
      %2639 = vmatprep.mubr.f32.mxu0 0.0
      %2640 = vmatmul.mubr.f32.gmra.mrb[0].mxu0 %v370
      %v2641 = vpop.f32.mrb[0].mxu0
      %v2642 = vadd.f32 0.0, %v2641
      %v2643 = vpop.f32.mrb[0].mxu0
      %2644 = vmatprep.mubr.f32.mxu0 0.0
      %2645 = vmatmul.mubr.f32.gmra.mrb[0].mxu0 %v373
      %v2646 = vpop.f32.mrb[0].mxu0
      %v2647 = vadd.f32 0.0, %v2646
      %v2648 = vpop.f32.mrb[0].mxu0
      %2649 = vmatprep.mubr.f32.mxu0 0.0
      %2650 = vmatmul.mubr.f32.gmra.mrb[0].mxu0 %v376
      %v2651 = vpop.f32.mrb[0].mxu0
      %v2652 = vadd.f32 0.0, %v2651
      %v2653 = vpop.f32.mrb[0].mxu0
      %2654 = vmatprep.mubr.f32.mxu0 0.0
      %2655 = vmatmul.mubr.f32.gmra.mrb[0].mxu0 %v379
      %v2656 = vpop.f32.mrb[0].mxu0
      %v2657 = vadd.f32 0.0, %v2656
      %v2658 = vpop.f32.mrb[0].mxu0
      %2659 = vdwg.mxu0
      %s2660 = scalar_lea.vmem %s3, 16
      %v2661 = vld [vmem:[%s2660] sm:$0x1]
      %v2662 = vld [vmem:[%s2660 + $0x1] sm:$0x1]
      %v2663 = vld [vmem:[%s2660 + $0x2] sm:$0x1]
      %v2664 = vld [vmem:[%s2660 + $0x3] sm:$0x1]
      %v2665 = vld [vmem:[%s2660 + $0x4] sm:$0x1]
      %v2666 = vld [vmem:[%s2660 + $0x5] sm:$0x1]
      %v2667 = vld [vmem:[%s2660 + $0x6] sm:$0x1]
      %v2668 = vld [vmem:[%s2660 + $0x7] sm:$0x1]
      %v2677 = vlaneseq
      %v2678 = vshrl.u32 %v2677, 7
      %v2679 = vsub.s32 0, %v2678
      %v2680 = vrot.slane %v2661, %v2679
      %v2681 = vlaneseq
      %v2682 = vshrl.u32 %v2681, 7
      %v2683 = vsub.s32 0, %v2682
      %v2684 = vrot.slane %v2662, %v2683
      %v2685 = vlaneseq
      %v2686 = vshrl.u32 %v2685, 7
      %v2687 = vsub.s32 0, %v2686
      %v2688 = vrot.slane %v2663, %v2687
      %v2689 = vlaneseq
      %v2690 = vshrl.u32 %v2689, 7
      %v2691 = vsub.s32 0, %v2690
      %v2692 = vrot.slane %v2664, %v2691
      %v2693 = vlaneseq
      %v2694 = vshrl.u32 %v2693, 7
      %v2695 = vsub.s32 0, %v2694
      %v2696 = vrot.slane %v2665, %v2695
      %v2697 = vlaneseq
      %v2698 = vshrl.u32 %v2697, 7
      %v2699 = vsub.s32 0, %v2698
      %v2700 = vrot.slane %v2666, %v2699
      %v2701 = vlaneseq
      %v2702 = vshrl.u32 %v2701, 7
      %v2703 = vsub.s32 0, %v2702
      %v2704 = vrot.slane %v2667, %v2703
      %v2705 = vlaneseq
      %v2706 = vshrl.u32 %v2705, 7
      %v2707 = vsub.s32 0, %v2706
      %v2708 = vrot.slane %v2668, %v2707
      %2709 = vset.pattern.permute.xlu0 0
      %2710 = vperm.xlu0 %2709, %v2680
      %v2711 = vpop.permute.xlu0 %2710
      %2713 = vset.pattern.permute.xlu0 0
      %2714 = vperm.xlu0 %2713, %v2684
      %v2715 = vpop.permute.xlu0 %2714
      %2717 = vset.pattern.permute.xlu0 0
      %2718 = vperm.xlu0 %2717, %v2688
      %v2719 = vpop.permute.xlu0 %2718
      %2721 = vset.pattern.permute.xlu0 0
      %2722 = vperm.xlu0 %2721, %v2692
      %v2723 = vpop.permute.xlu0 %2722
      %2725 = vset.pattern.permute.xlu0 0
      %2726 = vperm.xlu0 %2725, %v2696
      %v2727 = vpop.permute.xlu0 %2726
      %2729 = vset.pattern.permute.xlu0 0
      %2730 = vperm.xlu0 %2729, %v2700
      %v2731 = vpop.permute.xlu0 %2730
      %2733 = vset.pattern.permute.xlu0 0
      %2734 = vperm.xlu0 %2733, %v2704
      %v2735 = vpop.permute.xlu0 %2734
      %2737 = vset.pattern.permute.xlu0 0
      %2738 = vperm.xlu0 %2737, %v2708
      %v2739 = vpop.permute.xlu0 %2738
      %v2741 = vmul.f32 %v2711, %v2642
      %v2742 = vmul.f32 %v2711, %v2647
      %v2743 = vmul.f32 %v2711, %v2652
      %v2744 = vmul.f32 %v2711, %v2657
      %v2745 = vmul.f32 %v2715, %v2642
      %v2746 = vmul.f32 %v2715, %v2647
      %v2747 = vmul.f32 %v2715, %v2652
      %v2748 = vmul.f32 %v2715, %v2657
      %v2749 = vmul.f32 %v2719, %v2642
      %v2750 = vmul.f32 %v2719, %v2647
      %v2751 = vmul.f32 %v2719, %v2652
      %v2752 = vmul.f32 %v2719, %v2657
      %v2753 = vmul.f32 %v2723, %v2642
      %v2754 = vmul.f32 %v2723, %v2647
      %v2755 = vmul.f32 %v2723, %v2652
      %v2756 = vmul.f32 %v2723, %v2657
      %v2757 = vmul.f32 %v2727, %v2642
      %v2758 = vmul.f32 %v2727, %v2647
      %v2759 = vmul.f32 %v2727, %v2652
      %v2760 = vmul.f32 %v2727, %v2657
      %v2761 = vmul.f32 %v2731, %v2642
      %v2762 = vmul.f32 %v2731, %v2647
      %v2763 = vmul.f32 %v2731, %v2652
      %v2764 = vmul.f32 %v2731, %v2657
      %v2765 = vmul.f32 %v2735, %v2642
      %v2766 = vmul.f32 %v2735, %v2647
      %v2767 = vmul.f32 %v2735, %v2652
      %v2768 = vmul.f32 %v2735, %v2657
      %v2769 = vmul.f32 %v2739, %v2642
      %v2770 = vmul.f32 %v2739, %v2647
      %v2771 = vmul.f32 %v2739, %v2652
      %v2772 = vmul.f32 %v2739, %v2657
      %v2773 = vadd.f32 %v2543, %v2741
      %v2774 = vadd.f32 %v2544, %v2742
      %v2775 = vadd.f32 %v2545, %v2743
      %v2776 = vadd.f32 %v2546, %v2744
      %v2777 = vadd.f32 %v2547, %v2745
      %v2778 = vadd.f32 %v2548, %v2746
      %v2779 = vadd.f32 %v2549, %v2747
      %v2780 = vadd.f32 %v2550, %v2748
      %v2781 = vadd.f32 %v2551, %v2749
      %v2782 = vadd.f32 %v2552, %v2750
      %v2783 = vadd.f32 %v2553, %v2751
      %v2784 = vadd.f32 %v2554, %v2752
      %v2785 = vadd.f32 %v2555, %v2753
      %v2786 = vadd.f32 %v2556, %v2754
      %v2787 = vadd.f32 %v2557, %v2755
      %v2788 = vadd.f32 %v2558, %v2756
      %v2789 = vadd.f32 %v2559, %v2757
      %v2790 = vadd.f32 %v2560, %v2758
      %v2791 = vadd.f32 %v2561, %v2759
      %v2792 = vadd.f32 %v2562, %v2760
      %v2793 = vadd.f32 %v2563, %v2761
      %v2794 = vadd.f32 %v2564, %v2762
      %v2795 = vadd.f32 %v2565, %v2763
      %v2796 = vadd.f32 %v2566, %v2764
      %v2797 = vadd.f32 %v2567, %v2765
      %v2798 = vadd.f32 %v2568, %v2766
      %v2799 = vadd.f32 %v2569, %v2767
      %v2800 = vadd.f32 %v2570, %v2768
      %v2801 = vadd.f32 %v2571, %v2769
      %v2802 = vadd.f32 %v2572, %v2770
      %v2803 = vadd.f32 %v2573, %v2771
      %v2804 = vadd.f32 %v2574, %v2772
      %s2805 = scalar_lea.vmem %s3, 48
      %v2806 = vld [vmem:[%s2805] sm:$0x1]
      %v2807 = vld [vmem:[%s2805 + $0x1] sm:$0x1]
      %v2808 = vld [vmem:[%s2805 + $0x2] sm:$0x1]
      %v2809 = vld [vmem:[%s2805 + $0x3] sm:$0x1]
      %v2810 = vld [vmem:[%s2805 + $0x4] sm:$0x1]
      %v2811 = vld [vmem:[%s2805 + $0x5] sm:$0x1]
      %v2812 = vld [vmem:[%s2805 + $0x6] sm:$0x1]
      %v2813 = vld [vmem:[%s2805 + $0x7] sm:$0x1]
      %v2822 = vlaneseq
      %v2823 = vshrl.u32 %v2822, 7
      %v2824 = vsub.s32 0, %v2823
      %v2825 = vrot.slane %v2806, %v2824
      %v2826 = vlaneseq
      %v2827 = vshrl.u32 %v2826, 7
      %v2828 = vsub.s32 0, %v2827
      %v2829 = vrot.slane %v2807, %v2828
      %v2830 = vlaneseq
      %v2831 = vshrl.u32 %v2830, 7
      %v2832 = vsub.s32 0, %v2831
      %v2833 = vrot.slane %v2808, %v2832
      %v2834 = vlaneseq
      %v2835 = vshrl.u32 %v2834, 7
      %v2836 = vsub.s32 0, %v2835
      %v2837 = vrot.slane %v2809, %v2836
      %v2838 = vlaneseq
      %v2839 = vshrl.u32 %v2838, 7
      %v2840 = vsub.s32 0, %v2839
      %v2841 = vrot.slane %v2810, %v2840
      %v2842 = vlaneseq
      %v2843 = vshrl.u32 %v2842, 7
      %v2844 = vsub.s32 0, %v2843
      %v2845 = vrot.slane %v2811, %v2844
      %v2846 = vlaneseq
      %v2847 = vshrl.u32 %v2846, 7
      %v2848 = vsub.s32 0, %v2847
      %v2849 = vrot.slane %v2812, %v2848
      %v2850 = vlaneseq
      %v2851 = vshrl.u32 %v2850, 7
      %v2852 = vsub.s32 0, %v2851
      %v2853 = vrot.slane %v2813, %v2852
      %2854 = vset.pattern.permute.xlu0 0
      %2855 = vperm.xlu0 %2854, %v2825
      %v2856 = vpop.permute.xlu0 %2855
      %2858 = vset.pattern.permute.xlu0 0
      %2859 = vperm.xlu0 %2858, %v2829
      %v2860 = vpop.permute.xlu0 %2859
      %2862 = vset.pattern.permute.xlu0 0
      %2863 = vperm.xlu0 %2862, %v2833
      %v2864 = vpop.permute.xlu0 %2863
      %2866 = vset.pattern.permute.xlu0 0
      %2867 = vperm.xlu0 %2866, %v2837
      %v2868 = vpop.permute.xlu0 %2867
      %2870 = vset.pattern.permute.xlu0 0
      %2871 = vperm.xlu0 %2870, %v2841
      %v2872 = vpop.permute.xlu0 %2871
      %2874 = vset.pattern.permute.xlu0 0
      %2875 = vperm.xlu0 %2874, %v2845
      %v2876 = vpop.permute.xlu0 %2875
      %2878 = vset.pattern.permute.xlu0 0
      %2879 = vperm.xlu0 %2878, %v2849
      %v2880 = vpop.permute.xlu0 %2879
      %2882 = vset.pattern.permute.xlu0 0
      %2883 = vperm.xlu0 %2882, %v2853
      %v2884 = vpop.permute.xlu0 %2883
      %v2886 = vmul.f32 %v2856, %v2642
      %v2887 = vmul.f32 %v2856, %v2647
      %v2888 = vmul.f32 %v2856, %v2652
      %v2889 = vmul.f32 %v2856, %v2657
      %v2890 = vmul.f32 %v2860, %v2642
      %v2891 = vmul.f32 %v2860, %v2647
      %v2892 = vmul.f32 %v2860, %v2652
      %v2893 = vmul.f32 %v2860, %v2657
      %v2894 = vmul.f32 %v2864, %v2642
      %v2895 = vmul.f32 %v2864, %v2647
      %v2896 = vmul.f32 %v2864, %v2652
      %v2897 = vmul.f32 %v2864, %v2657
      %v2898 = vmul.f32 %v2868, %v2642
      %v2899 = vmul.f32 %v2868, %v2647
      %v2900 = vmul.f32 %v2868, %v2652
      %v2901 = vmul.f32 %v2868, %v2657
      %v2902 = vmul.f32 %v2872, %v2642
      %v2903 = vmul.f32 %v2872, %v2647
      %v2904 = vmul.f32 %v2872, %v2652
      %v2905 = vmul.f32 %v2872, %v2657
      %v2906 = vmul.f32 %v2876, %v2642
      %v2907 = vmul.f32 %v2876, %v2647
      %v2908 = vmul.f32 %v2876, %v2652
      %v2909 = vmul.f32 %v2876, %v2657
      %v2910 = vmul.f32 %v2880, %v2642
      %v2911 = vmul.f32 %v2880, %v2647
      %v2912 = vmul.f32 %v2880, %v2652
      %v2913 = vmul.f32 %v2880, %v2657
      %v2914 = vmul.f32 %v2884, %v2642
      %v2915 = vmul.f32 %v2884, %v2647
      %v2916 = vmul.f32 %v2884, %v2652
      %v2917 = vmul.f32 %v2884, %v2657
      %2950 = vrot.lane.b32.xlu0 %v2886, 127
      %v2951 = vpop.permute.xlu0 %2950
      %2952 = vrot.lane.b32.xlu0 %v2887, 127
      %v2953 = vpop.permute.xlu0 %2952
      %2954 = vrot.lane.b32.xlu0 %v2888, 127
      %v2955 = vpop.permute.xlu0 %2954
      %2956 = vrot.lane.b32.xlu0 %v2889, 127
      %v2957 = vpop.permute.xlu0 %2956
      %2958 = vrot.lane.b32.xlu0 %v2890, 127
      %v2959 = vpop.permute.xlu0 %2958
      %2960 = vrot.lane.b32.xlu0 %v2891, 127
      %v2961 = vpop.permute.xlu0 %2960
      %2962 = vrot.lane.b32.xlu0 %v2892, 127
      %v2963 = vpop.permute.xlu0 %2962
      %2964 = vrot.lane.b32.xlu0 %v2893, 127
      %v2965 = vpop.permute.xlu0 %2964
      %2966 = vrot.lane.b32.xlu0 %v2894, 127
      %v2967 = vpop.permute.xlu0 %2966
      %2968 = vrot.lane.b32.xlu0 %v2895, 127
      %v2969 = vpop.permute.xlu0 %2968
      %2970 = vrot.lane.b32.xlu0 %v2896, 127
      %v2971 = vpop.permute.xlu0 %2970
      %2972 = vrot.lane.b32.xlu0 %v2897, 127
      %v2973 = vpop.permute.xlu0 %2972
      %2974 = vrot.lane.b32.xlu0 %v2898, 127
      %v2975 = vpop.permute.xlu0 %2974
      %2976 = vrot.lane.b32.xlu0 %v2899, 127
      %v2977 = vpop.permute.xlu0 %2976
      %2978 = vrot.lane.b32.xlu0 %v2900, 127
      %v2979 = vpop.permute.xlu0 %2978
      %2980 = vrot.lane.b32.xlu0 %v2901, 127
      %v2981 = vpop.permute.xlu0 %2980
      %2982 = vrot.lane.b32.xlu0 %v2902, 127
      %v2983 = vpop.permute.xlu0 %2982
      %2984 = vrot.lane.b32.xlu0 %v2903, 127
      %v2985 = vpop.permute.xlu0 %2984
      %2986 = vrot.lane.b32.xlu0 %v2904, 127
      %v2987 = vpop.permute.xlu0 %2986
      %2988 = vrot.lane.b32.xlu0 %v2905, 127
      %v2989 = vpop.permute.xlu0 %2988
      %2990 = vrot.lane.b32.xlu0 %v2906, 127
      %v2991 = vpop.permute.xlu0 %2990
      %2992 = vrot.lane.b32.xlu0 %v2907, 127
      %v2993 = vpop.permute.xlu0 %2992
      %2994 = vrot.lane.b32.xlu0 %v2908, 127
      %v2995 = vpop.permute.xlu0 %2994
      %2996 = vrot.lane.b32.xlu0 %v2909, 127
      %v2997 = vpop.permute.xlu0 %2996
      %2998 = vrot.lane.b32.xlu0 %v2910, 127
      %v2999 = vpop.permute.xlu0 %2998
      %3000 = vrot.lane.b32.xlu0 %v2911, 127
      %v3001 = vpop.permute.xlu0 %3000
      %3002 = vrot.lane.b32.xlu0 %v2912, 127
      %v3003 = vpop.permute.xlu0 %3002
      %3004 = vrot.lane.b32.xlu0 %v2913, 127
      %v3005 = vpop.permute.xlu0 %3004
      %3006 = vrot.lane.b32.xlu0 %v2914, 127
      %v3007 = vpop.permute.xlu0 %3006
      %3008 = vrot.lane.b32.xlu0 %v2915, 127
      %v3009 = vpop.permute.xlu0 %3008
      %3010 = vrot.lane.b32.xlu0 %v2916, 127
      %v3011 = vpop.permute.xlu0 %3010
      %3012 = vrot.lane.b32.xlu0 %v2917, 127
      %v3013 = vpop.permute.xlu0 %3012
      %v3046 = vadd.f32 %v2773, %v2951
      %v3047 = vadd.f32 %v2774, %v2953
      %v3048 = vadd.f32 %v2775, %v2955
      %v3049 = vadd.f32 %v2776, %v2957
      %v3050 = vadd.f32 %v2777, %v2959
      %v3051 = vadd.f32 %v2778, %v2961
      %v3052 = vadd.f32 %v2779, %v2963
      %v3053 = vadd.f32 %v2780, %v2965
      %v3054 = vadd.f32 %v2781, %v2967
      %v3055 = vadd.f32 %v2782, %v2969
      %v3056 = vadd.f32 %v2783, %v2971
      %v3057 = vadd.f32 %v2784, %v2973
      %v3058 = vadd.f32 %v2785, %v2975
      %v3059 = vadd.f32 %v2786, %v2977
      %v3060 = vadd.f32 %v2787, %v2979
      %v3061 = vadd.f32 %v2788, %v2981
      %v3062 = vadd.f32 %v2789, %v2983
      %v3063 = vadd.f32 %v2790, %v2985
      %v3064 = vadd.f32 %v2791, %v2987
      %v3065 = vadd.f32 %v2792, %v2989
      %v3066 = vadd.f32 %v2793, %v2991
      %v3067 = vadd.f32 %v2794, %v2993
      %v3068 = vadd.f32 %v2795, %v2995
      %v3069 = vadd.f32 %v2796, %v2997
      %v3070 = vadd.f32 %v2797, %v2999
      %v3071 = vadd.f32 %v2798, %v3001
      %v3072 = vadd.f32 %v2799, %v3003
      %v3073 = vadd.f32 %v2800, %v3005
      %v3074 = vadd.f32 %v2801, %v3007
      %v3075 = vadd.f32 %v2802, %v3009
      %v3076 = vadd.f32 %v2803, %v3011
      %v3077 = vadd.f32 %v2804, %v3013
      %s3078 = scalar_lea.vmem %s3, 80
      %v3079 = vld [vmem:[%s3078] sm:$0x1]
      %v3080 = vld [vmem:[%s3078 + $0x1] sm:$0x1]
      %v3081 = vld [vmem:[%s3078 + $0x2] sm:$0x1]
      %v3082 = vld [vmem:[%s3078 + $0x3] sm:$0x1]
      %v3083 = vld [vmem:[%s3078 + $0x4] sm:$0x1]
      %v3084 = vld [vmem:[%s3078 + $0x5] sm:$0x1]
      %v3085 = vld [vmem:[%s3078 + $0x6] sm:$0x1]
      %v3086 = vld [vmem:[%s3078 + $0x7] sm:$0x1]
      %v3095 = vlaneseq
      %v3096 = vshrl.u32 %v3095, 7
      %v3097 = vsub.s32 0, %v3096
      %v3098 = vrot.slane %v3079, %v3097
      %v3099 = vlaneseq
      %v3100 = vshrl.u32 %v3099, 7
      %v3101 = vsub.s32 0, %v3100
      %v3102 = vrot.slane %v3080, %v3101
      %v3103 = vlaneseq
      %v3104 = vshrl.u32 %v3103, 7
      %v3105 = vsub.s32 0, %v3104
      %v3106 = vrot.slane %v3081, %v3105
      %v3107 = vlaneseq
      %v3108 = vshrl.u32 %v3107, 7
      %v3109 = vsub.s32 0, %v3108
      %v3110 = vrot.slane %v3082, %v3109
      %v3111 = vlaneseq
      %v3112 = vshrl.u32 %v3111, 7
      %v3113 = vsub.s32 0, %v3112
      %v3114 = vrot.slane %v3083, %v3113
      %v3115 = vlaneseq
      %v3116 = vshrl.u32 %v3115, 7
      %v3117 = vsub.s32 0, %v3116
      %v3118 = vrot.slane %v3084, %v3117
      %v3119 = vlaneseq
      %v3120 = vshrl.u32 %v3119, 7
      %v3121 = vsub.s32 0, %v3120
      %v3122 = vrot.slane %v3085, %v3121
      %v3123 = vlaneseq
      %v3124 = vshrl.u32 %v3123, 7
      %v3125 = vsub.s32 0, %v3124
      %v3126 = vrot.slane %v3086, %v3125
      %3127 = vset.pattern.permute.xlu0 0
      %3128 = vperm.xlu0 %3127, %v3098
      %v3129 = vpop.permute.xlu0 %3128
      %3131 = vset.pattern.permute.xlu0 0
      %3132 = vperm.xlu0 %3131, %v3102
      %v3133 = vpop.permute.xlu0 %3132
      %3135 = vset.pattern.permute.xlu0 0
      %3136 = vperm.xlu0 %3135, %v3106
      %v3137 = vpop.permute.xlu0 %3136
      %3139 = vset.pattern.permute.xlu0 0
      %3140 = vperm.xlu0 %3139, %v3110
      %v3141 = vpop.permute.xlu0 %3140
      %3143 = vset.pattern.permute.xlu0 0
      %3144 = vperm.xlu0 %3143, %v3114
      %v3145 = vpop.permute.xlu0 %3144
      %3147 = vset.pattern.permute.xlu0 0
      %3148 = vperm.xlu0 %3147, %v3118
      %v3149 = vpop.permute.xlu0 %3148
      %3151 = vset.pattern.permute.xlu0 0
      %3152 = vperm.xlu0 %3151, %v3122
      %v3153 = vpop.permute.xlu0 %3152
      %3155 = vset.pattern.permute.xlu0 0
      %3156 = vperm.xlu0 %3155, %v3126
      %v3157 = vpop.permute.xlu0 %3156
      %v3159 = vmul.f32 %v3129, %v2642
      %v3160 = vmul.f32 %v3129, %v2647
      %v3161 = vmul.f32 %v3129, %v2652
      %v3162 = vmul.f32 %v3129, %v2657
      %v3163 = vmul.f32 %v3133, %v2642
      %v3164 = vmul.f32 %v3133, %v2647
      %v3165 = vmul.f32 %v3133, %v2652
      %v3166 = vmul.f32 %v3133, %v2657
      %v3167 = vmul.f32 %v3137, %v2642
      %v3168 = vmul.f32 %v3137, %v2647
      %v3169 = vmul.f32 %v3137, %v2652
      %v3170 = vmul.f32 %v3137, %v2657
      %v3171 = vmul.f32 %v3141, %v2642
      %v3172 = vmul.f32 %v3141, %v2647
      %v3173 = vmul.f32 %v3141, %v2652
      %v3174 = vmul.f32 %v3141, %v2657
      %v3175 = vmul.f32 %v3145, %v2642
      %v3176 = vmul.f32 %v3145, %v2647
      %v3177 = vmul.f32 %v3145, %v2652
      %v3178 = vmul.f32 %v3145, %v2657
      %v3179 = vmul.f32 %v3149, %v2642
      %v3180 = vmul.f32 %v3149, %v2647
      %v3181 = vmul.f32 %v3149, %v2652
      %v3182 = vmul.f32 %v3149, %v2657
      %v3183 = vmul.f32 %v3153, %v2642
      %v3184 = vmul.f32 %v3153, %v2647
      %v3185 = vmul.f32 %v3153, %v2652
      %v3186 = vmul.f32 %v3153, %v2657
      %v3187 = vmul.f32 %v3157, %v2642
      %v3188 = vmul.f32 %v3157, %v2647
      %v3189 = vmul.f32 %v3157, %v2652
      %v3190 = vmul.f32 %v3157, %v2657
      %v3223 = vrot.slane %v3159, 1
      %v3224 = vrot.slane %v3160, 1
      %v3225 = vsel %vm1028, %v3223, %v3224
      %v3226 = vrot.slane %v3161, 1
      %v3227 = vsel %vm1028, %v3224, %v3226
      %v3228 = vrot.slane %v3162, 1
      %v3229 = vsel %vm1028, %v3226, %v3228
      %v3230 = vrot.slane %v3163, 1
      %v3231 = vrot.slane %v3164, 1
      %v3232 = vsel %vm1028, %v3230, %v3231
      %v3233 = vrot.slane %v3165, 1
      %v3234 = vsel %vm1028, %v3231, %v3233
      %v3235 = vrot.slane %v3166, 1
      %v3236 = vsel %vm1028, %v3233, %v3235
      %v3237 = vrot.slane %v3167, 1
      %v3238 = vrot.slane %v3168, 1
      %v3239 = vsel %vm1028, %v3237, %v3238
      %v3240 = vrot.slane %v3169, 1
      %v3241 = vsel %vm1028, %v3238, %v3240
      %v3242 = vrot.slane %v3170, 1
      %v3243 = vsel %vm1028, %v3240, %v3242
      %v3244 = vrot.slane %v3171, 1
      %v3245 = vrot.slane %v3172, 1
      %v3246 = vsel %vm1028, %v3244, %v3245
      %v3247 = vrot.slane %v3173, 1
      %v3248 = vsel %vm1028, %v3245, %v3247
      %v3249 = vrot.slane %v3174, 1
      %v3250 = vsel %vm1028, %v3247, %v3249
      %v3251 = vrot.slane %v3175, 1
      %v3252 = vrot.slane %v3176, 1
      %v3253 = vsel %vm1028, %v3251, %v3252
      %v3254 = vrot.slane %v3177, 1
      %v3255 = vsel %vm1028, %v3252, %v3254
      %v3256 = vrot.slane %v3178, 1
      %v3257 = vsel %vm1028, %v3254, %v3256
      %v3258 = vrot.slane %v3179, 1
      %v3259 = vrot.slane %v3180, 1
      %v3260 = vsel %vm1028, %v3258, %v3259
      %v3261 = vrot.slane %v3181, 1
      %v3262 = vsel %vm1028, %v3259, %v3261
      %v3263 = vrot.slane %v3182, 1
      %v3264 = vsel %vm1028, %v3261, %v3263
      %v3265 = vrot.slane %v3183, 1
      %v3266 = vrot.slane %v3184, 1
      %v3267 = vsel %vm1028, %v3265, %v3266
      %v3268 = vrot.slane %v3185, 1
      %v3269 = vsel %vm1028, %v3266, %v3268
      %v3270 = vrot.slane %v3186, 1
      %v3271 = vsel %vm1028, %v3268, %v3270
      %v3272 = vrot.slane %v3187, 1
      %v3273 = vrot.slane %v3188, 1
      %v3274 = vsel %vm1028, %v3272, %v3273
      %v3275 = vrot.slane %v3189, 1
      %v3276 = vsel %vm1028, %v3273, %v3275
      %v3277 = vrot.slane %v3190, 1
      %v3278 = vsel %vm1028, %v3275, %v3277
      %v3311 = vadd.f32 %v3046, %v3225
      %v3312 = vadd.f32 %v3047, %v3227
      %v3313 = vadd.f32 %v3048, %v3229
      %v3314 = vadd.f32 %v3049, %v3228
      %v3315 = vadd.f32 %v3050, %v3232
      %v3316 = vadd.f32 %v3051, %v3234
      %v3317 = vadd.f32 %v3052, %v3236
      %v3318 = vadd.f32 %v3053, %v3235
      %v3319 = vadd.f32 %v3054, %v3239
      %v3320 = vadd.f32 %v3055, %v3241
      %v3321 = vadd.f32 %v3056, %v3243
      %v3322 = vadd.f32 %v3057, %v3242
      %v3323 = vadd.f32 %v3058, %v3246
      %v3324 = vadd.f32 %v3059, %v3248
      %v3325 = vadd.f32 %v3060, %v3250
      %v3326 = vadd.f32 %v3061, %v3249
      %v3327 = vadd.f32 %v3062, %v3253
      %v3328 = vadd.f32 %v3063, %v3255
      %v3329 = vadd.f32 %v3064, %v3257
      %v3330 = vadd.f32 %v3065, %v3256
      %v3331 = vadd.f32 %v3066, %v3260
      %v3332 = vadd.f32 %v3067, %v3262
      %v3333 = vadd.f32 %v3068, %v3264
      %v3334 = vadd.f32 %v3069, %v3263
      %v3335 = vadd.f32 %v3070, %v3267
      %v3336 = vadd.f32 %v3071, %v3269
      %v3337 = vadd.f32 %v3072, %v3271
      %v3338 = vadd.f32 %v3073, %v3270
      %v3339 = vadd.f32 %v3074, %v3274
      %v3340 = vadd.f32 %v3075, %v3276
      %v3341 = vadd.f32 %v3076, %v3278
      %v3342 = vadd.f32 %v3077, %v3277
      %s3343 = scalar_lea.vmem %s3, 112
      %v3344 = vld [vmem:[%s3343] sm:$0x1]
      %v3345 = vld [vmem:[%s3343 + $0x1] sm:$0x1]
      %v3346 = vld [vmem:[%s3343 + $0x2] sm:$0x1]
      %v3347 = vld [vmem:[%s3343 + $0x3] sm:$0x1]
      %v3348 = vld [vmem:[%s3343 + $0x4] sm:$0x1]
      %v3349 = vld [vmem:[%s3343 + $0x5] sm:$0x1]
      %v3350 = vld [vmem:[%s3343 + $0x6] sm:$0x1]
      %v3351 = vld [vmem:[%s3343 + $0x7] sm:$0x1]
      %v3360 = vlaneseq
      %v3361 = vshrl.u32 %v3360, 7
      %v3362 = vsub.s32 0, %v3361
      %v3363 = vrot.slane %v3344, %v3362
      %v3364 = vlaneseq
      %v3365 = vshrl.u32 %v3364, 7
      %v3366 = vsub.s32 0, %v3365
      %v3367 = vrot.slane %v3345, %v3366
      %v3368 = vlaneseq
      %v3369 = vshrl.u32 %v3368, 7
      %v3370 = vsub.s32 0, %v3369
      %v3371 = vrot.slane %v3346, %v3370
      %v3372 = vlaneseq
      %v3373 = vshrl.u32 %v3372, 7
      %v3374 = vsub.s32 0, %v3373
      %v3375 = vrot.slane %v3347, %v3374
      %v3376 = vlaneseq
      %v3377 = vshrl.u32 %v3376, 7
      %v3378 = vsub.s32 0, %v3377
      %v3379 = vrot.slane %v3348, %v3378
      %v3380 = vlaneseq
      %v3381 = vshrl.u32 %v3380, 7
      %v3382 = vsub.s32 0, %v3381
      %v3383 = vrot.slane %v3349, %v3382
      %v3384 = vlaneseq
      %v3385 = vshrl.u32 %v3384, 7
      %v3386 = vsub.s32 0, %v3385
      %v3387 = vrot.slane %v3350, %v3386
      %v3388 = vlaneseq
      %v3389 = vshrl.u32 %v3388, 7
      %v3390 = vsub.s32 0, %v3389
      %v3391 = vrot.slane %v3351, %v3390
      %3392 = vset.pattern.permute.xlu0 0
      %3393 = vperm.xlu0 %3392, %v3363
      %v3394 = vpop.permute.xlu0 %3393
      %3396 = vset.pattern.permute.xlu0 0
      %3397 = vperm.xlu0 %3396, %v3367
      %v3398 = vpop.permute.xlu0 %3397
      %3400 = vset.pattern.permute.xlu0 0
      %3401 = vperm.xlu0 %3400, %v3371
      %v3402 = vpop.permute.xlu0 %3401
      %3404 = vset.pattern.permute.xlu0 0
      %3405 = vperm.xlu0 %3404, %v3375
      %v3406 = vpop.permute.xlu0 %3405
      %3408 = vset.pattern.permute.xlu0 0
      %3409 = vperm.xlu0 %3408, %v3379
      %v3410 = vpop.permute.xlu0 %3409
      %3412 = vset.pattern.permute.xlu0 0
      %3413 = vperm.xlu0 %3412, %v3383
      %v3414 = vpop.permute.xlu0 %3413
      %3416 = vset.pattern.permute.xlu0 0
      %3417 = vperm.xlu0 %3416, %v3387
      %v3418 = vpop.permute.xlu0 %3417
      %3420 = vset.pattern.permute.xlu0 0
      %3421 = vperm.xlu0 %3420, %v3391
      %v3422 = vpop.permute.xlu0 %3421
      %v3424 = vmul.f32 %v3394, %v2642
      %v3425 = vmul.f32 %v3394, %v2647
      %v3426 = vmul.f32 %v3394, %v2652
      %v3427 = vmul.f32 %v3394, %v2657
      %v3428 = vmul.f32 %v3398, %v2642
      %v3429 = vmul.f32 %v3398, %v2647
      %v3430 = vmul.f32 %v3398, %v2652
      %v3431 = vmul.f32 %v3398, %v2657
      %v3432 = vmul.f32 %v3402, %v2642
      %v3433 = vmul.f32 %v3402, %v2647
      %v3434 = vmul.f32 %v3402, %v2652
      %v3435 = vmul.f32 %v3402, %v2657
      %v3436 = vmul.f32 %v3406, %v2642
      %v3437 = vmul.f32 %v3406, %v2647
      %v3438 = vmul.f32 %v3406, %v2652
      %v3439 = vmul.f32 %v3406, %v2657
      %v3440 = vmul.f32 %v3410, %v2642
      %v3441 = vmul.f32 %v3410, %v2647
      %v3442 = vmul.f32 %v3410, %v2652
      %v3443 = vmul.f32 %v3410, %v2657
      %v3444 = vmul.f32 %v3414, %v2642
      %v3445 = vmul.f32 %v3414, %v2647
      %v3446 = vmul.f32 %v3414, %v2652
      %v3447 = vmul.f32 %v3414, %v2657
      %v3448 = vmul.f32 %v3418, %v2642
      %v3449 = vmul.f32 %v3418, %v2647
      %v3450 = vmul.f32 %v3418, %v2652
      %v3451 = vmul.f32 %v3418, %v2657
      %v3452 = vmul.f32 %v3422, %v2642
      %v3453 = vmul.f32 %v3422, %v2647
      %v3454 = vmul.f32 %v3422, %v2652
      %v3455 = vmul.f32 %v3422, %v2657
      %v3488 = vrot.slane %v3424, 1
      %v3489 = vrot.slane %v3425, 1
      %v3490 = vsel %vm1028, %v3488, %v3489
      %v3491 = vrot.slane %v3426, 1
      %v3492 = vsel %vm1028, %v3489, %v3491
      %v3493 = vrot.slane %v3427, 1
      %v3494 = vsel %vm1028, %v3491, %v3493
      %v3495 = vrot.slane %v3428, 1
      %v3496 = vrot.slane %v3429, 1
      %v3497 = vsel %vm1028, %v3495, %v3496
      %v3498 = vrot.slane %v3430, 1
      %v3499 = vsel %vm1028, %v3496, %v3498
      %v3500 = vrot.slane %v3431, 1
      %v3501 = vsel %vm1028, %v3498, %v3500
      %v3502 = vrot.slane %v3432, 1
      %v3503 = vrot.slane %v3433, 1
      %v3504 = vsel %vm1028, %v3502, %v3503
      %v3505 = vrot.slane %v3434, 1
      %v3506 = vsel %vm1028, %v3503, %v3505
      %v3507 = vrot.slane %v3435, 1
      %v3508 = vsel %vm1028, %v3505, %v3507
      %v3509 = vrot.slane %v3436, 1
      %v3510 = vrot.slane %v3437, 1
      %v3511 = vsel %vm1028, %v3509, %v3510
      %v3512 = vrot.slane %v3438, 1
      %v3513 = vsel %vm1028, %v3510, %v3512
      %v3514 = vrot.slane %v3439, 1
      %v3515 = vsel %vm1028, %v3512, %v3514
      %v3516 = vrot.slane %v3440, 1
      %v3517 = vrot.slane %v3441, 1
      %v3518 = vsel %vm1028, %v3516, %v3517
      %v3519 = vrot.slane %v3442, 1
      %v3520 = vsel %vm1028, %v3517, %v3519
      %v3521 = vrot.slane %v3443, 1
      %v3522 = vsel %vm1028, %v3519, %v3521
      %v3523 = vrot.slane %v3444, 1
      %v3524 = vrot.slane %v3445, 1
      %v3525 = vsel %vm1028, %v3523, %v3524
      %v3526 = vrot.slane %v3446, 1
      %v3527 = vsel %vm1028, %v3524, %v3526
      %v3528 = vrot.slane %v3447, 1
      %v3529 = vsel %vm1028, %v3526, %v3528
      %v3530 = vrot.slane %v3448, 1
      %v3531 = vrot.slane %v3449, 1
      %v3532 = vsel %vm1028, %v3530, %v3531
      %v3533 = vrot.slane %v3450, 1
      %v3534 = vsel %vm1028, %v3531, %v3533
      %v3535 = vrot.slane %v3451, 1
      %v3536 = vsel %vm1028, %v3533, %v3535
      %v3537 = vrot.slane %v3452, 1
      %v3538 = vrot.slane %v3453, 1
      %v3539 = vsel %vm1028, %v3537, %v3538
      %v3540 = vrot.slane %v3454, 1
      %v3541 = vsel %vm1028, %v3538, %v3540
      %v3542 = vrot.slane %v3455, 1
      %v3543 = vsel %vm1028, %v3540, %v3542
      %3544 = vrot.lane.b32.xlu0 %v3490, 127
      %v3545 = vpop.permute.xlu0 %3544
      %3546 = vrot.lane.b32.xlu0 %v3492, 127
      %v3547 = vpop.permute.xlu0 %3546
      %3548 = vrot.lane.b32.xlu0 %v3494, 127
      %v3549 = vpop.permute.xlu0 %3548
      %3550 = vrot.lane.b32.xlu0 %v3493, 127
      %v3551 = vpop.permute.xlu0 %3550
      %3552 = vrot.lane.b32.xlu0 %v3497, 127
      %v3553 = vpop.permute.xlu0 %3552
      %3554 = vrot.lane.b32.xlu0 %v3499, 127
      %v3555 = vpop.permute.xlu0 %3554
      %3556 = vrot.lane.b32.xlu0 %v3501, 127
      %v3557 = vpop.permute.xlu0 %3556
      %3558 = vrot.lane.b32.xlu0 %v3500, 127
      %v3559 = vpop.permute.xlu0 %3558
      %3560 = vrot.lane.b32.xlu0 %v3504, 127
      %v3561 = vpop.permute.xlu0 %3560
      %3562 = vrot.lane.b32.xlu0 %v3506, 127
      %v3563 = vpop.permute.xlu0 %3562
      %3564 = vrot.lane.b32.xlu0 %v3508, 127
      %v3565 = vpop.permute.xlu0 %3564
      %3566 = vrot.lane.b32.xlu0 %v3507, 127
      %v3567 = vpop.permute.xlu0 %3566
      %3568 = vrot.lane.b32.xlu0 %v3511, 127
      %v3569 = vpop.permute.xlu0 %3568
      %3570 = vrot.lane.b32.xlu0 %v3513, 127
      %v3571 = vpop.permute.xlu0 %3570
      %3572 = vrot.lane.b32.xlu0 %v3515, 127
      %v3573 = vpop.permute.xlu0 %3572
      %3574 = vrot.lane.b32.xlu0 %v3514, 127
      %v3575 = vpop.permute.xlu0 %3574
      %3576 = vrot.lane.b32.xlu0 %v3518, 127
      %v3577 = vpop.permute.xlu0 %3576
      %3578 = vrot.lane.b32.xlu0 %v3520, 127
      %v3579 = vpop.permute.xlu0 %3578
      %3580 = vrot.lane.b32.xlu0 %v3522, 127
      %v3581 = vpop.permute.xlu0 %3580
      %3582 = vrot.lane.b32.xlu0 %v3521, 127
      %v3583 = vpop.permute.xlu0 %3582
      %3584 = vrot.lane.b32.xlu0 %v3525, 127
      %v3585 = vpop.permute.xlu0 %3584
      %3586 = vrot.lane.b32.xlu0 %v3527, 127
      %v3587 = vpop.permute.xlu0 %3586
      %3588 = vrot.lane.b32.xlu0 %v3529, 127
      %v3589 = vpop.permute.xlu0 %3588
      %3590 = vrot.lane.b32.xlu0 %v3528, 127
      %v3591 = vpop.permute.xlu0 %3590
      %3592 = vrot.lane.b32.xlu0 %v3532, 127
      %v3593 = vpop.permute.xlu0 %3592
      %3594 = vrot.lane.b32.xlu0 %v3534, 127
      %v3595 = vpop.permute.xlu0 %3594
      %3596 = vrot.lane.b32.xlu0 %v3536, 127
      %v3597 = vpop.permute.xlu0 %3596
      %3598 = vrot.lane.b32.xlu0 %v3535, 127
      %v3599 = vpop.permute.xlu0 %3598
      %3600 = vrot.lane.b32.xlu0 %v3539, 127
      %v3601 = vpop.permute.xlu0 %3600
      %3602 = vrot.lane.b32.xlu0 %v3541, 127
      %v3603 = vpop.permute.xlu0 %3602
      %3604 = vrot.lane.b32.xlu0 %v3543, 127
      %v3605 = vpop.permute.xlu0 %3604
      %3606 = vrot.lane.b32.xlu0 %v3542, 127
      %v3607 = vpop.permute.xlu0 %3606
      %v3640 = vadd.f32 %v3311, %v3545
      %v3641 = vadd.f32 %v3312, %v3547
      %v3642 = vadd.f32 %v3313, %v3549
      %v3643 = vadd.f32 %v3314, %v3551
      %v3644 = vadd.f32 %v3315, %v3553
      %v3645 = vadd.f32 %v3316, %v3555
      %v3646 = vadd.f32 %v3317, %v3557
      %v3647 = vadd.f32 %v3318, %v3559
      %v3648 = vadd.f32 %v3319, %v3561
      %v3649 = vadd.f32 %v3320, %v3563
      %v3650 = vadd.f32 %v3321, %v3565
      %v3651 = vadd.f32 %v3322, %v3567
      %v3652 = vadd.f32 %v3323, %v3569
      %v3653 = vadd.f32 %v3324, %v3571
      %v3654 = vadd.f32 %v3325, %v3573
      %v3655 = vadd.f32 %v3326, %v3575
      %v3656 = vadd.f32 %v3327, %v3577
      %v3657 = vadd.f32 %v3328, %v3579
      %v3658 = vadd.f32 %v3329, %v3581
      %v3659 = vadd.f32 %v3330, %v3583
      %v3660 = vadd.f32 %v3331, %v3585
      %v3661 = vadd.f32 %v3332, %v3587
      %v3662 = vadd.f32 %v3333, %v3589
      %v3663 = vadd.f32 %v3334, %v3591
      %v3664 = vadd.f32 %v3335, %v3593
      %v3665 = vadd.f32 %v3336, %v3595
      %v3666 = vadd.f32 %v3337, %v3597
      %v3667 = vadd.f32 %v3338, %v3599
      %v3668 = vadd.f32 %v3339, %v3601
      %v3669 = vadd.f32 %v3340, %v3603
      %v3670 = vadd.f32 %v3341, %v3605
      %v3671 = vadd.f32 %v3342, %v3607
      %3672 = vmatprep.subr.mxu0 0.0
      %3673 = vmatpush1.msra.mxu0 %v361
      %3674 = vmatprep.subr.mxu0 0.0
      %3675 = vmatpush1.msra.mxu0 %v366
      %3676 = vmatprep.subr.mxu0 0.0
      %3677 = vmatpush1.msra.mxu0 0.0
      %3678 = vmatprep.subr.mxu0 0.0
      %3679 = vmatpush1.msra.mxu0 0.0
      %3680 = vmatprep.subr.mxu0 0.0
      %3681 = vmatpush1.msra.mxu0 0.0
      %3682 = vmatprep.subr.mxu0 0.0
      %3683 = vmatpush1.msra.mxu0 0.0
      %3684 = vmatprep.subr.mxu0 0.0
      %3685 = vmatpush1.msra.mxu0 0.0
      %3686 = vmatprep.subr.mxu0 0.0
      %3687 = vmatpush1.msra.mxu0 0.0
      %3688 = vmatprep.subr.mxu0 0.0
      %3689 = vmatpush1.msra.mxu0 0.0
      %3690 = vmatprep.subr.mxu0 0.0
      %3691 = vmatpush1.msra.mxu0 0.0
      %3692 = vmatprep.subr.mxu0 0.0
      %3693 = vmatpush1.msra.mxu0 0.0
      %3694 = vmatprep.subr.mxu0 0.0
      %3695 = vmatpush1.msra.mxu0 0.0
      %3696 = vmatprep.subr.mxu0 0.0
      %3697 = vmatpush1.msra.mxu0 0.0
      %3698 = vmatprep.subr.mxu0 0.0
      %3699 = vmatpush1.msra.mxu0 0.0
      %3700 = vmatprep.subr.mxu0 0.0
      %3701 = vmatpush1.msra.mxu0 0.0
      %3702 = vmatprep.subr.mxu0 0.0
      %3703 = vmatpush1.msra.mxu0 0.0
      %3704 = vmatprep.subr.mxu0 0.0
      %3705 = vmatpush1.msra.mxu0 0.0
      %3706 = vmatprep.subr.mxu0 0.0
      %3707 = vmatpush1.msra.mxu0 0.0
      %3708 = vmatprep.subr.mxu0 0.0
      %3709 = vmatpush1.msra.mxu0 0.0
      %3710 = vmatprep.subr.mxu0 0.0
      %3711 = vmatpush1.msra.mxu0 0.0
      %3712 = vmatprep.subr.mxu0 0.0
      %3713 = vmatpush1.msra.mxu0 0.0
      %3714 = vmatprep.subr.mxu0 0.0
      %3715 = vmatpush1.msra.mxu0 0.0
      %3716 = vmatprep.subr.mxu0 0.0
      %3717 = vmatpush1.msra.mxu0 0.0
      %3718 = vmatprep.subr.mxu0 0.0
      %3719 = vmatpush1.msra.mxu0 0.0
      %3720 = vmatprep.subr.mxu0 0.0
      %3721 = vmatpush1.msra.mxu0 0.0
      %3722 = vmatprep.subr.mxu0 0.0
      %3723 = vmatpush1.msra.mxu0 0.0
      %3724 = vmatprep.subr.mxu0 0.0
      %3725 = vmatpush1.msra.mxu0 0.0
      %3726 = vmatprep.subr.mxu0 0.0
      %3727 = vmatpush1.msra.mxu0 0.0
      %3728 = vmatprep.subr.mxu0 0.0
      %3729 = vmatpush1.msra.mxu0 0.0
      %3730 = vmatprep.subr.mxu0 0.0
      %3731 = vmatpush1.msra.mxu0 0.0
      %3732 = vmatprep.subr.mxu0 0.0
      %3733 = vmatpush1.msra.mxu0 0.0
      %3734 = vmatprep.subr.mxu0 0.0
      %3735 = vmatpush1.msra.mxu0 0.0
      %3736 = vmatprep.mubr.f32.mxu0 0.0
      %3737 = vmatmul.mubr.f32.gmra.mrb[0].mxu0 %v370
      %v3738 = vpop.f32.mrb[0].mxu0
      %v3739 = vadd.f32 0.0, %v3738
      %v3740 = vpop.f32.mrb[0].mxu0
      %3741 = vmatprep.mubr.f32.mxu0 0.0
      %3742 = vmatmul.mubr.f32.gmra.mrb[0].mxu0 %v373
      %v3743 = vpop.f32.mrb[0].mxu0
      %v3744 = vadd.f32 0.0, %v3743
      %v3745 = vpop.f32.mrb[0].mxu0
      %3746 = vmatprep.mubr.f32.mxu0 0.0
      %3747 = vmatmul.mubr.f32.gmra.mrb[0].mxu0 %v376
      %v3748 = vpop.f32.mrb[0].mxu0
      %v3749 = vadd.f32 0.0, %v3748
      %v3750 = vpop.f32.mrb[0].mxu0
      %3751 = vmatprep.mubr.f32.mxu0 0.0
      %3752 = vmatmul.mubr.f32.gmra.mrb[0].mxu0 %v379
      %v3753 = vpop.f32.mrb[0].mxu0
      %v3754 = vadd.f32 0.0, %v3753
      %v3755 = vpop.f32.mrb[0].mxu0
      %3756 = vdwg.mxu0
      %s3757 = scalar_lea.vmem %s3, 24
      %v3758 = vld [vmem:[%s3757] sm:$0x1]
      %v3759 = vld [vmem:[%s3757 + $0x1] sm:$0x1]
      %v3760 = vld [vmem:[%s3757 + $0x2] sm:$0x1]
      %v3761 = vld [vmem:[%s3757 + $0x3] sm:$0x1]
      %v3762 = vld [vmem:[%s3757 + $0x4] sm:$0x1]
      %v3763 = vld [vmem:[%s3757 + $0x5] sm:$0x1]
      %v3764 = vld [vmem:[%s3757 + $0x6] sm:$0x1]
      %v3765 = vld [vmem:[%s3757 + $0x7] sm:$0x1]
      %v3774 = vlaneseq
      %v3775 = vshrl.u32 %v3774, 7
      %v3776 = vsub.s32 0, %v3775
      %v3777 = vrot.slane %v3758, %v3776
      %v3778 = vlaneseq
      %v3779 = vshrl.u32 %v3778, 7
      %v3780 = vsub.s32 0, %v3779
      %v3781 = vrot.slane %v3759, %v3780
      %v3782 = vlaneseq
      %v3783 = vshrl.u32 %v3782, 7
      %v3784 = vsub.s32 0, %v3783
      %v3785 = vrot.slane %v3760, %v3784
      %v3786 = vlaneseq
      %v3787 = vshrl.u32 %v3786, 7
      %v3788 = vsub.s32 0, %v3787
      %v3789 = vrot.slane %v3761, %v3788
      %v3790 = vlaneseq
      %v3791 = vshrl.u32 %v3790, 7
      %v3792 = vsub.s32 0, %v3791
      %v3793 = vrot.slane %v3762, %v3792
      %v3794 = vlaneseq
      %v3795 = vshrl.u32 %v3794, 7
      %v3796 = vsub.s32 0, %v3795
      %v3797 = vrot.slane %v3763, %v3796
      %v3798 = vlaneseq
      %v3799 = vshrl.u32 %v3798, 7
      %v3800 = vsub.s32 0, %v3799
      %v3801 = vrot.slane %v3764, %v3800
      %v3802 = vlaneseq
      %v3803 = vshrl.u32 %v3802, 7
      %v3804 = vsub.s32 0, %v3803
      %v3805 = vrot.slane %v3765, %v3804
      %3806 = vset.pattern.permute.xlu0 0
      %3807 = vperm.xlu0 %3806, %v3777
      %v3808 = vpop.permute.xlu0 %3807
      %3810 = vset.pattern.permute.xlu0 0
      %3811 = vperm.xlu0 %3810, %v3781
      %v3812 = vpop.permute.xlu0 %3811
      %3814 = vset.pattern.permute.xlu0 0
      %3815 = vperm.xlu0 %3814, %v3785
      %v3816 = vpop.permute.xlu0 %3815
      %3818 = vset.pattern.permute.xlu0 0
      %3819 = vperm.xlu0 %3818, %v3789
      %v3820 = vpop.permute.xlu0 %3819
      %3822 = vset.pattern.permute.xlu0 0
      %3823 = vperm.xlu0 %3822, %v3793
      %v3824 = vpop.permute.xlu0 %3823
      %3826 = vset.pattern.permute.xlu0 0
      %3827 = vperm.xlu0 %3826, %v3797
      %v3828 = vpop.permute.xlu0 %3827
      %3830 = vset.pattern.permute.xlu0 0
      %3831 = vperm.xlu0 %3830, %v3801
      %v3832 = vpop.permute.xlu0 %3831
      %3834 = vset.pattern.permute.xlu0 0
      %3835 = vperm.xlu0 %3834, %v3805
      %v3836 = vpop.permute.xlu0 %3835
      %v3838 = vmul.f32 %v3808, %v3739
      %v3839 = vmul.f32 %v3808, %v3744
      %v3840 = vmul.f32 %v3808, %v3749
      %v3841 = vmul.f32 %v3808, %v3754
      %v3842 = vmul.f32 %v3812, %v3739
      %v3843 = vmul.f32 %v3812, %v3744
      %v3844 = vmul.f32 %v3812, %v3749
      %v3845 = vmul.f32 %v3812, %v3754
      %v3846 = vmul.f32 %v3816, %v3739
      %v3847 = vmul.f32 %v3816, %v3744
      %v3848 = vmul.f32 %v3816, %v3749
      %v3849 = vmul.f32 %v3816, %v3754
      %v3850 = vmul.f32 %v3820, %v3739
      %v3851 = vmul.f32 %v3820, %v3744
      %v3852 = vmul.f32 %v3820, %v3749
      %v3853 = vmul.f32 %v3820, %v3754
      %v3854 = vmul.f32 %v3824, %v3739
      %v3855 = vmul.f32 %v3824, %v3744
      %v3856 = vmul.f32 %v3824, %v3749
      %v3857 = vmul.f32 %v3824, %v3754
      %v3858 = vmul.f32 %v3828, %v3739
      %v3859 = vmul.f32 %v3828, %v3744
      %v3860 = vmul.f32 %v3828, %v3749
      %v3861 = vmul.f32 %v3828, %v3754
      %v3862 = vmul.f32 %v3832, %v3739
      %v3863 = vmul.f32 %v3832, %v3744
      %v3864 = vmul.f32 %v3832, %v3749
      %v3865 = vmul.f32 %v3832, %v3754
      %v3866 = vmul.f32 %v3836, %v3739
      %v3867 = vmul.f32 %v3836, %v3744
      %v3868 = vmul.f32 %v3836, %v3749
      %v3869 = vmul.f32 %v3836, %v3754
      %v3870 = vadd.f32 %v3640, %v3838
      %v3871 = vadd.f32 %v3641, %v3839
      %v3872 = vadd.f32 %v3642, %v3840
      %v3873 = vadd.f32 %v3643, %v3841
      %v3874 = vadd.f32 %v3644, %v3842
      %v3875 = vadd.f32 %v3645, %v3843
      %v3876 = vadd.f32 %v3646, %v3844
      %v3877 = vadd.f32 %v3647, %v3845
      %v3878 = vadd.f32 %v3648, %v3846
      %v3879 = vadd.f32 %v3649, %v3847
      %v3880 = vadd.f32 %v3650, %v3848
      %v3881 = vadd.f32 %v3651, %v3849
      %v3882 = vadd.f32 %v3652, %v3850
      %v3883 = vadd.f32 %v3653, %v3851
      %v3884 = vadd.f32 %v3654, %v3852
      %v3885 = vadd.f32 %v3655, %v3853
      %v3886 = vadd.f32 %v3656, %v3854
      %v3887 = vadd.f32 %v3657, %v3855
      %v3888 = vadd.f32 %v3658, %v3856
      %v3889 = vadd.f32 %v3659, %v3857
      %v3890 = vadd.f32 %v3660, %v3858
      %v3891 = vadd.f32 %v3661, %v3859
      %v3892 = vadd.f32 %v3662, %v3860
      %v3893 = vadd.f32 %v3663, %v3861
      %v3894 = vadd.f32 %v3664, %v3862
      %v3895 = vadd.f32 %v3665, %v3863
      %v3896 = vadd.f32 %v3666, %v3864
      %v3897 = vadd.f32 %v3667, %v3865
      %v3898 = vadd.f32 %v3668, %v3866
      %v3899 = vadd.f32 %v3669, %v3867
      %v3900 = vadd.f32 %v3670, %v3868
      %v3901 = vadd.f32 %v3671, %v3869
      %s3902 = scalar_lea.vmem %s3, 56
      %v3903 = vld [vmem:[%s3902] sm:$0x1]
      %v3904 = vld [vmem:[%s3902 + $0x1] sm:$0x1]
      %v3905 = vld [vmem:[%s3902 + $0x2] sm:$0x1]
      %v3906 = vld [vmem:[%s3902 + $0x3] sm:$0x1]
      %v3907 = vld [vmem:[%s3902 + $0x4] sm:$0x1]
      %v3908 = vld [vmem:[%s3902 + $0x5] sm:$0x1]
      %v3909 = vld [vmem:[%s3902 + $0x6] sm:$0x1]
      %v3910 = vld [vmem:[%s3902 + $0x7] sm:$0x1]
      %v3919 = vlaneseq
      %v3920 = vshrl.u32 %v3919, 7
      %v3921 = vsub.s32 0, %v3920
      %v3922 = vrot.slane %v3903, %v3921
      %v3923 = vlaneseq
      %v3924 = vshrl.u32 %v3923, 7
      %v3925 = vsub.s32 0, %v3924
      %v3926 = vrot.slane %v3904, %v3925
      %v3927 = vlaneseq
      %v3928 = vshrl.u32 %v3927, 7
      %v3929 = vsub.s32 0, %v3928
      %v3930 = vrot.slane %v3905, %v3929
      %v3931 = vlaneseq
      %v3932 = vshrl.u32 %v3931, 7
      %v3933 = vsub.s32 0, %v3932
      %v3934 = vrot.slane %v3906, %v3933
      %v3935 = vlaneseq
      %v3936 = vshrl.u32 %v3935, 7
      %v3937 = vsub.s32 0, %v3936
      %v3938 = vrot.slane %v3907, %v3937
      %v3939 = vlaneseq
      %v3940 = vshrl.u32 %v3939, 7
      %v3941 = vsub.s32 0, %v3940
      %v3942 = vrot.slane %v3908, %v3941
      %v3943 = vlaneseq
      %v3944 = vshrl.u32 %v3943, 7
      %v3945 = vsub.s32 0, %v3944
      %v3946 = vrot.slane %v3909, %v3945
      %v3947 = vlaneseq
      %v3948 = vshrl.u32 %v3947, 7
      %v3949 = vsub.s32 0, %v3948
      %v3950 = vrot.slane %v3910, %v3949
      %3951 = vset.pattern.permute.xlu0 0
      %3952 = vperm.xlu0 %3951, %v3922
      %v3953 = vpop.permute.xlu0 %3952
      %3955 = vset.pattern.permute.xlu0 0
      %3956 = vperm.xlu0 %3955, %v3926
      %v3957 = vpop.permute.xlu0 %3956
      %3959 = vset.pattern.permute.xlu0 0
      %3960 = vperm.xlu0 %3959, %v3930
      %v3961 = vpop.permute.xlu0 %3960
      %3963 = vset.pattern.permute.xlu0 0
      %3964 = vperm.xlu0 %3963, %v3934
      %v3965 = vpop.permute.xlu0 %3964
      %3967 = vset.pattern.permute.xlu0 0
      %3968 = vperm.xlu0 %3967, %v3938
      %v3969 = vpop.permute.xlu0 %3968
      %3971 = vset.pattern.permute.xlu0 0
      %3972 = vperm.xlu0 %3971, %v3942
      %v3973 = vpop.permute.xlu0 %3972
      %3975 = vset.pattern.permute.xlu0 0
      %3976 = vperm.xlu0 %3975, %v3946
      %v3977 = vpop.permute.xlu0 %3976
      %3979 = vset.pattern.permute.xlu0 0
      %3980 = vperm.xlu0 %3979, %v3950
      %v3981 = vpop.permute.xlu0 %3980
      %v3983 = vmul.f32 %v3953, %v3739
      %v3984 = vmul.f32 %v3953, %v3744
      %v3985 = vmul.f32 %v3953, %v3749
      %v3986 = vmul.f32 %v3953, %v3754
      %v3987 = vmul.f32 %v3957, %v3739
      %v3988 = vmul.f32 %v3957, %v3744
      %v3989 = vmul.f32 %v3957, %v3749
      %v3990 = vmul.f32 %v3957, %v3754
      %v3991 = vmul.f32 %v3961, %v3739
      %v3992 = vmul.f32 %v3961, %v3744
      %v3993 = vmul.f32 %v3961, %v3749
      %v3994 = vmul.f32 %v3961, %v3754
      %v3995 = vmul.f32 %v3965, %v3739
      %v3996 = vmul.f32 %v3965, %v3744
      %v3997 = vmul.f32 %v3965, %v3749
      %v3998 = vmul.f32 %v3965, %v3754
      %v3999 = vmul.f32 %v3969, %v3739
      %v4000 = vmul.f32 %v3969, %v3744
      %v4001 = vmul.f32 %v3969, %v3749
      %v4002 = vmul.f32 %v3969, %v3754
      %v4003 = vmul.f32 %v3973, %v3739
      %v4004 = vmul.f32 %v3973, %v3744
      %v4005 = vmul.f32 %v3973, %v3749
      %v4006 = vmul.f32 %v3973, %v3754
      %v4007 = vmul.f32 %v3977, %v3739
      %v4008 = vmul.f32 %v3977, %v3744
      %v4009 = vmul.f32 %v3977, %v3749
      %v4010 = vmul.f32 %v3977, %v3754
      %v4011 = vmul.f32 %v3981, %v3739
      %v4012 = vmul.f32 %v3981, %v3744
      %v4013 = vmul.f32 %v3981, %v3749
      %v4014 = vmul.f32 %v3981, %v3754
      %4047 = vrot.lane.b32.xlu0 %v3983, 127
      %v4048 = vpop.permute.xlu0 %4047
      %4049 = vrot.lane.b32.xlu0 %v3984, 127
      %v4050 = vpop.permute.xlu0 %4049
      %4051 = vrot.lane.b32.xlu0 %v3985, 127
      %v4052 = vpop.permute.xlu0 %4051
      %4053 = vrot.lane.b32.xlu0 %v3986, 127
      %v4054 = vpop.permute.xlu0 %4053
      %4055 = vrot.lane.b32.xlu0 %v3987, 127
      %v4056 = vpop.permute.xlu0 %4055
      %4057 = vrot.lane.b32.xlu0 %v3988, 127
      %v4058 = vpop.permute.xlu0 %4057
      %4059 = vrot.lane.b32.xlu0 %v3989, 127
      %v4060 = vpop.permute.xlu0 %4059
      %4061 = vrot.lane.b32.xlu0 %v3990, 127
      %v4062 = vpop.permute.xlu0 %4061
      %4063 = vrot.lane.b32.xlu0 %v3991, 127
      %v4064 = vpop.permute.xlu0 %4063
      %4065 = vrot.lane.b32.xlu0 %v3992, 127
      %v4066 = vpop.permute.xlu0 %4065
      %4067 = vrot.lane.b32.xlu0 %v3993, 127
      %v4068 = vpop.permute.xlu0 %4067
      %4069 = vrot.lane.b32.xlu0 %v3994, 127
      %v4070 = vpop.permute.xlu0 %4069
      %4071 = vrot.lane.b32.xlu0 %v3995, 127
      %v4072 = vpop.permute.xlu0 %4071
      %4073 = vrot.lane.b32.xlu0 %v3996, 127
      %v4074 = vpop.permute.xlu0 %4073
      %4075 = vrot.lane.b32.xlu0 %v3997, 127
      %v4076 = vpop.permute.xlu0 %4075
      %4077 = vrot.lane.b32.xlu0 %v3998, 127
      %v4078 = vpop.permute.xlu0 %4077
      %4079 = vrot.lane.b32.xlu0 %v3999, 127
      %v4080 = vpop.permute.xlu0 %4079
      %4081 = vrot.lane.b32.xlu0 %v4000, 127
      %v4082 = vpop.permute.xlu0 %4081
      %4083 = vrot.lane.b32.xlu0 %v4001, 127
      %v4084 = vpop.permute.xlu0 %4083
      %4085 = vrot.lane.b32.xlu0 %v4002, 127
      %v4086 = vpop.permute.xlu0 %4085
      %4087 = vrot.lane.b32.xlu0 %v4003, 127
      %v4088 = vpop.permute.xlu0 %4087
      %4089 = vrot.lane.b32.xlu0 %v4004, 127
      %v4090 = vpop.permute.xlu0 %4089
      %4091 = vrot.lane.b32.xlu0 %v4005, 127
      %v4092 = vpop.permute.xlu0 %4091
      %4093 = vrot.lane.b32.xlu0 %v4006, 127
      %v4094 = vpop.permute.xlu0 %4093
      %4095 = vrot.lane.b32.xlu0 %v4007, 127
      %v4096 = vpop.permute.xlu0 %4095
      %4097 = vrot.lane.b32.xlu0 %v4008, 127
      %v4098 = vpop.permute.xlu0 %4097
      %4099 = vrot.lane.b32.xlu0 %v4009, 127
      %v4100 = vpop.permute.xlu0 %4099
      %4101 = vrot.lane.b32.xlu0 %v4010, 127
      %v4102 = vpop.permute.xlu0 %4101
      %4103 = vrot.lane.b32.xlu0 %v4011, 127
      %v4104 = vpop.permute.xlu0 %4103
      %4105 = vrot.lane.b32.xlu0 %v4012, 127
      %v4106 = vpop.permute.xlu0 %4105
      %4107 = vrot.lane.b32.xlu0 %v4013, 127
      %v4108 = vpop.permute.xlu0 %4107
      %4109 = vrot.lane.b32.xlu0 %v4014, 127
      %v4110 = vpop.permute.xlu0 %4109
      %v4143 = vadd.f32 %v3870, %v4048
      %v4144 = vadd.f32 %v3871, %v4050
      %v4145 = vadd.f32 %v3872, %v4052
      %v4146 = vadd.f32 %v3873, %v4054
      %v4147 = vadd.f32 %v3874, %v4056
      %v4148 = vadd.f32 %v3875, %v4058
      %v4149 = vadd.f32 %v3876, %v4060
      %v4150 = vadd.f32 %v3877, %v4062
      %v4151 = vadd.f32 %v3878, %v4064
      %v4152 = vadd.f32 %v3879, %v4066
      %v4153 = vadd.f32 %v3880, %v4068
      %v4154 = vadd.f32 %v3881, %v4070
      %v4155 = vadd.f32 %v3882, %v4072
      %v4156 = vadd.f32 %v3883, %v4074
      %v4157 = vadd.f32 %v3884, %v4076
      %v4158 = vadd.f32 %v3885, %v4078
      %v4159 = vadd.f32 %v3886, %v4080
      %v4160 = vadd.f32 %v3887, %v4082
      %v4161 = vadd.f32 %v3888, %v4084
      %v4162 = vadd.f32 %v3889, %v4086
      %v4163 = vadd.f32 %v3890, %v4088
      %v4164 = vadd.f32 %v3891, %v4090
      %v4165 = vadd.f32 %v3892, %v4092
      %v4166 = vadd.f32 %v3893, %v4094
      %v4167 = vadd.f32 %v3894, %v4096
      %v4168 = vadd.f32 %v3895, %v4098
      %v4169 = vadd.f32 %v3896, %v4100
      %v4170 = vadd.f32 %v3897, %v4102
      %v4171 = vadd.f32 %v3898, %v4104
      %v4172 = vadd.f32 %v3899, %v4106
      %v4173 = vadd.f32 %v3900, %v4108
      %v4174 = vadd.f32 %v3901, %v4110
      %s4175 = scalar_lea.vmem %s3, 88
      %v4176 = vld [vmem:[%s4175] sm:$0x1]
      %v4177 = vld [vmem:[%s4175 + $0x1] sm:$0x1]
      %v4178 = vld [vmem:[%s4175 + $0x2] sm:$0x1]
      %v4179 = vld [vmem:[%s4175 + $0x3] sm:$0x1]
      %v4180 = vld [vmem:[%s4175 + $0x4] sm:$0x1]
      %v4181 = vld [vmem:[%s4175 + $0x5] sm:$0x1]
      %v4182 = vld [vmem:[%s4175 + $0x6] sm:$0x1]
      %v4183 = vld [vmem:[%s4175 + $0x7] sm:$0x1]
      %v4192 = vlaneseq
      %v4193 = vshrl.u32 %v4192, 7
      %v4194 = vsub.s32 0, %v4193
      %v4195 = vrot.slane %v4176, %v4194
      %v4196 = vlaneseq
      %v4197 = vshrl.u32 %v4196, 7
      %v4198 = vsub.s32 0, %v4197
      %v4199 = vrot.slane %v4177, %v4198
      %v4200 = vlaneseq
      %v4201 = vshrl.u32 %v4200, 7
      %v4202 = vsub.s32 0, %v4201
      %v4203 = vrot.slane %v4178, %v4202
      %v4204 = vlaneseq
      %v4205 = vshrl.u32 %v4204, 7
      %v4206 = vsub.s32 0, %v4205
      %v4207 = vrot.slane %v4179, %v4206
      %v4208 = vlaneseq
      %v4209 = vshrl.u32 %v4208, 7
      %v4210 = vsub.s32 0, %v4209
      %v4211 = vrot.slane %v4180, %v4210
      %v4212 = vlaneseq
      %v4213 = vshrl.u32 %v4212, 7
      %v4214 = vsub.s32 0, %v4213
      %v4215 = vrot.slane %v4181, %v4214
      %v4216 = vlaneseq
      %v4217 = vshrl.u32 %v4216, 7
      %v4218 = vsub.s32 0, %v4217
      %v4219 = vrot.slane %v4182, %v4218
      %v4220 = vlaneseq
      %v4221 = vshrl.u32 %v4220, 7
      %v4222 = vsub.s32 0, %v4221
      %v4223 = vrot.slane %v4183, %v4222
      %4224 = vset.pattern.permute.xlu0 0
      %4225 = vperm.xlu0 %4224, %v4195
      %v4226 = vpop.permute.xlu0 %4225
      %4228 = vset.pattern.permute.xlu0 0
      %4229 = vperm.xlu0 %4228, %v4199
      %v4230 = vpop.permute.xlu0 %4229
      %4232 = vset.pattern.permute.xlu0 0
      %4233 = vperm.xlu0 %4232, %v4203
      %v4234 = vpop.permute.xlu0 %4233
      %4236 = vset.pattern.permute.xlu0 0
      %4237 = vperm.xlu0 %4236, %v4207
      %v4238 = vpop.permute.xlu0 %4237
      %4240 = vset.pattern.permute.xlu0 0
      %4241 = vperm.xlu0 %4240, %v4211
      %v4242 = vpop.permute.xlu0 %4241
      %4244 = vset.pattern.permute.xlu0 0
      %4245 = vperm.xlu0 %4244, %v4215
      %v4246 = vpop.permute.xlu0 %4245
      %4248 = vset.pattern.permute.xlu0 0
      %4249 = vperm.xlu0 %4248, %v4219
      %v4250 = vpop.permute.xlu0 %4249
      %4252 = vset.pattern.permute.xlu0 0
      %4253 = vperm.xlu0 %4252, %v4223
      %v4254 = vpop.permute.xlu0 %4253
      %v4256 = vmul.f32 %v4226, %v3739
      %v4257 = vmul.f32 %v4226, %v3744
      %v4258 = vmul.f32 %v4226, %v3749
      %v4259 = vmul.f32 %v4226, %v3754
      %v4260 = vmul.f32 %v4230, %v3739
      %v4261 = vmul.f32 %v4230, %v3744
      %v4262 = vmul.f32 %v4230, %v3749
      %v4263 = vmul.f32 %v4230, %v3754
      %v4264 = vmul.f32 %v4234, %v3739
      %v4265 = vmul.f32 %v4234, %v3744
      %v4266 = vmul.f32 %v4234, %v3749
      %v4267 = vmul.f32 %v4234, %v3754
      %v4268 = vmul.f32 %v4238, %v3739
      %v4269 = vmul.f32 %v4238, %v3744
      %v4270 = vmul.f32 %v4238, %v3749
      %v4271 = vmul.f32 %v4238, %v3754
      %v4272 = vmul.f32 %v4242, %v3739
      %v4273 = vmul.f32 %v4242, %v3744
      %v4274 = vmul.f32 %v4242, %v3749
      %v4275 = vmul.f32 %v4242, %v3754
      %v4276 = vmul.f32 %v4246, %v3739
      %v4277 = vmul.f32 %v4246, %v3744
      %v4278 = vmul.f32 %v4246, %v3749
      %v4279 = vmul.f32 %v4246, %v3754
      %v4280 = vmul.f32 %v4250, %v3739
      %v4281 = vmul.f32 %v4250, %v3744
      %v4282 = vmul.f32 %v4250, %v3749
      %v4283 = vmul.f32 %v4250, %v3754
      %v4284 = vmul.f32 %v4254, %v3739
      %v4285 = vmul.f32 %v4254, %v3744
      %v4286 = vmul.f32 %v4254, %v3749
      %v4287 = vmul.f32 %v4254, %v3754
      %v4320 = vrot.slane %v4256, 1
      %v4321 = vrot.slane %v4257, 1
      %v4322 = vsel %vm1028, %v4320, %v4321
      %v4323 = vrot.slane %v4258, 1
      %v4324 = vsel %vm1028, %v4321, %v4323
      %v4325 = vrot.slane %v4259, 1
      %v4326 = vsel %vm1028, %v4323, %v4325
      %v4327 = vrot.slane %v4260, 1
      %v4328 = vrot.slane %v4261, 1
      %v4329 = vsel %vm1028, %v4327, %v4328
      %v4330 = vrot.slane %v4262, 1
      %v4331 = vsel %vm1028, %v4328, %v4330
      %v4332 = vrot.slane %v4263, 1
      %v4333 = vsel %vm1028, %v4330, %v4332
      %v4334 = vrot.slane %v4264, 1
      %v4335 = vrot.slane %v4265, 1
      %v4336 = vsel %vm1028, %v4334, %v4335
      %v4337 = vrot.slane %v4266, 1
      %v4338 = vsel %vm1028, %v4335, %v4337
      %v4339 = vrot.slane %v4267, 1
      %v4340 = vsel %vm1028, %v4337, %v4339
      %v4341 = vrot.slane %v4268, 1
      %v4342 = vrot.slane %v4269, 1
      %v4343 = vsel %vm1028, %v4341, %v4342
      %v4344 = vrot.slane %v4270, 1
      %v4345 = vsel %vm1028, %v4342, %v4344
      %v4346 = vrot.slane %v4271, 1
      %v4347 = vsel %vm1028, %v4344, %v4346
      %v4348 = vrot.slane %v4272, 1
      %v4349 = vrot.slane %v4273, 1
      %v4350 = vsel %vm1028, %v4348, %v4349
      %v4351 = vrot.slane %v4274, 1
      %v4352 = vsel %vm1028, %v4349, %v4351
      %v4353 = vrot.slane %v4275, 1
      %v4354 = vsel %vm1028, %v4351, %v4353
      %v4355 = vrot.slane %v4276, 1
      %v4356 = vrot.slane %v4277, 1
      %v4357 = vsel %vm1028, %v4355, %v4356
      %v4358 = vrot.slane %v4278, 1
      %v4359 = vsel %vm1028, %v4356, %v4358
      %v4360 = vrot.slane %v4279, 1
      %v4361 = vsel %vm1028, %v4358, %v4360
      %v4362 = vrot.slane %v4280, 1
      %v4363 = vrot.slane %v4281, 1
      %v4364 = vsel %vm1028, %v4362, %v4363
      %v4365 = vrot.slane %v4282, 1
      %v4366 = vsel %vm1028, %v4363, %v4365
      %v4367 = vrot.slane %v4283, 1
      %v4368 = vsel %vm1028, %v4365, %v4367
      %v4369 = vrot.slane %v4284, 1
      %v4370 = vrot.slane %v4285, 1
      %v4371 = vsel %vm1028, %v4369, %v4370
      %v4372 = vrot.slane %v4286, 1
      %v4373 = vsel %vm1028, %v4370, %v4372
      %v4374 = vrot.slane %v4287, 1
      %v4375 = vsel %vm1028, %v4372, %v4374
      %v4408 = vadd.f32 %v4143, %v4322
      %v4409 = vadd.f32 %v4144, %v4324
      %v4410 = vadd.f32 %v4145, %v4326
      %v4411 = vadd.f32 %v4146, %v4325
      %v4412 = vadd.f32 %v4147, %v4329
      %v4413 = vadd.f32 %v4148, %v4331
      %v4414 = vadd.f32 %v4149, %v4333
      %v4415 = vadd.f32 %v4150, %v4332
      %v4416 = vadd.f32 %v4151, %v4336
      %v4417 = vadd.f32 %v4152, %v4338
      %v4418 = vadd.f32 %v4153, %v4340
      %v4419 = vadd.f32 %v4154, %v4339
      %v4420 = vadd.f32 %v4155, %v4343
      %v4421 = vadd.f32 %v4156, %v4345
      %v4422 = vadd.f32 %v4157, %v4347
      %v4423 = vadd.f32 %v4158, %v4346
      %v4424 = vadd.f32 %v4159, %v4350
      %v4425 = vadd.f32 %v4160, %v4352
      %v4426 = vadd.f32 %v4161, %v4354
      %v4427 = vadd.f32 %v4162, %v4353
      %v4428 = vadd.f32 %v4163, %v4357
      %v4429 = vadd.f32 %v4164, %v4359
      %v4430 = vadd.f32 %v4165, %v4361
      %v4431 = vadd.f32 %v4166, %v4360
      %v4432 = vadd.f32 %v4167, %v4364
      %v4433 = vadd.f32 %v4168, %v4366
      %v4434 = vadd.f32 %v4169, %v4368
      %v4435 = vadd.f32 %v4170, %v4367
      %v4436 = vadd.f32 %v4171, %v4371
      %v4437 = vadd.f32 %v4172, %v4373
      %v4438 = vadd.f32 %v4173, %v4375
      %v4439 = vadd.f32 %v4174, %v4374
      %s4440 = scalar_lea.vmem %s3, 120
      %v4441 = vld [vmem:[%s4440] sm:$0x1]
      %v4442 = vld [vmem:[%s4440 + $0x1] sm:$0x1]
      %v4443 = vld [vmem:[%s4440 + $0x2] sm:$0x1]
      %v4444 = vld [vmem:[%s4440 + $0x3] sm:$0x1]
      %v4445 = vld [vmem:[%s4440 + $0x4] sm:$0x1]
      %v4446 = vld [vmem:[%s4440 + $0x5] sm:$0x1]
      %v4447 = vld [vmem:[%s4440 + $0x6] sm:$0x1]
      %v4448 = vld [vmem:[%s4440 + $0x7] sm:$0x1]
      %v4457 = vlaneseq
      %v4458 = vshrl.u32 %v4457, 7
      %v4459 = vsub.s32 0, %v4458
      %v4460 = vrot.slane %v4441, %v4459
      %v4461 = vlaneseq
      %v4462 = vshrl.u32 %v4461, 7
      %v4463 = vsub.s32 0, %v4462
      %v4464 = vrot.slane %v4442, %v4463
      %v4465 = vlaneseq
      %v4466 = vshrl.u32 %v4465, 7
      %v4467 = vsub.s32 0, %v4466
      %v4468 = vrot.slane %v4443, %v4467
      %v4469 = vlaneseq
      %v4470 = vshrl.u32 %v4469, 7
      %v4471 = vsub.s32 0, %v4470
      %v4472 = vrot.slane %v4444, %v4471
      %v4473 = vlaneseq
      %v4474 = vshrl.u32 %v4473, 7
      %v4475 = vsub.s32 0, %v4474
      %v4476 = vrot.slane %v4445, %v4475
      %v4477 = vlaneseq
      %v4478 = vshrl.u32 %v4477, 7
      %v4479 = vsub.s32 0, %v4478
      %v4480 = vrot.slane %v4446, %v4479
      %v4481 = vlaneseq
      %v4482 = vshrl.u32 %v4481, 7
      %v4483 = vsub.s32 0, %v4482
      %v4484 = vrot.slane %v4447, %v4483
      %v4485 = vlaneseq
      %v4486 = vshrl.u32 %v4485, 7
      %v4487 = vsub.s32 0, %v4486
      %v4488 = vrot.slane %v4448, %v4487
      %4489 = vset.pattern.permute.xlu0 0
      %4490 = vperm.xlu0 %4489, %v4460
      %v4491 = vpop.permute.xlu0 %4490
      %4493 = vset.pattern.permute.xlu0 0
      %4494 = vperm.xlu0 %4493, %v4464
      %v4495 = vpop.permute.xlu0 %4494
      %4497 = vset.pattern.permute.xlu0 0
      %4498 = vperm.xlu0 %4497, %v4468
      %v4499 = vpop.permute.xlu0 %4498
      %4501 = vset.pattern.permute.xlu0 0
      %4502 = vperm.xlu0 %4501, %v4472
      %v4503 = vpop.permute.xlu0 %4502
      %4505 = vset.pattern.permute.xlu0 0
      %4506 = vperm.xlu0 %4505, %v4476
      %v4507 = vpop.permute.xlu0 %4506
      %4509 = vset.pattern.permute.xlu0 0
      %4510 = vperm.xlu0 %4509, %v4480
      %v4511 = vpop.permute.xlu0 %4510
      %4513 = vset.pattern.permute.xlu0 0
      %4514 = vperm.xlu0 %4513, %v4484
      %v4515 = vpop.permute.xlu0 %4514
      %4517 = vset.pattern.permute.xlu0 0
      %4518 = vperm.xlu0 %4517, %v4488
      %v4519 = vpop.permute.xlu0 %4518
      %v4521 = vmul.f32 %v4491, %v3739
      %v4522 = vmul.f32 %v4491, %v3744
      %v4523 = vmul.f32 %v4491, %v3749
      %v4524 = vmul.f32 %v4491, %v3754
      %v4525 = vmul.f32 %v4495, %v3739
      %v4526 = vmul.f32 %v4495, %v3744
      %v4527 = vmul.f32 %v4495, %v3749
      %v4528 = vmul.f32 %v4495, %v3754
      %v4529 = vmul.f32 %v4499, %v3739
      %v4530 = vmul.f32 %v4499, %v3744
      %v4531 = vmul.f32 %v4499, %v3749
      %v4532 = vmul.f32 %v4499, %v3754
      %v4533 = vmul.f32 %v4503, %v3739
      %v4534 = vmul.f32 %v4503, %v3744
      %v4535 = vmul.f32 %v4503, %v3749
      %v4536 = vmul.f32 %v4503, %v3754
      %v4537 = vmul.f32 %v4507, %v3739
      %v4538 = vmul.f32 %v4507, %v3744
      %v4539 = vmul.f32 %v4507, %v3749
      %v4540 = vmul.f32 %v4507, %v3754
      %v4541 = vmul.f32 %v4511, %v3739
      %v4542 = vmul.f32 %v4511, %v3744
      %v4543 = vmul.f32 %v4511, %v3749
      %v4544 = vmul.f32 %v4511, %v3754
      %v4545 = vmul.f32 %v4515, %v3739
      %v4546 = vmul.f32 %v4515, %v3744
      %v4547 = vmul.f32 %v4515, %v3749
      %v4548 = vmul.f32 %v4515, %v3754
      %v4549 = vmul.f32 %v4519, %v3739
      %v4550 = vmul.f32 %v4519, %v3744
      %v4551 = vmul.f32 %v4519, %v3749
      %v4552 = vmul.f32 %v4519, %v3754
      %v4585 = vrot.slane %v4521, 1
      %v4586 = vrot.slane %v4522, 1
      %v4587 = vsel %vm1028, %v4585, %v4586
      %v4588 = vrot.slane %v4523, 1
      %v4589 = vsel %vm1028, %v4586, %v4588
      %v4590 = vrot.slane %v4524, 1
      %v4591 = vsel %vm1028, %v4588, %v4590
      %v4592 = vrot.slane %v4525, 1
      %v4593 = vrot.slane %v4526, 1
      %v4594 = vsel %vm1028, %v4592, %v4593
      %v4595 = vrot.slane %v4527, 1
      %v4596 = vsel %vm1028, %v4593, %v4595
      %v4597 = vrot.slane %v4528, 1
      %v4598 = vsel %vm1028, %v4595, %v4597
      %v4599 = vrot.slane %v4529, 1
      %v4600 = vrot.slane %v4530, 1
      %v4601 = vsel %vm1028, %v4599, %v4600
      %v4602 = vrot.slane %v4531, 1
      %v4603 = vsel %vm1028, %v4600, %v4602
      %v4604 = vrot.slane %v4532, 1
      %v4605 = vsel %vm1028, %v4602, %v4604
      %v4606 = vrot.slane %v4533, 1
      %v4607 = vrot.slane %v4534, 1
      %v4608 = vsel %vm1028, %v4606, %v4607
      %v4609 = vrot.slane %v4535, 1
      %v4610 = vsel %vm1028, %v4607, %v4609
      %v4611 = vrot.slane %v4536, 1
      %v4612 = vsel %vm1028, %v4609, %v4611
      %v4613 = vrot.slane %v4537, 1
      %v4614 = vrot.slane %v4538, 1
      %v4615 = vsel %vm1028, %v4613, %v4614
      %v4616 = vrot.slane %v4539, 1
      %v4617 = vsel %vm1028, %v4614, %v4616
      %v4618 = vrot.slane %v4540, 1
      %v4619 = vsel %vm1028, %v4616, %v4618
      %v4620 = vrot.slane %v4541, 1
      %v4621 = vrot.slane %v4542, 1
      %v4622 = vsel %vm1028, %v4620, %v4621
      %v4623 = vrot.slane %v4543, 1
      %v4624 = vsel %vm1028, %v4621, %v4623
      %v4625 = vrot.slane %v4544, 1
      %v4626 = vsel %vm1028, %v4623, %v4625
      %v4627 = vrot.slane %v4545, 1
      %v4628 = vrot.slane %v4546, 1
      %v4629 = vsel %vm1028, %v4627, %v4628
      %v4630 = vrot.slane %v4547, 1
      %v4631 = vsel %vm1028, %v4628, %v4630
      %v4632 = vrot.slane %v4548, 1
      %v4633 = vsel %vm1028, %v4630, %v4632
      %v4634 = vrot.slane %v4549, 1
      %v4635 = vrot.slane %v4550, 1
      %v4636 = vsel %vm1028, %v4634, %v4635
      %v4637 = vrot.slane %v4551, 1
      %v4638 = vsel %vm1028, %v4635, %v4637
      %v4639 = vrot.slane %v4552, 1
      %v4640 = vsel %vm1028, %v4637, %v4639
      %4641 = vrot.lane.b32.xlu0 %v4587, 127
      %v4642 = vpop.permute.xlu0 %4641
      %4643 = vrot.lane.b32.xlu0 %v4589, 127
      %v4644 = vpop.permute.xlu0 %4643
      %4645 = vrot.lane.b32.xlu0 %v4591, 127
      %v4646 = vpop.permute.xlu0 %4645
      %4647 = vrot.lane.b32.xlu0 %v4590, 127
      %v4648 = vpop.permute.xlu0 %4647
      %4649 = vrot.lane.b32.xlu0 %v4594, 127
      %v4650 = vpop.permute.xlu0 %4649
      %4651 = vrot.lane.b32.xlu0 %v4596, 127
      %v4652 = vpop.permute.xlu0 %4651
      %4653 = vrot.lane.b32.xlu0 %v4598, 127
      %v4654 = vpop.permute.xlu0 %4653
      %4655 = vrot.lane.b32.xlu0 %v4597, 127
      %v4656 = vpop.permute.xlu0 %4655
      %4657 = vrot.lane.b32.xlu0 %v4601, 127
      %v4658 = vpop.permute.xlu0 %4657
      %4659 = vrot.lane.b32.xlu0 %v4603, 127
      %v4660 = vpop.permute.xlu0 %4659
      %4661 = vrot.lane.b32.xlu0 %v4605, 127
      %v4662 = vpop.permute.xlu0 %4661
      %4663 = vrot.lane.b32.xlu0 %v4604, 127
      %v4664 = vpop.permute.xlu0 %4663
      %4665 = vrot.lane.b32.xlu0 %v4608, 127
      %v4666 = vpop.permute.xlu0 %4665
      %4667 = vrot.lane.b32.xlu0 %v4610, 127
      %v4668 = vpop.permute.xlu0 %4667
      %4669 = vrot.lane.b32.xlu0 %v4612, 127
      %v4670 = vpop.permute.xlu0 %4669
      %4671 = vrot.lane.b32.xlu0 %v4611, 127
      %v4672 = vpop.permute.xlu0 %4671
      %4673 = vrot.lane.b32.xlu0 %v4615, 127
      %v4674 = vpop.permute.xlu0 %4673
      %4675 = vrot.lane.b32.xlu0 %v4617, 127
      %v4676 = vpop.permute.xlu0 %4675
      %4677 = vrot.lane.b32.xlu0 %v4619, 127
      %v4678 = vpop.permute.xlu0 %4677
      %4679 = vrot.lane.b32.xlu0 %v4618, 127
      %v4680 = vpop.permute.xlu0 %4679
      %4681 = vrot.lane.b32.xlu0 %v4622, 127
      %v4682 = vpop.permute.xlu0 %4681
      %4683 = vrot.lane.b32.xlu0 %v4624, 127
      %v4684 = vpop.permute.xlu0 %4683
      %4685 = vrot.lane.b32.xlu0 %v4626, 127
      %v4686 = vpop.permute.xlu0 %4685
      %4687 = vrot.lane.b32.xlu0 %v4625, 127
      %v4688 = vpop.permute.xlu0 %4687
      %4689 = vrot.lane.b32.xlu0 %v4629, 127
      %v4690 = vpop.permute.xlu0 %4689
      %4691 = vrot.lane.b32.xlu0 %v4631, 127
      %v4692 = vpop.permute.xlu0 %4691
      %4693 = vrot.lane.b32.xlu0 %v4633, 127
      %v4694 = vpop.permute.xlu0 %4693
      %4695 = vrot.lane.b32.xlu0 %v4632, 127
      %v4696 = vpop.permute.xlu0 %4695
      %4697 = vrot.lane.b32.xlu0 %v4636, 127
      %v4698 = vpop.permute.xlu0 %4697
      %4699 = vrot.lane.b32.xlu0 %v4638, 127
      %v4700 = vpop.permute.xlu0 %4699
      %4701 = vrot.lane.b32.xlu0 %v4640, 127
      %v4702 = vpop.permute.xlu0 %4701
      %4703 = vrot.lane.b32.xlu0 %v4639, 127
      %v4704 = vpop.permute.xlu0 %4703
      %v4737 = vadd.f32 %v4408, %v4642
      %v4738 = vadd.f32 %v4409, %v4644
      %v4739 = vadd.f32 %v4410, %v4646
      %v4740 = vadd.f32 %v4411, %v4648
      %v4741 = vadd.f32 %v4412, %v4650
      %v4742 = vadd.f32 %v4413, %v4652
      %v4743 = vadd.f32 %v4414, %v4654
      %v4744 = vadd.f32 %v4415, %v4656
      %v4745 = vadd.f32 %v4416, %v4658
      %v4746 = vadd.f32 %v4417, %v4660
      %v4747 = vadd.f32 %v4418, %v4662
      %v4748 = vadd.f32 %v4419, %v4664
      %v4749 = vadd.f32 %v4420, %v4666
      %v4750 = vadd.f32 %v4421, %v4668
      %v4751 = vadd.f32 %v4422, %v4670
      %v4752 = vadd.f32 %v4423, %v4672
      %v4753 = vadd.f32 %v4424, %v4674
      %v4754 = vadd.f32 %v4425, %v4676
      %v4755 = vadd.f32 %v4426, %v4678
      %v4756 = vadd.f32 %v4427, %v4680
      %v4757 = vadd.f32 %v4428, %v4682
      %v4758 = vadd.f32 %v4429, %v4684
      %v4759 = vadd.f32 %v4430, %v4686
      %v4760 = vadd.f32 %v4431, %v4688
      %v4761 = vadd.f32 %v4432, %v4690
      %v4762 = vadd.f32 %v4433, %v4692
      %v4763 = vadd.f32 %v4434, %v4694
      %v4764 = vadd.f32 %v4435, %v4696
      %v4765 = vadd.f32 %v4436, %v4698
      %v4766 = vadd.f32 %v4437, %v4700
      %v4767 = vadd.f32 %v4438, %v4702
      %v4768 = vadd.f32 %v4439, %v4704
      %v4769 = vld [vmem:[%s4] sm:$0x1]
      %v4770 = vld [vmem:[%s4 + $0x1] sm:$0x1]
      %v4771 = vld [vmem:[%s4 + $0x2] sm:$0x1]
      %v4772 = vld [vmem:[%s4 + $0x3] sm:$0x1]
      %v4773 = vld [vmem:[%s4 + $0x4] sm:$0x1]
      %v4774 = vld [vmem:[%s4 + $0x5] sm:$0x1]
      %v4775 = vld [vmem:[%s4 + $0x6] sm:$0x1]
      %v4776 = vld [vmem:[%s4 + $0x7] sm:$0x1]
      %v4785 = vlaneseq
      %v4786 = vshrl.u32 %v4785, 7
      %v4787 = vsub.s32 0, %v4786
      %v4788 = vrot.slane %v4769, %v4787
      %v4789 = vlaneseq
      %v4790 = vshrl.u32 %v4789, 7
      %v4791 = vsub.s32 0, %v4790
      %v4792 = vrot.slane %v4770, %v4791
      %v4793 = vlaneseq
      %v4794 = vshrl.u32 %v4793, 7
      %v4795 = vsub.s32 0, %v4794
      %v4796 = vrot.slane %v4771, %v4795
      %v4797 = vlaneseq
      %v4798 = vshrl.u32 %v4797, 7
      %v4799 = vsub.s32 0, %v4798
      %v4800 = vrot.slane %v4772, %v4799
      %v4801 = vlaneseq
      %v4802 = vshrl.u32 %v4801, 7
      %v4803 = vsub.s32 0, %v4802
      %v4804 = vrot.slane %v4773, %v4803
      %v4805 = vlaneseq
      %v4806 = vshrl.u32 %v4805, 7
      %v4807 = vsub.s32 0, %v4806
      %v4808 = vrot.slane %v4774, %v4807
      %v4809 = vlaneseq
      %v4810 = vshrl.u32 %v4809, 7
      %v4811 = vsub.s32 0, %v4810
      %v4812 = vrot.slane %v4775, %v4811
      %v4813 = vlaneseq
      %v4814 = vshrl.u32 %v4813, 7
      %v4815 = vsub.s32 0, %v4814
      %v4816 = vrot.slane %v4776, %v4815
      %4817 = vset.pattern.permute.xlu0 0
      %4818 = vperm.xlu0 %4817, %v4788
      %v4819 = vpop.permute.xlu0 %4818
      %4821 = vset.pattern.permute.xlu0 0
      %4822 = vperm.xlu0 %4821, %v4792
      %v4823 = vpop.permute.xlu0 %4822
      %4825 = vset.pattern.permute.xlu0 0
      %4826 = vperm.xlu0 %4825, %v4796
      %v4827 = vpop.permute.xlu0 %4826
      %4829 = vset.pattern.permute.xlu0 0
      %4830 = vperm.xlu0 %4829, %v4800
      %v4831 = vpop.permute.xlu0 %4830
      %4833 = vset.pattern.permute.xlu0 0
      %4834 = vperm.xlu0 %4833, %v4804
      %v4835 = vpop.permute.xlu0 %4834
      %4837 = vset.pattern.permute.xlu0 0
      %4838 = vperm.xlu0 %4837, %v4808
      %v4839 = vpop.permute.xlu0 %4838
      %4841 = vset.pattern.permute.xlu0 0
      %4842 = vperm.xlu0 %4841, %v4812
      %v4843 = vpop.permute.xlu0 %4842
      %4845 = vset.pattern.permute.xlu0 0
      %4846 = vperm.xlu0 %4845, %v4816
      %v4847 = vpop.permute.xlu0 %4846
      %v4849 = vadd.f32 %v4737, %v4819
      %v4850 = vadd.f32 %v4738, %v4819
      %v4851 = vadd.f32 %v4739, %v4819
      %v4852 = vadd.f32 %v4740, %v4819
      %v4853 = vadd.f32 %v4741, %v4823
      %v4854 = vadd.f32 %v4742, %v4823
      %v4855 = vadd.f32 %v4743, %v4823
      %v4856 = vadd.f32 %v4744, %v4823
      %v4857 = vadd.f32 %v4745, %v4827
      %v4858 = vadd.f32 %v4746, %v4827
      %v4859 = vadd.f32 %v4747, %v4827
      %v4860 = vadd.f32 %v4748, %v4827
      %v4861 = vadd.f32 %v4749, %v4831
      %v4862 = vadd.f32 %v4750, %v4831
      %v4863 = vadd.f32 %v4751, %v4831
      %v4864 = vadd.f32 %v4752, %v4831
      %v4865 = vadd.f32 %v4753, %v4835
      %v4866 = vadd.f32 %v4754, %v4835
      %v4867 = vadd.f32 %v4755, %v4835
      %v4868 = vadd.f32 %v4756, %v4835
      %v4869 = vadd.f32 %v4757, %v4839
      %v4870 = vadd.f32 %v4758, %v4839
      %v4871 = vadd.f32 %v4759, %v4839
      %v4872 = vadd.f32 %v4760, %v4839
      %v4873 = vadd.f32 %v4761, %v4843
      %v4874 = vadd.f32 %v4762, %v4843
      %v4875 = vadd.f32 %v4763, %v4843
      %v4876 = vadd.f32 %v4764, %v4843
      %v4877 = vadd.f32 %v4765, %v4847
      %v4878 = vadd.f32 %v4766, %v4847
      %v4879 = vadd.f32 %v4767, %v4847
      %v4880 = vadd.f32 %v4768, %v4847
      %vm4881 = vcmask 252928
      %4882 = vst.msk [vmem:[%s224] sm:$0xff] %vm4881, %v4849
      %4883 = vst.msk [vmem:[%s224 + $0x8] sm:$0xff] %vm4881, %v4850
      %4884 = vst.msk [vmem:[%s224 + $0x10] sm:$0xff] %vm4881, %v4851
      %vm4885 = vcmask 251904
      %4886 = vst.msk [vmem:[%s224 + $0x18] sm:$0x7f] %vm4885, %v4852
      %4887 = vst.msk [vmem:[%s224 + $0x20] sm:$0xff] %vm4881, %v4853
      %4888 = vst.msk [vmem:[%s224 + $0x28] sm:$0xff] %vm4881, %v4854
      %4889 = vst.msk [vmem:[%s224 + $0x30] sm:$0xff] %vm4881, %v4855
      %4890 = vst.msk [vmem:[%s224 + $0x38] sm:$0x7f] %vm4885, %v4856
      %4891 = vst.msk [vmem:[%s224 + $0x40] sm:$0xff] %vm4881, %v4857
      %4892 = vst.msk [vmem:[%s224 + $0x48] sm:$0xff] %vm4881, %v4858
      %4893 = vst.msk [vmem:[%s224 + $0x50] sm:$0xff] %vm4881, %v4859
      %4894 = vst.msk [vmem:[%s224 + $0x58] sm:$0x7f] %vm4885, %v4860
      %4895 = vst.msk [vmem:[%s224 + $0x60] sm:$0xff] %vm4881, %v4861
      %4896 = vst.msk [vmem:[%s224 + $0x68] sm:$0xff] %vm4881, %v4862
      %4897 = vst.msk [vmem:[%s224 + $0x70] sm:$0xff] %vm4881, %v4863
      %4898 = vst.msk [vmem:[%s224 + $0x78] sm:$0x7f] %vm4885, %v4864
      %4899 = vst.msk [vmem:[%s224 + $0x80] sm:$0xff] %vm4881, %v4865
      %4900 = vst.msk [vmem:[%s224 + $0x88] sm:$0xff] %vm4881, %v4866
      %4901 = vst.msk [vmem:[%s224 + $0x90] sm:$0xff] %vm4881, %v4867
      %4902 = vst.msk [vmem:[%s224 + $0x98] sm:$0x7f] %vm4885, %v4868
      %4903 = vst.msk [vmem:[%s224 + $0xa0] sm:$0xff] %vm4881, %v4869
      %4904 = vst.msk [vmem:[%s224 + $0xa8] sm:$0xff] %vm4881, %v4870
      %4905 = vst.msk [vmem:[%s224 + $0xb0] sm:$0xff] %vm4881, %v4871
      %4906 = vst.msk [vmem:[%s224 + $0xb8] sm:$0x7f] %vm4885, %v4872
      %4907 = vst.msk [vmem:[%s224 + $0xc0] sm:$0xff] %vm4881, %v4873
      %4908 = vst.msk [vmem:[%s224 + $0xc8] sm:$0xff] %vm4881, %v4874
      %4909 = vst.msk [vmem:[%s224 + $0xd0] sm:$0xff] %vm4881, %v4875
      %4910 = vst.msk [vmem:[%s224 + $0xd8] sm:$0x7f] %vm4885, %v4876
      %4911 = vst.msk [vmem:[%s224 + $0xe0] sm:$0xff] %vm4881, %v4877
      %4912 = vst.msk [vmem:[%s224 + $0xe8] sm:$0xff] %vm4881, %v4878
      %4913 = vst.msk [vmem:[%s224 + $0xf0] sm:$0xff] %vm4881, %v4879
      %4914 = vst.msk [vmem:[%s224 + $0xf8] sm:$0x7f] %vm4885, %v4880
      %p4915 = scmp.lt.s32.totalorder %s16, 1
      %s4916 = scalar_select %p4915, %s16, 1
      %s4917 = smul.addr %s4916, 32
      %s4918 = smul.addr %s4917, 8
      %s4919 = scalar_lea.vmem %s5, %s4918
      // Predicated region
      $region41: #{upsample_conv_forward.1} parent=39 // pred_check
        %p4920 = pneg %p144
      $region42: #{upsample_conv_forward.1} parent=39 // pred_check_branch
        %4922 = sbr.rel (%p4920) target = $region44
      $region43: #{upsample_conv_forward.1} parent=39 // pred_region
        _
      $region44: #{upsample_conv_forward.1} parent=39 // pred_fallthru
        _
    $region40: #{upsample_conv_forward.1} parent=5 // pred_fallthru
      _
    %p4923 = scmp.le.s32.totalorder 2, %s11
    // Predicated region
    $region45: #{upsample_conv_forward.1} parent=5 // pred_check
      %p4924 = pneg %p4923
    $region46: #{upsample_conv_forward.1} parent=5 // pred_check_branch
      %4926 = sbr.rel (%p4924) target = $region48
    $region47: #{upsample_conv_forward.1} parent=5 // pred_region
      %s4927 = ssub.s32 %s11, 2
      // Predicated region
      $region49: #{upsample_conv_forward.1} parent=47 // pred_check
        %p4928 = pneg %p150
      $region50: #{upsample_conv_forward.1} parent=47 // pred_check_branch
        %4930 = sbr.rel (%p4928) target = $region52
      $region51: #{upsample_conv_forward.1} parent=47 // pred_region
        %p4931 = scmp.lt.s32.totalorder %s17, 1
        %s4932 = scalar_select %p4931, %s17, 1
        %s4933 = smul.addr %s4932, 32
        %s4934 = smul.addr %s4933, 8
        %s4935 = scalar_lea.vmem %s5, %s4934
      $region52: #{upsample_conv_forward.1} parent=47 // pred_fallthru
        _
    $region48: #{upsample_conv_forward.1} parent=5 // pred_fallthru
      _
  $region6: #{upsample_conv_forward.1} parent=0 // loop_footer
    %s15 = sadd.s32 1, %s11
  $region7: #{upsample_conv_forward.1} parent=0 // loop_footer_branch
    %10 = sbr.rel target = $region3
  $region8: #{upsample_conv_forward.1} parent=0 // loop_exit
    _

</llo_original>
